<compile_context>
chip_gen: v7x
topology: tpu7x:2x2x1
jax: 0.10.0
libtpu: 0.0.40
codegen_flags: <defaults>
</compile_context>

<pallas_src>
import jax
import jax.numpy as jnp
from jax.experimental import pallas as pl
from jax.experimental.pallas import tpu as pltpu


NEG_SLOPE = 0.2      # LeakyReLU negative slope (module default)
NEG_BIG = -1.0e30    # finite "-inf" so one-hot matmuls / exp never produce NaN


def edge_gat_kernel(nfeat_ref, wn_ref, bn_ref, alr_ref, we_ref, be_ref, ae_ref,
                    efeat_ref, src_ref, dst_row_ref, dst_col_ref,
                    out_ref,
                    el_sc, er_sc, m_sc, l_sc, num_sc):
    t = pl.program_id(0)
    hp, npad = m_sc.shape
    te = efeat_ref.shape[1]

    # ---------------- prologue (once): node-side fc + fused attn_l/attn_r ----------------
    @pl.when(t == 0)
    def _init():
        node_proj = jnp.dot(wn_ref[...], nfeat_ref[...],
                            preferred_element_type=jnp.float32) + bn_ref[...]        # [HFp, Np]
        eler = jnp.dot(alr_ref[...], node_proj, preferred_element_type=jnp.float32)  # [2Hp, Np]
        el_sc[...] = eler[:hp, :]
        er_sc[...] = eler[hp:, :]
        m_sc[...] = jnp.full_like(m_sc, NEG_BIG)
        l_sc[...] = jnp.zeros_like(l_sc)
        num_sc[...] = jnp.zeros_like(num_sc)

    # -------- edge-side fc + attn_e for this edge tile (edges on the 128-lane axis) -------
    edge_proj = jnp.dot(we_ref[...], efeat_ref[...],
                        preferred_element_type=jnp.float32) + be_ref[...]             # [HFp, tE]
    ee = jnp.dot(ae_ref[...], edge_proj, preferred_element_type=jnp.float32)          # [Hp, tE]

    # -------- rebuild this tile's one-hot gather/scatter masks in VMEM (O(E) HBM only) ----
    src = src_ref[...]          # [1, tE]  int32 (padded slots hold `npad`, i.e. out of range)
    dst_r = dst_row_ref[...]    # [1, tE]  int32
    dst_c = dst_col_ref[...]    # [tE, 1]  int32
    node_iota_nt = jax.lax.broadcasted_iota(jnp.int32, (npad, te), 0)
    node_iota_tn = jax.lax.broadcasted_iota(jnp.int32, (te, npad), 1)
    msrc = (node_iota_nt == src).astype(jnp.float32)       # [Np, tE] one-hot of src (gather)
    mdst = (node_iota_nt == dst_r).astype(jnp.float32)     # [Np, tE] one-hot of dst (gather)
    gdst = (node_iota_tn == dst_c).astype(jnp.float32)     # [tE, Np] one-hot of dst (scatter)

    # ---------------- attention logits ----------------------------------------------------
    el_src = jnp.dot(el_sc[...], msrc, preferred_element_type=jnp.float32)   # el[src]  [Hp, tE]
    er_dst = jnp.dot(er_sc[...], mdst, preferred_element_type=jnp.float32)   # er[dst]  [Hp, tE]
    el_prime = el_src + ee
    ev = el_prime + er_dst
    ev = jnp.where(ev > 0, ev, NEG_SLOPE * ev)                                # leaky_relu

    # ------------- per-destination online softmax (flash-style running max/sum) -----------
    logmask = jnp.where(mdst > 0, 0.0, NEG_BIG)                               # [Np, tE]
    tile_max = jnp.max(ev[:, None, :] + logmask[None, :, :], axis=-1)         # [Hp, Np]
    m_prev = m_sc[...]
    m_new = jnp.maximum(m_prev, tile_max)
    alpha = jnp.exp(m_prev - m_new)                                           # rescale old sums

    # gather the updated per-dst max back onto this tile's edges
    m_edge = jnp.dot(m_new, mdst, preferred_element_type=jnp.float32)         # [Hp, tE]
    p = jnp.exp(ev - m_edge)
    p = jnp.where(dst_r < npad, p, 0.0)                                       # kill padded edges

    l_sc[...] = alpha * l_sc[...] + jnp.dot(p, gdst, preferred_element_type=jnp.float32)
    num_sc[...] = alpha * num_sc[...] + jnp.dot(p * el_prime, gdst,
                                                preferred_element_type=jnp.float32)
    m_sc[...] = m_new

    # ---------------- epilogue (once): normalize per node, lane-dense store ---------------
    @pl.when(t == pl.num_programs(0) - 1)
    def _done():
        l = l_sc[...]
        # TODO(synk): pl.reciprocal(..., approx=True) is fine once outputs are bf16.
        inv = pl.reciprocal(jnp.maximum(l, 1e-30))
        # zero in-degree nodes (and padded node columns) get 0 instead of NaN
        out_ref[...] = jnp.where(l > 0, num_sc[...] * inv, 0.0)


def _round_up(x, m):
    return (x + m - 1) // m * m


def edge_gat_forward(nfeat, efeat, params, src, dst, num_nodes, *,
                     edge_tile=128, vmem_limit_bytes=32 * 1024 * 1024):
    """Plain-JAX glue (padding / transposition / index packing) around the Pallas kernel."""
    N = int(num_nodes)
    E = int(src.shape[0])
    H = params["num_heads"]
    F = params["out_feats"]
    Fn = nfeat.shape[1]
    Fe = efeat.shape[1]
    HF = H * F

    # TPU-friendly padded sizes: lane axes -> multiples of 128, head/sublane axes -> 8.
    Hp = _round_up(H, 8)
    HFp = _round_up(HF, 128)
    Fnp = _round_up(Fn, 128)
    Fep = _round_up(Fe, 128)
    Np = _round_up(N, 128)
    tE = edge_tile
    assert tE % 128 == 0, "edge_tile must be a multiple of 128"
    Ep = _round_up(E, tE)
    n_tiles = Ep // tE

    f32 = jnp.float32

    def pad_to(x, shape):
        return jnp.pad(x, [(0, s - d) for d, s in zip(x.shape, shape)])

    # Transposed + padded operands: nodes / edges live on the lane axis, heads on sublanes.
    nfeat_t = pad_to(nfeat.astype(f32).T, (Fnp, Np))                         # [Fnp, Np]
    efeat_t = pad_to(efeat.astype(f32).T, (Fep, Ep))                         # [Fep, Ep]
    wn_t = pad_to(params["w_node"].astype(f32).T, (HFp, Fnp))                # [HFp, Fnp]
    bn_t = pad_to(params["b_node"].astype(f32).reshape(HF, 1), (HFp, 1))
    we_t = pad_to(params["w_edge"].astype(f32).T, (HFp, Fep))                # [HFp, Fep]
    be_t = pad_to(params["b_edge"].astype(f32).reshape(HF, 1), (HFp, 1))

    # Fold attn_{l,r,e} into block-row matrices so "(feat*attn).sum(-1)" becomes a matmul;
    # attn_l and attn_r are concatenated -> a single fused MXU pass produces el and er.
    def attn_rows(attn):                                                     # [H,F] -> [Hp,HFp]
        rows = jnp.repeat(jnp.arange(H), F)
        cols = jnp.arange(HF)
        return jnp.zeros((Hp, HFp), f32).at[rows, cols].set(attn.astype(f32).reshape(-1))

    a_lr_t = jnp.concatenate([attn_rows(params["attn_l"]),
                              attn_rows(params["attn_r"])], axis=0)          # [2Hp, HFp]
    a_e_t = attn_rows(params["attn_e"])                                      # [Hp, HFp]

    # Graph structure as O(E) index vectors; padded slots get the out-of-range sentinel Np.
    pad_ids = jnp.full((Ep - E,), Np, jnp.int32)
    src_p = jnp.concatenate([src.astype(jnp.int32), pad_ids])
    dst_p = jnp.concatenate([dst.astype(jnp.int32), pad_ids])
    src_row = src_p.reshape(1, Ep)
    dst_row = dst_p.reshape(1, Ep)
    dst_col = dst_p.reshape(Ep, 1)

    def resident(shape):
        return pl.BlockSpec(shape, lambda i: (0,) * len(shape))

    grid_spec = pltpu.PrefetchScalarGridSpec(
        num_scalar_prefetch=0,
        grid=(n_tiles,),
        in_specs=[
            resident((Fnp, Np)),                          # nfeat_t   (resident)
            resident((HFp, Fnp)),                         # wn_t
            resident((HFp, 1)),                           # bn_t
            resident((2 * Hp, HFp)),                      # a_lr_t
            resident((HFp, Fep)),                         # we_t
            resident((HFp, 1)),                           # be_t
            resident((Hp, HFp)),                          # a_e_t
            pl.BlockSpec((Fep, tE), lambda i: (0, i)),    # efeat_t   (streamed per edge tile)
            pl.BlockSpec((1, tE), lambda i: (0, i)),      # src ids
            pl.BlockSpec((1, tE), lambda i: (0, i)),      # dst ids (row layout)
            pl.BlockSpec((tE, 1), lambda i: (i, 0)),      # dst ids (col layout, scatter side)
        ],
        out_specs=pl.BlockSpec((Hp, Np), lambda i: (0, 0)),
        scratch_shapes=[
            pltpu.VMEM((Hp, Np), f32),    # el  (resident node attention scalars)
            pltpu.VMEM((Hp, Np), f32),    # er
            pltpu.VMEM((Hp, Np), f32),    # running per-dst max
            pltpu.VMEM((Hp, Np), f32),    # running softmax denominator
            pltpu.VMEM((Hp, Np), f32),    # running numerator
        ],
    )

    # Advisory cost estimate (matmul flops + exp count + bytes moved).
    flops = (2 * HFp * Fnp * Np + 2 * (2 * Hp) * HFp * Np
             + n_tiles * (2 * HFp * Fep * tE + 2 * Hp * HFp * tE
                          + 2 * 3 * Hp * Np * tE + 2 * 2 * Hp * tE * Np))
    transcendentals = n_tiles * (Hp * tE + Hp * Np)
    bytes_accessed = 4 * (nfeat_t.size + efeat_t.size + wn_t.size + we_t.size
                          + bn_t.size + be_t.size + a_lr_t.size + a_e_t.size
                          + src_row.size + dst_row.size + dst_col.size + Hp * Np)

    out = pl.pallas_call(
        edge_gat_kernel,
        out_shape=jax.ShapeDtypeStruct((Hp, Np), f32),
        grid_spec=grid_spec,
        compiler_params=pltpu.CompilerParams(
            dimension_semantics=("arbitrary",),     # edge axis is a reduction into the output
            vmem_limit_bytes=vmem_limit_bytes,
        ),
        cost_estimate=pl.CostEstimate(flops=int(flops),
                                      transcendentals=int(transcendentals),
                                      bytes_accessed=int(bytes_accessed)),
    )(nfeat_t, wn_t, bn_t, a_lr_t, we_t, be_t, a_e_t,
      efeat_t, src_row, dst_row, dst_col)

    # [Hp, Np] -> [N, H, 1]  (matches PyTorch output layout)
    return out[:H, :N].T[:, :, None]


def edge_gat_reference(nfeat, efeat, params, src, dst, num_nodes):
    """Pure-JAX reference mirroring the PyTorch/DGL forward."""
    N = num_nodes
    H = params["num_heads"]
    F = params["out_feats"]
    node_proj = (nfeat @ params["w_node"] + params["b_node"]).reshape(-1, H, F)
    edge_proj = (efeat @ params["w_edge"] + params["b_edge"]).reshape(-1, H, F)
    el = (node_proj * params["attn_l"][None]).sum(-1)      # [N, H]
    er = (node_proj * params["attn_r"][None]).sum(-1)      # [N, H]
    ee = (edge_proj * params["attn_e"][None]).sum(-1)      # [E, H]
    el_prime = el[src] + ee
    ev = el_prime + er[dst]
    ev = jnp.where(ev > 0, ev, NEG_SLOPE * ev)
    ev_max = jax.ops.segment_max(ev, dst, num_segments=N)
    expv = jnp.exp(ev - ev_max[dst])
    denom = jax.ops.segment_sum(expv, dst, num_segments=N)
    a = expv / denom[dst]
    rst = jax.ops.segment_sum(a * el_prime, dst, num_segments=N)
    return rst[:, :, None]


if __name__ == "__main__":
    # sizes (small, but two edge tiles so the online-softmax accumulation path is exercised)
    N = 64
    NODE_FEATS = 8
    EDGE_FEATS = 6
    OUT_FEATS = 16
    NUM_HEADS = 4

    # directed graph: self loops + ring + skip edges (in-degree >= 1 everywhere)
    nodes = jnp.arange(N)
    src = jnp.concatenate([nodes, nodes, (nodes + 3) % N]).astype(jnp.int32)
    dst = jnp.concatenate([nodes, (nodes + 1) % N, nodes]).astype(jnp.int32)
    E = src.shape[0]   # 192 -> two 128-edge tiles after padding

    # deterministic parameter init (xavier-normal-ish, gain = sqrt(2) for 'relu')
    key = jax.random.PRNGKey(0)
    ks = jax.random.split(key, 8)
    gain = jnp.sqrt(2.0)

    def xavier(k, shape):
        fan_in, fan_out = shape[0], shape[1]
        std = gain * jnp.sqrt(2.0 / (fan_in + fan_out))
        return (std * jax.random.normal(k, shape)).astype(jnp.float32)

    params = {
        "num_heads": NUM_HEADS,
        "out_feats": OUT_FEATS,
        "w_node": xavier(ks[0], (NODE_FEATS, OUT_FEATS * NUM_HEADS)),   # pre-transposed [in, out]
        "b_node": (0.01 * jax.random.normal(ks[1], (1, OUT_FEATS * NUM_HEADS))).astype(jnp.float32),
        "w_edge": xavier(ks[2], (EDGE_FEATS, OUT_FEATS * NUM_HEADS)),
        "b_edge": (0.01 * jax.random.normal(ks[3], (1, OUT_FEATS * NUM_HEADS))).astype(jnp.float32),
        "attn_l": xavier(ks[4], (NUM_HEADS, OUT_FEATS)),
        "attn_r": xavier(ks[5], (NUM_HEADS, OUT_FEATS)),
        "attn_e": xavier(ks[6], (NUM_HEADS, OUT_FEATS)),
    }

    # inputs
    kin = jax.random.split(ks[7], 2)
    nfeat = jax.random.normal(kin[0], (N, NODE_FEATS), dtype=jnp.float32)
    efeat = jax.random.normal(kin[1], (E, EDGE_FEATS), dtype=jnp.float32)

    out = edge_gat_forward(nfeat, efeat, params, src, dst, N)
    out = jax.block_until_ready(out)

    ref = edge_gat_reference(nfeat, efeat, params, src, dst, N)
    assert out.shape == (N, NUM_HEADS, 1), out.shape
    max_err = jnp.max(jnp.abs(out - ref))
    assert jnp.allclose(out, ref, rtol=2e-4, atol=2e-4), max_err

    print("KERNEL_OK")
</pallas_src>

<mosaic_0001>
module attributes {stable_mosaic.version = 11 : i64} {
  func.func @edge_gat_kernel(%arg0: i32, %arg1: memref<128x128xf32, #tpu.memory_space<vmem>>, %arg2: memref<128x128xf32, #tpu.memory_space<vmem>>, %arg3: memref<128x1xf32, #tpu.memory_space<vmem>>, %arg4: memref<16x128xf32, #tpu.memory_space<vmem>>, %arg5: memref<128x128xf32, #tpu.memory_space<vmem>>, %arg6: memref<128x1xf32, #tpu.memory_space<vmem>>, %arg7: memref<8x128xf32, #tpu.memory_space<vmem>>, %arg8: memref<128x128xf32, #tpu.memory_space<vmem>>, %arg9: memref<1x128xi32, #tpu.memory_space<vmem>>, %arg10: memref<1x128xi32, #tpu.memory_space<vmem>>, %arg11: memref<128x1xi32, #tpu.memory_space<vmem>>, %arg12: memref<8x128xf32, #tpu.memory_space<vmem>>, %arg13: memref<8x128xf32, #tpu.memory_space<vmem>>, %arg14: memref<8x128xf32, #tpu.memory_space<vmem>>, %arg15: memref<8x128xf32, #tpu.memory_space<vmem>>, %arg16: memref<8x128xf32, #tpu.memory_space<vmem>>, %arg17: memref<8x128xf32, #tpu.memory_space<vmem>>) attributes {dimension_semantics = [#tpu.dimension_semantics<arbitrary>], iteration_bounds = array<i64: 2>, scalar_prefetch = 0 : i64, scratch_operands = 5 : i64, tpu.core_type = #tpu.core_type<tc>, window_params = [{pipeline_mode = #tpu.pipeline_mode<synchronous>, transform_indices = @transform_0, window_bounds = array<i64: 128, 128>}, {pipeline_mode = #tpu.pipeline_mode<synchronous>, transform_indices = @transform_1, window_bounds = array<i64: 128, 128>}, {pipeline_mode = #tpu.pipeline_mode<synchronous>, transform_indices = @transform_2, window_bounds = array<i64: 128, 1>}, {pipeline_mode = #tpu.pipeline_mode<synchronous>, transform_indices = @transform_3, window_bounds = array<i64: 16, 128>}, {pipeline_mode = #tpu.pipeline_mode<synchronous>, transform_indices = @transform_4, window_bounds = array<i64: 128, 128>}, {pipeline_mode = #tpu.pipeline_mode<synchronous>, transform_indices = @transform_5, window_bounds = array<i64: 128, 1>}, {pipeline_mode = #tpu.pipeline_mode<synchronous>, transform_indices = @transform_6, window_bounds = array<i64: 8, 128>}, {transform_indices = @transform_7, window_bounds = array<i64: 128, 128>}, {transform_indices = @transform_8, window_bounds = array<i64: 1, 128>}, {transform_indices = @transform_9, window_bounds = array<i64: 1, 128>}, {transform_indices = @transform_10, window_bounds = array<i64: 128, 1>}, {pipeline_mode = #tpu.pipeline_mode<synchronous>, transform_indices = @transform_11, window_bounds = array<i64: 8, 128>}]} {
    %c0_i32 = arith.constant 0 : i32
    %0 = arith.cmpi eq, %arg0, %c0_i32 : i32
    %1 = arith.extui %0 : i1 to i32
    %c0_i32_0 = arith.constant 0 : i32
    %2 = arith.cmpi ne, %1, %c0_i32_0 : i32
    scf.if %2 {
      %c0_44 = arith.constant 0 : index
      %c0_45 = arith.constant 0 : index
      %78 = vector.load %arg2[%c0_44, %c0_45] : memref<128x128xf32, #tpu.memory_space<vmem>>, vector<128x128xf32>
      %c0_46 = arith.constant 0 : index
      %c0_47 = arith.constant 0 : index
      %79 = vector.load %arg1[%c0_46, %c0_47] : memref<128x128xf32, #tpu.memory_space<vmem>>, vector<128x128xf32>
      %cst_48 = arith.constant dense<0.000000e+00> : vector<128x128xf32>
      %80 = tpu.matmul %78, %79, %cst_48 {dimension_numbers = #tpu.dot_dimension_numbers<[1], [0], [0], [1], [0, 0, 1, 1], [], []>} : vector<128x128xf32>, vector<128x128xf32>, vector<128x128xf32> -> vector<128x128xf32>
      %c0_49 = arith.constant 0 : index
      %c0_50 = arith.constant 0 : index
      %81 = vector.load %arg3[%c0_49, %c0_50] : memref<128x1xf32, #tpu.memory_space<vmem>>, vector<128x1xf32>
      %82 = vector.broadcast %81 : vector<128x1xf32> to vector<128x128xf32>
      %83 = arith.addf %80, %82 : vector<128x128xf32>
      %c0_51 = arith.constant 0 : index
      %c0_52 = arith.constant 0 : index
      %84 = vector.load %arg4[%c0_51, %c0_52] : memref<16x128xf32, #tpu.memory_space<vmem>>, vector<16x128xf32>
      %cst_53 = arith.constant dense<0.000000e+00> : vector<16x128xf32>
      %85 = tpu.matmul %84, %83, %cst_53 {dimension_numbers = #tpu.dot_dimension_numbers<[1], [0], [0], [1], [0, 0, 1, 1], [], []>} : vector<16x128xf32>, vector<128x128xf32>, vector<16x128xf32> -> vector<16x128xf32>
      %86 = vector.extract_strided_slice %85 {offsets = [0, 0], sizes = [8, 128], strides = [1, 1]} : vector<16x128xf32> to vector<8x128xf32>
      %c0_54 = arith.constant 0 : index
      %c0_55 = arith.constant 0 : index
      %87 = vector.load %arg13[%c0_54, %c0_55] : memref<8x128xf32, #tpu.memory_space<vmem>>, vector<8x128xf32>
      tpu.vector_store %arg13[%c0_54, %c0_55], %86 {strides = array<i32>} : memref<8x128xf32, #tpu.memory_space<vmem>>, vector<8x128xf32>,
      %88 = vector.extract_strided_slice %85 {offsets = [8, 0], sizes = [8, 128], strides = [1, 1]} : vector<16x128xf32> to vector<8x128xf32>
      %c0_56 = arith.constant 0 : index
      %c0_57 = arith.constant 0 : index
      %89 = vector.load %arg14[%c0_56, %c0_57] : memref<8x128xf32, #tpu.memory_space<vmem>>, vector<8x128xf32>
      tpu.vector_store %arg14[%c0_56, %c0_57], %88 {strides = array<i32>} : memref<8x128xf32, #tpu.memory_space<vmem>>, vector<8x128xf32>,
      %cst_58 = arith.constant -1.000000e+30 : f32
      %90 = vector.broadcast %cst_58 : f32 to vector<8x128xf32>
      %c0_59 = arith.constant 0 : index
      %c0_60 = arith.constant 0 : index
      %91 = vector.load %arg15[%c0_59, %c0_60] : memref<8x128xf32, #tpu.memory_space<vmem>>, vector<8x128xf32>
      tpu.vector_store %arg15[%c0_59, %c0_60], %90 {strides = array<i32>} : memref<8x128xf32, #tpu.memory_space<vmem>>, vector<8x128xf32>,
      %cst_61 = arith.constant 0.000000e+00 : f32
      %92 = vector.broadcast %cst_61 : f32 to vector<8x128xf32>
      %c0_62 = arith.constant 0 : index
      %c0_63 = arith.constant 0 : index
      %93 = vector.load %arg16[%c0_62, %c0_63] : memref<8x128xf32, #tpu.memory_space<vmem>>, vector<8x128xf32>
      tpu.vector_store %arg16[%c0_62, %c0_63], %92 {strides = array<i32>} : memref<8x128xf32, #tpu.memory_space<vmem>>, vector<8x128xf32>,
      %cst_64 = arith.constant 0.000000e+00 : f32
      %94 = vector.broadcast %cst_64 : f32 to vector<8x128xf32>
      %c0_65 = arith.constant 0 : index
      %c0_66 = arith.constant 0 : index
      %95 = vector.load %arg17[%c0_65, %c0_66] : memref<8x128xf32, #tpu.memory_space<vmem>>, vector<8x128xf32>
      tpu.vector_store %arg17[%c0_65, %c0_66], %94 {strides = array<i32>} : memref<8x128xf32, #tpu.memory_space<vmem>>, vector<8x128xf32>,
    } else {
    }
    %c0 = arith.constant 0 : index
    %c0_1 = arith.constant 0 : index
    %3 = vector.load %arg5[%c0, %c0_1] : memref<128x128xf32, #tpu.memory_space<vmem>>, vector<128x128xf32>
    %c0_2 = arith.constant 0 : index
    %c0_3 = arith.constant 0 : index
    %4 = vector.load %arg8[%c0_2, %c0_3] : memref<128x128xf32, #tpu.memory_space<vmem>>, vector<128x128xf32>
    %cst = arith.constant dense<0.000000e+00> : vector<128x128xf32>
    %5 = tpu.matmul %3, %4, %cst {dimension_numbers = #tpu.dot_dimension_numbers<[1], [0], [0], [1], [0, 0, 1, 1], [], []>} : vector<128x128xf32>, vector<128x128xf32>, vector<128x128xf32> -> vector<128x128xf32>
    %c0_4 = arith.constant 0 : index
    %c0_5 = arith.constant 0 : index
    %6 = vector.load %arg6[%c0_4, %c0_5] : memref<128x1xf32, #tpu.memory_space<vmem>>, vector<128x1xf32>
    %7 = vector.broadcast %6 : vector<128x1xf32> to vector<128x128xf32>
    %8 = arith.addf %5, %7 : vector<128x128xf32>
    %c0_6 = arith.constant 0 : index
    %c0_7 = arith.constant 0 : index
    %9 = vector.load %arg7[%c0_6, %c0_7] : memref<8x128xf32, #tpu.memory_space<vmem>>, vector<8x128xf32>
    %cst_8 = arith.constant dense<0.000000e+00> : vector<8x128xf32>
    %10 = tpu.matmul %9, %8, %cst_8 {dimension_numbers = #tpu.dot_dimension_numbers<[1], [0], [0], [1], [0, 0, 1, 1], [], []>} : vector<8x128xf32>, vector<128x128xf32>, vector<8x128xf32> -> vector<8x128xf32>
    %c0_9 = arith.constant 0 : index
    %c0_10 = arith.constant 0 : index
    %11 = vector.load %arg9[%c0_9, %c0_10] : memref<1x128xi32, #tpu.memory_space<vmem>>, vector<1x128xi32>
    %c0_11 = arith.constant 0 : index
    %c0_12 = arith.constant 0 : index
    %12 = vector.load %arg10[%c0_11, %c0_12] : memref<1x128xi32, #tpu.memory_space<vmem>>, vector<1x128xi32>
    %c0_13 = arith.constant 0 : index
    %c0_14 = arith.constant 0 : index
    %13 = vector.load %arg11[%c0_13, %c0_14] : memref<128x1xi32, #tpu.memory_space<vmem>>, vector<128x1xi32>
    %14 = tpu.iota {dimensions = array<i32: 0>} : vector<128x128xi32>
    %15 = tpu.iota {dimensions = array<i32: 1>} : vector<128x128xi32>
    %16 = vector.broadcast %11 : vector<1x128xi32> to vector<128x128xi32>
    %17 = arith.cmpi eq, %14, %16 : vector<128x128xi32>
    %18 = arith.extui %17 : vector<128x128xi1> to vector<128x128xi32>
    %19 = arith.sitofp %18 : vector<128x128xi32> to vector<128x128xf32>
    %20 = vector.broadcast %12 : vector<1x128xi32> to vector<128x128xi32>
    %21 = arith.cmpi eq, %14, %20 : vector<128x128xi32>
    %22 = arith.extui %21 : vector<128x128xi1> to vector<128x128xi32>
    %23 = arith.sitofp %22 : vector<128x128xi32> to vector<128x128xf32>
    %24 = vector.broadcast %13 : vector<128x1xi32> to vector<128x128xi32>
    %25 = arith.cmpi eq, %15, %24 : vector<128x128xi32>
    %26 = arith.extui %25 : vector<128x128xi1> to vector<128x128xi32>
    %27 = arith.sitofp %26 : vector<128x128xi32> to vector<128x128xf32>
    %c0_15 = arith.constant 0 : index
    %c0_16 = arith.constant 0 : index
    %28 = vector.load %arg13[%c0_15, %c0_16] : memref<8x128xf32, #tpu.memory_space<vmem>>, vector<8x128xf32>
    %cst_17 = arith.constant dense<0.000000e+00> : vector<8x128xf32>
    %29 = tpu.matmul %28, %19, %cst_17 {dimension_numbers = #tpu.dot_dimension_numbers<[1], [0], [0], [1], [0, 0, 1, 1], [], []>} : vector<8x128xf32>, vector<128x128xf32>, vector<8x128xf32> -> vector<8x128xf32>
    %c0_18 = arith.constant 0 : index
    %c0_19 = arith.constant 0 : index
    %30 = vector.load %arg14[%c0_18, %c0_19] : memref<8x128xf32, #tpu.memory_space<vmem>>, vector<8x128xf32>
    %cst_20 = arith.constant dense<0.000000e+00> : vector<8x128xf32>
    %31 = tpu.matmul %30, %23, %cst_20 {dimension_numbers = #tpu.dot_dimension_numbers<[1], [0], [0], [1], [0, 0, 1, 1], [], []>} : vector<8x128xf32>, vector<128x128xf32>, vector<8x128xf32> -> vector<8x128xf32>
    %32 = arith.addf %29, %10 : vector<8x128xf32>
    %33 = arith.addf %32, %31 : vector<8x128xf32>
    %cst_21 = arith.constant 0.000000e+00 : f32
    %34 = vector.broadcast %cst_21 : f32 to vector<8x128xf32>
    %35 = arith.cmpf ogt, %33, %34 : vector<8x128xf32>
    %cst_22 = arith.constant 2.000000e-01 : f32
    %36 = vector.broadcast %cst_22 : f32 to vector<8x128xf32>
    %37 = arith.mulf %36, %33 : vector<8x128xf32>
    %38 = arith.select %35, %33, %37 : vector<8x128xi1>, vector<8x128xf32>
    %cst_23 = arith.constant 0.000000e+00 : f32
    %39 = vector.broadcast %cst_23 : f32 to vector<128x128xf32>
    %40 = arith.cmpf ogt, %23, %39 : vector<128x128xf32>
    %cst_24 = arith.constant 0.000000e+00 : f32
    %cst_25 = arith.constant -1.000000e+30 : f32
    %41 = vector.broadcast %cst_24 : f32 to vector<128x128xf32>
    %42 = vector.broadcast %cst_25 : f32 to vector<128x128xf32>
    %43 = arith.select %40, %41, %42 : vector<128x128xi1>, vector<128x128xf32>
    %44 = vector.shape_cast %38 : vector<8x128xf32> to vector<8x1x128xf32>
    %45 = vector.shape_cast %43 : vector<128x128xf32> to vector<1x128x128xf32>
    %46 = vector.broadcast %44 : vector<8x1x128xf32> to vector<8x128x128xf32>
    %47 = vector.broadcast %45 : vector<1x128x128xf32> to vector<8x128x128xf32>
    %48 = arith.addf %46, %47 : vector<8x128x128xf32>
    %cst_26 = arith.constant dense<0xFF800000> : vector<8x128xf32>
    %49 = vector.multi_reduction <maximumf>, %48, %cst_26 [2] : vector<8x128x128xf32> to vector<8x128xf32>
    %c0_27 = arith.constant 0 : index
    %c0_28 = arith.constant 0 : index
    %50 = vector.load %arg15[%c0_27, %c0_28] : memref<8x128xf32, #tpu.memory_space<vmem>>, vector<8x128xf32>
    %51 = arith.maximumf %50, %49 : vector<8x128xf32>
    %52 = arith.subf %50, %51 : vector<8x128xf32>
    %53 = math.exp %52 : vector<8x128xf32>
    %cst_29 = arith.constant dense<0.000000e+00> : vector<8x128xf32>
    %54 = tpu.matmul %51, %23, %cst_29 {dimension_numbers = #tpu.dot_dimension_numbers<[1], [0], [0], [1], [0, 0, 1, 1], [], []>} : vector<8x128xf32>, vector<128x128xf32>, vector<8x128xf32> -> vector<8x128xf32>
    %55 = arith.subf %38, %54 : vector<8x128xf32>
    %56 = math.exp %55 : vector<8x128xf32>
    %c128_i32 = arith.constant 128 : i32
    %57 = vector.broadcast %c128_i32 : i32 to vector<1x128xi32>
    %58 = arith.cmpi slt, %12, %57 : vector<1x128xi32>
    %cst_30 = arith.constant 0.000000e+00 : f32
    %59 = vector.shape_cast %58 : vector<1x128xi1> to vector<1x128xi1>
    %60 = vector.broadcast %59 : vector<1x128xi1> to vector<8x128xi1>
    %61 = vector.broadcast %cst_30 : f32 to vector<8x128xf32>
    %62 = arith.select %60, %56, %61 : vector<8x128xi1>, vector<8x128xf32>
    %c0_31 = arith.constant 0 : index
    %c0_32 = arith.constant 0 : index
    %63 = vector.load %arg16[%c0_31, %c0_32] : memref<8x128xf32, #tpu.memory_space<vmem>>, vector<8x128xf32>
    %64 = arith.mulf %53, %63 : vector<8x128xf32>
    %cst_33 = arith.constant dense<0.000000e+00> : vector<8x128xf32>
    %65 = tpu.matmul %62, %27, %cst_33 {dimension_numbers = #tpu.dot_dimension_numbers<[1], [0], [0], [1], [0, 0, 1, 1], [], []>} : vector<8x128xf32>, vector<128x128xf32>, vector<8x128xf32> -> vector<8x128xf32>
    %66 = arith.addf %64, %65 : vector<8x128xf32>
    %c0_34 = arith.constant 0 : index
    %c0_35 = arith.constant 0 : index
    %67 = vector.load %arg16[%c0_34, %c0_35] : memref<8x128xf32, #tpu.memory_space<vmem>>, vector<8x128xf32>
    tpu.vector_store %arg16[%c0_34, %c0_35], %66 {strides = array<i32>} : memref<8x128xf32, #tpu.memory_space<vmem>>, vector<8x128xf32>,
    %c0_36 = arith.constant 0 : index
    %c0_37 = arith.constant 0 : index
    %68 = vector.load %arg17[%c0_36, %c0_37] : memref<8x128xf32, #tpu.memory_space<vmem>>, vector<8x128xf32>
    %69 = arith.mulf %53, %68 : vector<8x128xf32>
    %70 = arith.mulf %62, %32 : vector<8x128xf32>
    %cst_38 = arith.constant dense<0.000000e+00> : vector<8x128xf32>
    %71 = tpu.matmul %70, %27, %cst_38 {dimension_numbers = #tpu.dot_dimension_numbers<[1], [0], [0], [1], [0, 0, 1, 1], [], []>} : vector<8x128xf32>, vector<128x128xf32>, vector<8x128xf32> -> vector<8x128xf32>
    %72 = arith.addf %69, %71 : vector<8x128xf32>
    %c0_39 = arith.constant 0 : index
    %c0_40 = arith.constant 0 : index
    %73 = vector.load %arg17[%c0_39, %c0_40] : memref<8x128xf32, #tpu.memory_space<vmem>>, vector<8x128xf32>
    tpu.vector_store %arg17[%c0_39, %c0_40], %72 {strides = array<i32>} : memref<8x128xf32, #tpu.memory_space<vmem>>, vector<8x128xf32>,
    %c0_41 = arith.constant 0 : index
    %c0_42 = arith.constant 0 : index
    %74 = vector.load %arg15[%c0_41, %c0_42] : memref<8x128xf32, #tpu.memory_space<vmem>>, vector<8x128xf32>
    tpu.vector_store %arg15[%c0_41, %c0_42], %51 {strides = array<i32>} : memref<8x128xf32, #tpu.memory_space<vmem>>, vector<8x128xf32>,
    %c1_i32 = arith.constant 1 : i32
    %75 = arith.cmpi eq, %arg0, %c1_i32 : i32
    %76 = arith.extui %75 : i1 to i32
    %c0_i32_43 = arith.constant 0 : i32
    %77 = arith.cmpi ne, %76, %c0_i32_43 : i32
    scf.if %77 {
      %c0_44 = arith.constant 0 : index
      %c0_45 = arith.constant 0 : index
      %78 = vector.load %arg16[%c0_44, %c0_45] : memref<8x128xf32, #tpu.memory_space<vmem>>, vector<8x128xf32>
      %cst_46 = arith.constant 1.000000e-30 : f32
      %79 = vector.broadcast %cst_46 : f32 to vector<8x128xf32>
      %80 = arith.maximumf %78, %79 : vector<8x128xf32>
      %81 = tpu.reciprocal %80 : vector<8x128xf32> -> vector<8x128xf32>
      %cst_47 = arith.constant 0.000000e+00 : f32
      %82 = vector.broadcast %cst_47 : f32 to vector<8x128xf32>
      %83 = arith.cmpf ogt, %78, %82 : vector<8x128xf32>
      %c0_48 = arith.constant 0 : index
      %c0_49 = arith.constant 0 : index
      %84 = vector.load %arg17[%c0_48, %c0_49] : memref<8x128xf32, #tpu.memory_space<vmem>>, vector<8x128xf32>
      %85 = arith.mulf %84, %81 : vector<8x128xf32>
      %cst_50 = arith.constant 0.000000e+00 : f32
      %86 = vector.broadcast %cst_50 : f32 to vector<8x128xf32>
      %87 = arith.select %83, %85, %86 : vector<8x128xi1>, vector<8x128xf32>
      %c0_51 = arith.constant 0 : index
      %c0_52 = arith.constant 0 : index
      %88 = vector.load %arg12[%c0_51, %c0_52] : memref<8x128xf32, #tpu.memory_space<vmem>>, vector<8x128xf32>
      tpu.vector_store %arg12[%c0_51, %c0_52], %87 {strides = array<i32>} : memref<8x128xf32, #tpu.memory_space<vmem>>, vector<8x128xf32>,
    } else {
    }
    return
  }
  func.func @transform_0(%arg0: i32) -> (i32, i32) {
    %c0_i32 = arith.constant 0 : i32
    %c0_i32_0 = arith.constant 0 : i32
    %c0_i32_1 = arith.constant 0 : i32
    return %c0_i32, %c0_i32_0 : i32, i32
  }
  func.func @transform_1(%arg0: i32) -> (i32, i32) {
    %c0_i32 = arith.constant 0 : i32
    %c0_i32_0 = arith.constant 0 : i32
    %c0_i32_1 = arith.constant 0 : i32
    return %c0_i32, %c0_i32_0 : i32, i32
  }
  func.func @transform_2(%arg0: i32) -> (i32, i32) {
    %c0_i32 = arith.constant 0 : i32
    %c0_i32_0 = arith.constant 0 : i32
    %c0_i32_1 = arith.constant 0 : i32
    return %c0_i32, %c0_i32_0 : i32, i32
  }
  func.func @transform_3(%arg0: i32) -> (i32, i32) {
    %c0_i32 = arith.constant 0 : i32
    %c0_i32_0 = arith.constant 0 : i32
    %c0_i32_1 = arith.constant 0 : i32
    return %c0_i32, %c0_i32_0 : i32, i32
  }
  func.func @transform_4(%arg0: i32) -> (i32, i32) {
    %c0_i32 = arith.constant 0 : i32
    %c0_i32_0 = arith.constant 0 : i32
    %c0_i32_1 = arith.constant 0 : i32
    return %c0_i32, %c0_i32_0 : i32, i32
  }
  func.func @transform_5(%arg0: i32) -> (i32, i32) {
    %c0_i32 = arith.constant 0 : i32
    %c0_i32_0 = arith.constant 0 : i32
    %c0_i32_1 = arith.constant 0 : i32
    return %c0_i32, %c0_i32_0 : i32, i32
  }
  func.func @transform_6(%arg0: i32) -> (i32, i32) {
    %c0_i32 = arith.constant 0 : i32
    %c0_i32_0 = arith.constant 0 : i32
    %c0_i32_1 = arith.constant 0 : i32
    return %c0_i32, %c0_i32_0 : i32, i32
  }
  func.func @transform_7(%arg0: i32) -> (i32, i32) {
    %c0_i32 = arith.constant 0 : i32
    %c0_i32_0 = arith.constant 0 : i32
    return %c0_i32, %arg0 : i32, i32
  }
  func.func @transform_8(%arg0: i32) -> (i32, i32) {
    %c0_i32 = arith.constant 0 : i32
    %c0_i32_0 = arith.constant 0 : i32
    return %c0_i32, %arg0 : i32, i32
  }
  func.func @transform_9(%arg0: i32) -> (i32, i32) {
    %c0_i32 = arith.constant 0 : i32
    %c0_i32_0 = arith.constant 0 : i32
    return %c0_i32, %arg0 : i32, i32
  }
  func.func @transform_10(%arg0: i32) -> (i32, i32) {
    %c0_i32 = arith.constant 0 : i32
    %c0_i32_0 = arith.constant 0 : i32
    return %arg0, %c0_i32 : i32, i32
  }
  func.func @transform_11(%arg0: i32) -> (i32, i32) {
    %c0_i32 = arith.constant 0 : i32
    %c0_i32_0 = arith.constant 0 : i32
    %c0_i32_1 = arith.constant 0 : i32
    return %c0_i32, %c0_i32_0 : i32, i32
  }
}

</mosaic_0001>

<llo_original>
// kernel: tpu_custom_call.1
$region0: #{tpu_custom_call.1}
  #allocation0 [shape = 'u32[]', space=smem, size = 0x4, offset = 0x4, fixed_abs, tag = 'smem constant byte address 0x4 - core index']
  #allocation1 [shape = 'u32[144,128]{1,0:T(1,128)}', space=vmem, size = 0x12000, scoped, tag = 'internal scratch']
  #allocation2 [shape = 'f32[8,128]{1,0:T(8,128)}', space=vmem, size = 0x1000, scoped, tag = 'scratch operand']
  #allocation3 [shape = 'f32[8,128]{1,0:T(8,128)}', space=vmem, size = 0x1000, scoped, tag = 'scratch operand']
  #allocation4 [shape = 'f32[8,128]{1,0:T(8,128)}', space=vmem, size = 0x1000, scoped, tag = 'scratch operand']
  #allocation5 [shape = 'f32[8,128]{1,0:T(8,128)}', space=vmem, size = 0x1000, scoped, tag = 'scratch operand']
  #allocation6 [shape = 'f32[8,128]{1,0:T(8,128)}', space=vmem, size = 0x1000, scoped, tag = 'scratch operand']
  %s0 = inlined_call_operand.vmem [shape: f32[128,128], index: 0, kind: input, shape index: {}]
  %s1 = inlined_call_operand.vmem [shape: f32[128,128], index: 1, kind: input, shape index: {}]
  %s2 = inlined_call_operand.vmem [shape: f32[128,1], index: 2, kind: input, shape index: {}]
  %s3 = inlined_call_operand.hbm [shape: f32[16,128], index: 3, kind: input, shape index: {}]
  %s4 = inlined_call_operand.hbm [shape: f32[128,128], index: 4, kind: input, shape index: {}]
  %s5 = inlined_call_operand.vmem [shape: f32[128,1], index: 5, kind: input, shape index: {}]
  %s6 = inlined_call_operand.vmem [shape: f32[8,128], index: 6, kind: input, shape index: {}]
  %s7 = inlined_call_operand.vmem [shape: f32[128,256], index: 7, kind: input, shape index: {}]
  %s8 = inlined_call_operand.vmem [shape: s32[1,256], index: 8, kind: input, shape index: {}]
  %s9 = inlined_call_operand.vmem [shape: s32[1,256], index: 9, kind: input, shape index: {}]
  %s10 = inlined_call_operand.vmem [shape: s32[256,1], index: 10, kind: input, shape index: {}]
  %s11 = inlined_call_operand.hbm [shape: f32[8,128], index: 11, kind: output, shape index: {}]
  %s12 = sld [smem:[#allocation0]]
  $region131: #{tpu_custom_call.1} parent=0
    _
  %s14 = ssub.s32 1, %s12
  %s15 = scalar_select 0, %s14, %s12
  $region1: #{tpu_custom_call.1} parent=0
    #allocation7 [shape = 'u8[8192]{0}', space=vmem, size = 0x2000, scoped, tag = 'input window, operand 3, single buffered']
    #allocation8 [shape = 's32[2]{0}', space=sflag, size = 0x8, scoped, tag = 'scoped memory for tpu_custom_call.1']
    #allocation9 [shape = 's32[2]{0}', space=sflag, size = 0x8, scoped, tag = 'scoped memory for tpu_custom_call.1']
    #allocation10 [shape = 'u8[65536]{0}', space=vmem, size = 0x10000, scoped, tag = 'input window, operand 4, single buffered']
    #allocation11 [shape = 's32[1]{0}', space=sflag, size = 0x4, scoped, tag = 'scoped memory for tpu_custom_call.1']
    #allocation12 [shape = 'u8[131072]{0}', space=vmem, size = 0x20000, scoped, tag = 'input window, operand 7']
    #allocation13 [shape = 'u8[4096]{0}', space=vmem, size = 0x1000, scoped, tag = 'output window, operand 0, single buffered']
    %16 = vsyncpa [#allocation8], 0
    %17 = vsyncpa [#allocation11], 0
    %18 = vsyncpa [#allocation9], 0
    loop: start=0, step=1, limit=4
    $region2: #{tpu_custom_call.1} parent=1 // loop_pre_header
      _
    $region3: #{tpu_custom_call.1} parent=1 // loop_header
      %s20 = sphi 0, %s24
      %p21 = scmp.ge.s32.totalorder %s20, 4
      %s28 = sphi 0, %s28
      %s30 = sphi 0, %s28
      %s31 = sphi 0, %s30
      %s45 = sphi 0, %s31
      %s49 = sphi 0, %s49
      %s51 = sphi 0, %s49
      %s52 = sphi 0, %s51
      %s66 = sphi 0, %s52
      %s70 = sphi 0, %s70
      %s72 = sphi 0, %s70
      %s73 = sphi 0, %s72
      %s87 = sphi 0, %s73
      %s91 = sphi 0, %s91
      %s93 = sphi 0, %s91
      %s94 = sphi 0, %s93
      %s108 = sphi 0, %s94
      %s112 = sphi 0, %s112
      %s114 = sphi 0, %s112
      %s115 = sphi 0, %s114
      %s129 = sphi 0, %s115
      %s133 = sphi 0, %s133
      %s135 = sphi 0, %s133
      %s136 = sphi 0, %s135
      %s150 = sphi 0, %s136
      %s154 = sphi 0, %s154
      %s156 = sphi 0, %s154
      %s157 = sphi 0, %s156
      %s171 = sphi 0, %s157
      %s177 = sphi 0, %s179
      %s180 = sphi 0, %s177
      %s181 = sphi 0, %s180
      %s197 = sphi 0, %s181
      %s203 = sphi 0, %s205
      %s206 = sphi 0, %s203
      %s207 = sphi 0, %s206
      %s223 = sphi 0, %s207
      %s229 = sphi 0, %s231
      %s232 = sphi 0, %s229
      %s233 = sphi 0, %s232
      %s249 = sphi 0, %s233
      %s255 = sphi 0, %s257
      %s258 = sphi 0, %s255
      %s259 = sphi 0, %s258
      %s275 = sphi 0, %s259
      %s279 = sphi 0, %s279
      %s281 = sphi 0, %s279
      %s282 = sphi 0, %s281
      %s296 = sphi 0, %s282
    $region4: #{tpu_custom_call.1} parent=1 // loop_header_branch
      %23 = sbr.rel (%p21) target = $region8
    $region5: #{tpu_custom_call.1} parent=1 // loop_body
      %s25 = ssub.s32 %s20, 1
      %s26 = ssub.s32 %s20, 2
      %s27 = sadd.s32 %s20, 1
      %s29 = sadd.s32 %s28, 1
      %p32 = scmp.eq.s32.totalorder %s20, 1
      %p33 = scmp.ne.s32.totalorder %s28, %s30
      %p34 = scmp.eq.s32.totalorder %s20, 0
      %p35 = por %p33, %p34
      %p36 = scmp.ne.s32.totalorder %s28, %s30
      %p37 = scmp.eq.s32.totalorder %s25, 1
      %p38 = por %p36, %p37
      %p39 = scmp.ne.s32.totalorder %s30, %s31
      %p40 = scmp.eq.s32.totalorder %s25, 0
      %p41 = por %p39, %p40
      %p42 = scmp.ne.s32.totalorder %s30, %s31
      %p43 = scmp.eq.s32.totalorder %s26, 1
      %p44 = por %p42, %p43
      %p46 = scmp.ne.s32.totalorder %s31, %s45
      %p47 = scmp.eq.s32.totalorder %s26, 0
      %p48 = por %p46, %p47
      %s50 = sadd.s32 %s49, 1
      %p53 = scmp.eq.s32.totalorder %s20, 1
      %p54 = scmp.ne.s32.totalorder %s49, %s51
      %p55 = scmp.eq.s32.totalorder %s20, 0
      %p56 = por %p54, %p55
      %p57 = scmp.ne.s32.totalorder %s49, %s51
      %p58 = scmp.eq.s32.totalorder %s25, 1
      %p59 = por %p57, %p58
      %p60 = scmp.ne.s32.totalorder %s51, %s52
      %p61 = scmp.eq.s32.totalorder %s25, 0
      %p62 = por %p60, %p61
      %p63 = scmp.ne.s32.totalorder %s51, %s52
      %p64 = scmp.eq.s32.totalorder %s26, 1
      %p65 = por %p63, %p64
      %p67 = scmp.ne.s32.totalorder %s52, %s66
      %p68 = scmp.eq.s32.totalorder %s26, 0
      %p69 = por %p67, %p68
      %s71 = sadd.s32 %s70, 1
      %p74 = scmp.eq.s32.totalorder %s20, 1
      %p75 = scmp.ne.s32.totalorder %s70, %s72
      %p76 = scmp.eq.s32.totalorder %s20, 0
      %p77 = por %p75, %p76
      %p78 = scmp.ne.s32.totalorder %s70, %s72
      %p79 = scmp.eq.s32.totalorder %s25, 1
      %p80 = por %p78, %p79
      %p81 = scmp.ne.s32.totalorder %s72, %s73
      %p82 = scmp.eq.s32.totalorder %s25, 0
      %p83 = por %p81, %p82
      %p84 = scmp.ne.s32.totalorder %s72, %s73
      %p85 = scmp.eq.s32.totalorder %s26, 1
      %p86 = por %p84, %p85
      %p88 = scmp.ne.s32.totalorder %s73, %s87
      %p89 = scmp.eq.s32.totalorder %s26, 0
      %p90 = por %p88, %p89
      %s92 = sadd.s32 %s91, 1
      %p95 = scmp.eq.s32.totalorder %s20, 1
      %p96 = scmp.ne.s32.totalorder %s91, %s93
      %p97 = scmp.eq.s32.totalorder %s20, 0
      %p98 = por %p96, %p97
      %p99 = scmp.ne.s32.totalorder %s91, %s93
      %p100 = scmp.eq.s32.totalorder %s25, 1
      %p101 = por %p99, %p100
      %p102 = scmp.ne.s32.totalorder %s93, %s94
      %p103 = scmp.eq.s32.totalorder %s25, 0
      %p104 = por %p102, %p103
      %p105 = scmp.ne.s32.totalorder %s93, %s94
      %p106 = scmp.eq.s32.totalorder %s26, 1
      %p107 = por %p105, %p106
      %p109 = scmp.ne.s32.totalorder %s94, %s108
      %p110 = scmp.eq.s32.totalorder %s26, 0
      %p111 = por %p109, %p110
      %s113 = sadd.s32 %s112, 1
      %p116 = scmp.eq.s32.totalorder %s20, 1
      %p117 = scmp.ne.s32.totalorder %s112, %s114
      %p118 = scmp.eq.s32.totalorder %s20, 0
      %p119 = por %p117, %p118
      %p120 = scmp.ne.s32.totalorder %s112, %s114
      %p121 = scmp.eq.s32.totalorder %s25, 1
      %p122 = por %p120, %p121
      %p123 = scmp.ne.s32.totalorder %s114, %s115
      %p124 = scmp.eq.s32.totalorder %s25, 0
      %p125 = por %p123, %p124
      %p126 = scmp.ne.s32.totalorder %s114, %s115
      %p127 = scmp.eq.s32.totalorder %s26, 1
      %p128 = por %p126, %p127
      %p130 = scmp.ne.s32.totalorder %s115, %s129
      %p131 = scmp.eq.s32.totalorder %s26, 0
      %p132 = por %p130, %p131
      %s134 = sadd.s32 %s133, 1
      %p137 = scmp.eq.s32.totalorder %s20, 1
      %p138 = scmp.ne.s32.totalorder %s133, %s135
      %p139 = scmp.eq.s32.totalorder %s20, 0
      %p140 = por %p138, %p139
      %p141 = scmp.ne.s32.totalorder %s133, %s135
      %p142 = scmp.eq.s32.totalorder %s25, 1
      %p143 = por %p141, %p142
      %p144 = scmp.ne.s32.totalorder %s135, %s136
      %p145 = scmp.eq.s32.totalorder %s25, 0
      %p146 = por %p144, %p145
      %p147 = scmp.ne.s32.totalorder %s135, %s136
      %p148 = scmp.eq.s32.totalorder %s26, 1
      %p149 = por %p147, %p148
      %p151 = scmp.ne.s32.totalorder %s136, %s150
      %p152 = scmp.eq.s32.totalorder %s26, 0
      %p153 = por %p151, %p152
      %s155 = sadd.s32 %s154, 1
      %p158 = scmp.eq.s32.totalorder %s20, 1
      %p159 = scmp.ne.s32.totalorder %s154, %s156
      %p160 = scmp.eq.s32.totalorder %s20, 0
      %p161 = por %p159, %p160
      %p162 = scmp.ne.s32.totalorder %s154, %s156
      %p163 = scmp.eq.s32.totalorder %s25, 1
      %p164 = por %p162, %p163
      %p165 = scmp.ne.s32.totalorder %s156, %s157
      %p166 = scmp.eq.s32.totalorder %s25, 0
      %p167 = por %p165, %p166
      %p168 = scmp.ne.s32.totalorder %s156, %s157
      %p169 = scmp.eq.s32.totalorder %s26, 1
      %p170 = por %p168, %p169
      %p172 = scmp.ne.s32.totalorder %s157, %s171
      %p173 = scmp.eq.s32.totalorder %s26, 0
      %p174 = por %p172, %p173
      %s175 = ssub.s32 %s20, %s27
      %p176 = scmp.eq.s32.totalorder %s175, 0
      %s178 = sadd.s32 %s177, 1
      %s179 = scalar_select %p176, %s177, %s178
      %p182 = pneg %p176
      %p183 = scmp.eq.s32.totalorder %s20, 1
      %p184 = por %p182, %p183
      %p185 = scmp.ne.s32.totalorder %s177, %s180
      %p186 = scmp.eq.s32.totalorder %s20, 0
      %p187 = por %p185, %p186
      %p188 = scmp.ne.s32.totalorder %s177, %s180
      %p189 = scmp.eq.s32.totalorder %s25, 1
      %p190 = por %p188, %p189
      %p191 = scmp.ne.s32.totalorder %s180, %s181
      %p192 = scmp.eq.s32.totalorder %s25, 0
      %p193 = por %p191, %p192
      %p194 = scmp.ne.s32.totalorder %s180, %s181
      %p195 = scmp.eq.s32.totalorder %s26, 1
      %p196 = por %p194, %p195
      %p198 = scmp.ne.s32.totalorder %s181, %s197
      %p199 = scmp.eq.s32.totalorder %s26, 0
      %p200 = por %p198, %p199
      %s201 = ssub.s32 %s20, %s27
      %p202 = scmp.eq.s32.totalorder %s201, 0
      %s204 = sadd.s32 %s203, 1
      %s205 = scalar_select %p202, %s203, %s204
      %p208 = pneg %p202
      %p209 = scmp.eq.s32.totalorder %s20, 1
      %p210 = por %p208, %p209
      %p211 = scmp.ne.s32.totalorder %s203, %s206
      %p212 = scmp.eq.s32.totalorder %s20, 0
      %p213 = por %p211, %p212
      %p214 = scmp.ne.s32.totalorder %s203, %s206
      %p215 = scmp.eq.s32.totalorder %s25, 1
      %p216 = por %p214, %p215
      %p217 = scmp.ne.s32.totalorder %s206, %s207
      %p218 = scmp.eq.s32.totalorder %s25, 0
      %p219 = por %p217, %p218
      %p220 = scmp.ne.s32.totalorder %s206, %s207
      %p221 = scmp.eq.s32.totalorder %s26, 1
      %p222 = por %p220, %p221
      %p224 = scmp.ne.s32.totalorder %s207, %s223
      %p225 = scmp.eq.s32.totalorder %s26, 0
      %p226 = por %p224, %p225
      %s227 = ssub.s32 %s20, %s27
      %p228 = scmp.eq.s32.totalorder %s227, 0
      %s230 = sadd.s32 %s229, 1
      %s231 = scalar_select %p228, %s229, %s230
      %p234 = pneg %p228
      %p235 = scmp.eq.s32.totalorder %s20, 1
      %p236 = por %p234, %p235
      %p237 = scmp.ne.s32.totalorder %s229, %s232
      %p238 = scmp.eq.s32.totalorder %s20, 0
      %p239 = por %p237, %p238
      %p240 = scmp.ne.s32.totalorder %s229, %s232
      %p241 = scmp.eq.s32.totalorder %s25, 1
      %p242 = por %p240, %p241
      %p243 = scmp.ne.s32.totalorder %s232, %s233
      %p244 = scmp.eq.s32.totalorder %s25, 0
      %p245 = por %p243, %p244
      %p246 = scmp.ne.s32.totalorder %s232, %s233
      %p247 = scmp.eq.s32.totalorder %s26, 1
      %p248 = por %p246, %p247
      %p250 = scmp.ne.s32.totalorder %s233, %s249
      %p251 = scmp.eq.s32.totalorder %s26, 0
      %p252 = por %p250, %p251
      %s253 = ssub.s32 %s20, %s27
      %p254 = scmp.eq.s32.totalorder %s253, 0
      %s256 = sadd.s32 %s255, 1
      %s257 = scalar_select %p254, %s255, %s256
      %p260 = pneg %p254
      %p261 = scmp.eq.s32.totalorder %s20, 1
      %p262 = por %p260, %p261
      %p263 = scmp.ne.s32.totalorder %s255, %s258
      %p264 = scmp.eq.s32.totalorder %s20, 0
      %p265 = por %p263, %p264
      %p266 = scmp.ne.s32.totalorder %s255, %s258
      %p267 = scmp.eq.s32.totalorder %s25, 1
      %p268 = por %p266, %p267
      %p269 = scmp.ne.s32.totalorder %s258, %s259
      %p270 = scmp.eq.s32.totalorder %s25, 0
      %p271 = por %p269, %p270
      %p272 = scmp.ne.s32.totalorder %s258, %s259
      %p273 = scmp.eq.s32.totalorder %s26, 1
      %p274 = por %p272, %p273
      %p276 = scmp.ne.s32.totalorder %s259, %s275
      %p277 = scmp.eq.s32.totalorder %s26, 0
      %p278 = por %p276, %p277
      %s280 = sadd.s32 %s279, 1
      %p283 = scmp.eq.s32.totalorder %s20, 1
      %p284 = scmp.ne.s32.totalorder %s279, %s281
      %p285 = scmp.eq.s32.totalorder %s20, 0
      %p286 = por %p284, %p285
      %p287 = scmp.ne.s32.totalorder %s279, %s281
      %p288 = scmp.eq.s32.totalorder %s25, 1
      %p289 = por %p287, %p288
      %p290 = scmp.ne.s32.totalorder %s281, %s282
      %p291 = scmp.eq.s32.totalorder %s25, 0
      %p292 = por %p290, %p291
      %p293 = scmp.ne.s32.totalorder %s281, %s282
      %p294 = scmp.eq.s32.totalorder %s26, 1
      %p295 = por %p293, %p294
      %p297 = scmp.ne.s32.totalorder %s282, %s296
      %p298 = scmp.eq.s32.totalorder %s26, 0
      %p299 = por %p297, %p298
      %p300 = scmp.le.s32.totalorder 1, %s20
      %p301 = scmp.lt.s32.totalorder %s20, 3
      %p302 = pnand %p300, %p301
      %p303 = pneg %p302
      // Predicated region
      $region9: #{tpu_custom_call.1} parent=5 // pred_check
        _
      $region10: #{tpu_custom_call.1} parent=5 // pred_check_branch
        %305 = sbr.rel (%p302) target = $region12
      $region11: #{tpu_custom_call.1} parent=5 // pred_region
        %s306 = ssub.s32 %s20, 1
        // Predicated region
        $region13: #{tpu_custom_call.1} parent=11 // pred_check
          %p307 = pneg %p41
        $region14: #{tpu_custom_call.1} parent=11 // pred_check_branch
          %309 = sbr.rel (%p307) target = $region16
        $region15: #{tpu_custom_call.1} parent=11 // pred_region
          _
        $region16: #{tpu_custom_call.1} parent=11 // pred_fallthru
          _
        // Predicated region
        $region17: #{tpu_custom_call.1} parent=11 // pred_check
          %p310 = pneg %p62
        $region18: #{tpu_custom_call.1} parent=11 // pred_check_branch
          %312 = sbr.rel (%p310) target = $region20
        $region19: #{tpu_custom_call.1} parent=11 // pred_region
          _
        $region20: #{tpu_custom_call.1} parent=11 // pred_fallthru
          _
        // Predicated region
        $region21: #{tpu_custom_call.1} parent=11 // pred_check
          %p313 = pneg %p83
        $region22: #{tpu_custom_call.1} parent=11 // pred_check_branch
          %315 = sbr.rel (%p313) target = $region24
        $region23: #{tpu_custom_call.1} parent=11 // pred_region
          _
        $region24: #{tpu_custom_call.1} parent=11 // pred_fallthru
          _
        // Predicated region
        $region25: #{tpu_custom_call.1} parent=11 // pred_check
          %p316 = pneg %p104
        $region26: #{tpu_custom_call.1} parent=11 // pred_check_branch
          %318 = sbr.rel (%p316) target = $region28
        $region27: #{tpu_custom_call.1} parent=11 // pred_region
          %s320 = ssub.s32 256, 256
          %321 = vsyncadd [#allocation8], %s320
          %s322 = sshll.u32 [#allocation7], 4
          %s323 = int_to_ptr.vmem [resolvable:$true] %s322
          %328 = dma.hbm_to_vmem [thread:$0]  %s3, 256, %s323, [#allocation8], 128, 128, 8
        $region28: #{tpu_custom_call.1} parent=11 // pred_fallthru
          _
        // Predicated region
        $region29: #{tpu_custom_call.1} parent=11 // pred_check
          %p329 = pneg %p125
        $region30: #{tpu_custom_call.1} parent=11 // pred_check_branch
          %331 = sbr.rel (%p329) target = $region32
        $region31: #{tpu_custom_call.1} parent=11 // pred_region
          %s333 = ssub.s32 2048, 2048
          %334 = vsyncadd [#allocation11], %s333
          %s335 = sshll.u32 [#allocation10], 4
          %s336 = int_to_ptr.vmem [resolvable:$true] %s335
          %341 = dma.hbm_to_vmem [thread:$0]  %s4, 2048, %s336, [#allocation11], 128, 128, 8
        $region32: #{tpu_custom_call.1} parent=11 // pred_fallthru
          _
        // Predicated region
        $region33: #{tpu_custom_call.1} parent=11 // pred_check
          %p342 = pneg %p146
        $region34: #{tpu_custom_call.1} parent=11 // pred_check_branch
          %344 = sbr.rel (%p342) target = $region36
        $region35: #{tpu_custom_call.1} parent=11 // pred_region
          _
        $region36: #{tpu_custom_call.1} parent=11 // pred_fallthru
          _
        // Predicated region
        $region37: #{tpu_custom_call.1} parent=11 // pred_check
          %p345 = pneg %p167
        $region38: #{tpu_custom_call.1} parent=11 // pred_check_branch
          %347 = sbr.rel (%p345) target = $region40
        $region39: #{tpu_custom_call.1} parent=11 // pred_region
          _
        $region40: #{tpu_custom_call.1} parent=11 // pred_fallthru
          _
      $region12: #{tpu_custom_call.1} parent=5 // pred_fallthru
        _
      %p348 = scmp.lt.s32.totalorder %s20, 2
      // Predicated region
      $region41: #{tpu_custom_call.1} parent=5 // pred_check
        %p349 = pneg %p348
      $region42: #{tpu_custom_call.1} parent=5 // pred_check_branch
        %351 = sbr.rel (%p349) target = $region44
      $region43: #{tpu_custom_call.1} parent=5 // pred_region
        // Predicated region
        $region45: #{tpu_custom_call.1} parent=43 // pred_check
          %p352 = pneg %p187
        $region46: #{tpu_custom_call.1} parent=43 // pred_check_branch
          %354 = sbr.rel (%p352) target = $region48
        $region47: #{tpu_custom_call.1} parent=43 // pred_region
          %s355 = sand.u32 %s177, 1
          %s356 = sand.u32 %s177, 1
          %s357 = smul.addr %s356, 128
          %s358 = scalar_lea.vmem [#allocation12], %s357
          %s359 = smul.addr %s20, 8
          %s360 = scalar_lea.vmem %s7, %s359
          // Predicated region
          $region49: #{tpu_custom_call.1} parent=47 // pred_check
            _
          $region50: #{tpu_custom_call.1} parent=47 // pred_check_branch
            %362 = sbr.rel (0) target = $region52
          $region51: #{tpu_custom_call.1} parent=47 // pred_region
            // Predicated region
            $region53: #{tpu_custom_call.1} parent=51 // pred_check
              _
            $region54: #{tpu_custom_call.1} parent=51 // pred_check_branch
              %364 = sbr.rel (0) target = $region56
            $region55: #{tpu_custom_call.1} parent=51 // pred_region
              // Predicated region
              $region68: #{tpu_custom_call.1} parent=55 // pred_check
                _
              $region69: #{tpu_custom_call.1} parent=55 // pred_check_branch
                %409 = sbr.rel (0) target = $region71
              $region70: #{tpu_custom_call.1} parent=55 // pred_region
                loop: start=0, step=1, limit=1
                $region72: #{tpu_custom_call.1} parent=70 // loop_pre_header
                  _
                $region73: #{tpu_custom_call.1} parent=70 // loop_header
                  %s411 = sphi 0, %s415
                  %p412 = scmp.ge.s32.totalorder %s411, 1
                  %s416 = sphi %s360, %s360
                  %s417 = sphi %s358, %s358
                $region74: #{tpu_custom_call.1} parent=70 // loop_header_branch
                  %414 = sbr.rel (%p412) target = $region78
                $region75: #{tpu_custom_call.1} parent=70 // loop_body
                  %v418 = vld [vmem:[%s416] sm:$0xff]
                  %419 = vst [vmem:[%s417] sm:$0xff] %v418
                  %v420 = vld [vmem:[%s416 + $0x10] sm:$0xff]
                  %421 = vst [vmem:[%s417 + $0x8] sm:$0xff] %v420
                  %v422 = vld [vmem:[%s416 + $0x20] sm:$0xff]
                  %423 = vst [vmem:[%s417 + $0x10] sm:$0xff] %v422
                  %v424 = vld [vmem:[%s416 + $0x30] sm:$0xff]
                  %425 = vst [vmem:[%s417 + $0x18] sm:$0xff] %v424
                  %v426 = vld [vmem:[%s416 + $0x40] sm:$0xff]
                  %427 = vst [vmem:[%s417 + $0x20] sm:$0xff] %v426
                  %v428 = vld [vmem:[%s416 + $0x50] sm:$0xff]
                  %429 = vst [vmem:[%s417 + $0x28] sm:$0xff] %v428
                  %v430 = vld [vmem:[%s416 + $0x60] sm:$0xff]
                  %431 = vst [vmem:[%s417 + $0x30] sm:$0xff] %v430
                  %v432 = vld [vmem:[%s416 + $0x70] sm:$0xff]
                  %433 = vst [vmem:[%s417 + $0x38] sm:$0xff] %v432
                  %v434 = vld [vmem:[%s416 + $0x80] sm:$0xff]
                  %435 = vst [vmem:[%s417 + $0x40] sm:$0xff] %v434
                  %v436 = vld [vmem:[%s416 + $0x90] sm:$0xff]
                  %437 = vst [vmem:[%s417 + $0x48] sm:$0xff] %v436
                  %v438 = vld [vmem:[%s416 + $0xa0] sm:$0xff]
                  %439 = vst [vmem:[%s417 + $0x50] sm:$0xff] %v438
                  %v440 = vld [vmem:[%s416 + $0xb0] sm:$0xff]
                  %441 = vst [vmem:[%s417 + $0x58] sm:$0xff] %v440
                  %v442 = vld [vmem:[%s416 + $0xc0] sm:$0xff]
                  %443 = vst [vmem:[%s417 + $0x60] sm:$0xff] %v442
                  %v444 = vld [vmem:[%s416 + $0xd0] sm:$0xff]
                  %445 = vst [vmem:[%s417 + $0x68] sm:$0xff] %v444
                  %v446 = vld [vmem:[%s416 + $0xe0] sm:$0xff]
                  %447 = vst [vmem:[%s417 + $0x70] sm:$0xff] %v446
                  %v448 = vld [vmem:[%s416 + $0xf0] sm:$0xff]
                  %449 = vst [vmem:[%s417 + $0x78] sm:$0xff] %v448
                $region76: #{tpu_custom_call.1} parent=70 // loop_footer
                  %s415 = sadd.s32 1, %s411
                $region77: #{tpu_custom_call.1} parent=70 // loop_footer_branch
                  %410 = sbr.rel target = $region73
                $region78: #{tpu_custom_call.1} parent=70 // loop_exit
                  _
              $region71: #{tpu_custom_call.1} parent=55 // pred_fallthru
                _
              // Predicated region
              $region79: #{tpu_custom_call.1} parent=55 // pred_check
                _
              $region80: #{tpu_custom_call.1} parent=55 // pred_check_branch
                %451 = sbr.rel target = $region82
              $region81: #{tpu_custom_call.1} parent=55 // pred_region
                _
              $region82: #{tpu_custom_call.1} parent=55 // pred_fallthru
                _
            $region56: #{tpu_custom_call.1} parent=51 // pred_fallthru
              _
            // Predicated region
            $region57: #{tpu_custom_call.1} parent=51 // pred_check
              _
            $region58: #{tpu_custom_call.1} parent=51 // pred_check_branch
              %366 = sbr.rel target = $region60
            $region59: #{tpu_custom_call.1} parent=51 // pred_region
              loop: start=0, step=1, limit=1
              $region61: #{tpu_custom_call.1} parent=59 // loop_pre_header
                _
              $region62: #{tpu_custom_call.1} parent=59 // loop_header
                %s369 = sphi 0, %s373
                %p370 = scmp.ge.s32.totalorder %s369, 1
                %s374 = sphi %s360, %s360
                %s375 = sphi %s358, %s358
              $region63: #{tpu_custom_call.1} parent=59 // loop_header_branch
                %372 = sbr.rel (%p370) target = $region67
              $region64: #{tpu_custom_call.1} parent=59 // loop_body
                %v376 = vld [vmem:[%s374] sm:$0xff]
                %377 = vst [vmem:[%s375] sm:$0xff] %v376
                %v378 = vld [vmem:[%s374 + $0x10] sm:$0xff]
                %379 = vst [vmem:[%s375 + $0x8] sm:$0xff] %v378
                %v380 = vld [vmem:[%s374 + $0x20] sm:$0xff]
                %381 = vst [vmem:[%s375 + $0x10] sm:$0xff] %v380
                %v382 = vld [vmem:[%s374 + $0x30] sm:$0xff]
                %383 = vst [vmem:[%s375 + $0x18] sm:$0xff] %v382
                %v384 = vld [vmem:[%s374 + $0x40] sm:$0xff]
                %385 = vst [vmem:[%s375 + $0x20] sm:$0xff] %v384
                %v386 = vld [vmem:[%s374 + $0x50] sm:$0xff]
                %387 = vst [vmem:[%s375 + $0x28] sm:$0xff] %v386
                %v388 = vld [vmem:[%s374 + $0x60] sm:$0xff]
                %389 = vst [vmem:[%s375 + $0x30] sm:$0xff] %v388
                %v390 = vld [vmem:[%s374 + $0x70] sm:$0xff]
                %391 = vst [vmem:[%s375 + $0x38] sm:$0xff] %v390
                %v392 = vld [vmem:[%s374 + $0x80] sm:$0xff]
                %393 = vst [vmem:[%s375 + $0x40] sm:$0xff] %v392
                %v394 = vld [vmem:[%s374 + $0x90] sm:$0xff]
                %395 = vst [vmem:[%s375 + $0x48] sm:$0xff] %v394
                %v396 = vld [vmem:[%s374 + $0xa0] sm:$0xff]
                %397 = vst [vmem:[%s375 + $0x50] sm:$0xff] %v396
                %v398 = vld [vmem:[%s374 + $0xb0] sm:$0xff]
                %399 = vst [vmem:[%s375 + $0x58] sm:$0xff] %v398
                %v400 = vld [vmem:[%s374 + $0xc0] sm:$0xff]
                %401 = vst [vmem:[%s375 + $0x60] sm:$0xff] %v400
                %v402 = vld [vmem:[%s374 + $0xd0] sm:$0xff]
                %403 = vst [vmem:[%s375 + $0x68] sm:$0xff] %v402
                %v404 = vld [vmem:[%s374 + $0xe0] sm:$0xff]
                %405 = vst [vmem:[%s375 + $0x70] sm:$0xff] %v404
                %v406 = vld [vmem:[%s374 + $0xf0] sm:$0xff]
                %407 = vst [vmem:[%s375 + $0x78] sm:$0xff] %v406
              $region65: #{tpu_custom_call.1} parent=59 // loop_footer
                %s373 = sadd.s32 1, %s369
              $region66: #{tpu_custom_call.1} parent=59 // loop_footer_branch
                %368 = sbr.rel target = $region62
              $region67: #{tpu_custom_call.1} parent=59 // loop_exit
                _
            $region60: #{tpu_custom_call.1} parent=51 // pred_fallthru
              _
          $region52: #{tpu_custom_call.1} parent=47 // pred_fallthru
            _
          %452 = vnop
        $region48: #{tpu_custom_call.1} parent=43 // pred_fallthru
          _
        // Predicated region
        $region83: #{tpu_custom_call.1} parent=43 // pred_check
          %p453 = pneg %p213
        $region84: #{tpu_custom_call.1} parent=43 // pred_check_branch
          %455 = sbr.rel (%p453) target = $region86
        $region85: #{tpu_custom_call.1} parent=43 // pred_region
          %p456 = scmp.lt.s32.totalorder %s20, 1
          %s457 = scalar_select %p456, %s20, 1
          %s458 = scalar_lea.vmem %s8, %s457
        $region86: #{tpu_custom_call.1} parent=43 // pred_fallthru
          _
        // Predicated region
        $region87: #{tpu_custom_call.1} parent=43 // pred_check
          %p459 = pneg %p239
        $region88: #{tpu_custom_call.1} parent=43 // pred_check_branch
          %461 = sbr.rel (%p459) target = $region90
        $region89: #{tpu_custom_call.1} parent=43 // pred_region
          %p462 = scmp.lt.s32.totalorder %s20, 1
          %s463 = scalar_select %p462, %s20, 1
          %s464 = scalar_lea.vmem %s9, %s463
        $region90: #{tpu_custom_call.1} parent=43 // pred_fallthru
          _
        // Predicated region
        $region91: #{tpu_custom_call.1} parent=43 // pred_check
          %p465 = pneg %p265
        $region92: #{tpu_custom_call.1} parent=43 // pred_check_branch
          %467 = sbr.rel (%p465) target = $region94
        $region93: #{tpu_custom_call.1} parent=43 // pred_region
          %s468 = smul.u32 16, %s20
          %p469 = scmp.lt.s32.totalorder %s468, 31
          %s470 = scalar_select %p469, %s468, 31
          %s471 = smul.addr %s470, 8
          %s472 = scalar_lea.vmem %s10, %s471
          %s473 = smul.u32 16, %s20
        $region94: #{tpu_custom_call.1} parent=43 // pred_fallthru
          _
      $region44: #{tpu_custom_call.1} parent=5 // pred_fallthru
        _
      %p474 = scmp.le.s32.totalorder 1, %s20
      %p475 = scmp.lt.s32.totalorder %s20, 3
      %p476 = pnand %p474, %p475
      %p477 = pneg %p476
      // Predicated region
      $region95: #{tpu_custom_call.1} parent=5 // pred_check
        _
      $region96: #{tpu_custom_call.1} parent=5 // pred_check_branch
        %479 = sbr.rel (%p476) target = $region98
      $region97: #{tpu_custom_call.1} parent=5 // pred_region
        %s480 = ssub.s32 %s20, 1
        // Predicated region
        $region99: #{tpu_custom_call.1} parent=97 // pred_check
          %p481 = pneg %p104
        $region100: #{tpu_custom_call.1} parent=97 // pred_check_branch
          %483 = sbr.rel (%p481) target = $region102
        $region101: #{tpu_custom_call.1} parent=97 // pred_region
          %484 = dma.done [#allocation8], 256
        $region102: #{tpu_custom_call.1} parent=97 // pred_fallthru
          _
        // Predicated region
        $region103: #{tpu_custom_call.1} parent=97 // pred_check
          %p485 = pneg %p125
        $region104: #{tpu_custom_call.1} parent=97 // pred_check_branch
          %487 = sbr.rel (%p485) target = $region106
        $region105: #{tpu_custom_call.1} parent=97 // pred_region
          %488 = dma.done [#allocation11], 2048
        $region106: #{tpu_custom_call.1} parent=97 // pred_fallthru
          _
        %s489 = sand.u32 %s180, 1
        %s490 = sand.u32 %s180, 1
        %s491 = smul.addr %s490, 128
        %s492 = scalar_lea.vmem [#allocation12], %s491
        // Predicated region
        $region107: #{tpu_custom_call.1} parent=97 // pred_check
          %p493 = pneg %p193
        $region108: #{tpu_custom_call.1} parent=97 // pred_check_branch
          %495 = sbr.rel (%p493) target = $region110
        $region109: #{tpu_custom_call.1} parent=97 // pred_region
          _
        $region110: #{tpu_custom_call.1} parent=97 // pred_fallthru
          _
        %p496 = pneg %p41
        %p497 = pneg %p38
        %p498 = pneg %p62
        %p499 = pneg %p59
        %p500 = pneg %p83
        %p501 = pneg %p80
        %p502 = pneg %p104
        %p503 = pneg %p101
        %p504 = pneg %p125
        %p505 = pneg %p122
        %p506 = pneg %p146
        %p507 = pneg %p143
        %p508 = pneg %p167
        %p509 = pneg %p164
        %s510 = sand.u32 %s180, 1
        %s511 = sand.u32 %s180, 1
        %s512 = smul.addr %s511, 128
        %s513 = scalar_lea.vmem [#allocation12], %s512
        %p514 = pneg %p193
        %p515 = pneg %p190
        %p516 = scmp.lt.s32.totalorder %s25, 1
        %s517 = scalar_select %p516, %s25, 1
        %s518 = scalar_lea.vmem %s8, %s517
        %p519 = pneg %p219
        %p520 = pneg %p216
        %p521 = scmp.lt.s32.totalorder %s25, 1
        %s522 = scalar_select %p521, %s25, 1
        %s523 = scalar_lea.vmem %s9, %s522
        %p524 = pneg %p245
        %p525 = pneg %p242
        %s526 = smul.u32 16, %s25
        %p527 = scmp.lt.s32.totalorder %s526, 31
        %s528 = scalar_select %p527, %s526, 31
        %s529 = smul.addr %s528, 8
        %s530 = scalar_lea.vmem %s10, %s529
        %p531 = pneg %p271
        %p532 = pneg %p268
        %p533 = pneg %p292
        %p534 = pneg %p289
        %p535 = scmp.lt.s32.totalorder %s25, 1
        %s536 = scalar_select %p535, %s25, 1
        %s537 = scalar_lea.vmem %s8, %s536
        %p538 = scmp.lt.s32.totalorder %s25, 1
        %s539 = scalar_select %p538, %s25, 1
        %s540 = scalar_lea.vmem %s9, %s539
        %s541 = smul.u32 16, %s25
        %p542 = scmp.lt.s32.totalorder %s541, 31
        %s543 = scalar_select %p542, %s541, 31
        %s544 = smul.addr %s543, 8
        %s545 = scalar_lea.vmem %s10, %s544
        %s546 = smul.u32 16, %s25
        %p547 = scmp.eq.s32.totalorder %s25, 0
        // Predicated region
        $region111: #{tpu_custom_call.1} parent=97 // pred_check
          %p548 = pneg %p547
        $region112: #{tpu_custom_call.1} parent=97 // pred_check_branch
          %550 = sbr.rel (%p548) target = $region114
        $region113: #{tpu_custom_call.1} parent=97 // pred_region
          %v551 = vld [vmem:[%s1] sm:$0xff]
          %v552 = vld [vmem:[%s1 + $0x8] sm:$0xff]
          %v553 = vld [vmem:[%s1 + $0x10] sm:$0xff]
          %v554 = vld [vmem:[%s1 + $0x18] sm:$0xff]
          %v555 = vld [vmem:[%s1 + $0x20] sm:$0xff]
          %v556 = vld [vmem:[%s1 + $0x28] sm:$0xff]
          %v557 = vld [vmem:[%s1 + $0x30] sm:$0xff]
          %v558 = vld [vmem:[%s1 + $0x38] sm:$0xff]
          %v559 = vld [vmem:[%s1 + $0x40] sm:$0xff]
          %v560 = vld [vmem:[%s1 + $0x48] sm:$0xff]
          %v561 = vld [vmem:[%s1 + $0x50] sm:$0xff]
          %v562 = vld [vmem:[%s1 + $0x58] sm:$0xff]
          %v563 = vld [vmem:[%s1 + $0x60] sm:$0xff]
          %v564 = vld [vmem:[%s1 + $0x68] sm:$0xff]
          %v565 = vld [vmem:[%s1 + $0x70] sm:$0xff]
          %v566 = vld [vmem:[%s1 + $0x78] sm:$0xff]
          %v567 = vld [vmem:[%s0] sm:$0xff]
          %v568 = vld [vmem:[%s0 + $0x8] sm:$0xff]
          %v569 = vld [vmem:[%s0 + $0x10] sm:$0xff]
          %v570 = vld [vmem:[%s0 + $0x18] sm:$0xff]
          %v571 = vld [vmem:[%s0 + $0x20] sm:$0xff]
          %v572 = vld [vmem:[%s0 + $0x28] sm:$0xff]
          %v573 = vld [vmem:[%s0 + $0x30] sm:$0xff]
          %v574 = vld [vmem:[%s0 + $0x38] sm:$0xff]
          %v575 = vld [vmem:[%s0 + $0x40] sm:$0xff]
          %v576 = vld [vmem:[%s0 + $0x48] sm:$0xff]
          %v577 = vld [vmem:[%s0 + $0x50] sm:$0xff]
          %v578 = vld [vmem:[%s0 + $0x58] sm:$0xff]
          %v579 = vld [vmem:[%s0 + $0x60] sm:$0xff]
          %v580 = vld [vmem:[%s0 + $0x68] sm:$0xff]
          %v581 = vld [vmem:[%s0 + $0x70] sm:$0xff]
          %v582 = vld [vmem:[%s0 + $0x78] sm:$0xff]
          %v583 = vld [vmem:[%s2] sm:$0xff]
          %v584 = vld [vmem:[%s2 + $0x8] sm:$0xff]
          %v585 = vld [vmem:[%s2 + $0x10] sm:$0xff]
          %v586 = vld [vmem:[%s2 + $0x18] sm:$0xff]
          %v587 = vld [vmem:[%s2 + $0x20] sm:$0xff]
          %v588 = vld [vmem:[%s2 + $0x28] sm:$0xff]
          %v589 = vld [vmem:[%s2 + $0x30] sm:$0xff]
          %v590 = vld [vmem:[%s2 + $0x38] sm:$0xff]
          %v591 = vld [vmem:[%s2 + $0x40] sm:$0xff]
          %v592 = vld [vmem:[%s2 + $0x48] sm:$0xff]
          %v593 = vld [vmem:[%s2 + $0x50] sm:$0xff]
          %v594 = vld [vmem:[%s2 + $0x58] sm:$0xff]
          %v595 = vld [vmem:[%s2 + $0x60] sm:$0xff]
          %v596 = vld [vmem:[%s2 + $0x68] sm:$0xff]
          %v597 = vld [vmem:[%s2 + $0x70] sm:$0xff]
          %v598 = vld [vmem:[%s2 + $0x78] sm:$0xff]
          %600 = vset.pattern.permute.xlu0 0
          %601 = vperm.xlu0 %600, %v583
          %v602 = vpop.permute.xlu0 %601
          %605 = vset.pattern.permute.xlu0 0
          %606 = vperm.xlu0 %605, %v584
          %v607 = vpop.permute.xlu0 %606
          %610 = vset.pattern.permute.xlu0 0
          %611 = vperm.xlu0 %610, %v585
          %v612 = vpop.permute.xlu0 %611
          %615 = vset.pattern.permute.xlu0 0
          %616 = vperm.xlu0 %615, %v586
          %v617 = vpop.permute.xlu0 %616
          %620 = vset.pattern.permute.xlu0 0
          %621 = vperm.xlu0 %620, %v587
          %v622 = vpop.permute.xlu0 %621
          %625 = vset.pattern.permute.xlu0 0
          %626 = vperm.xlu0 %625, %v588
          %v627 = vpop.permute.xlu0 %626
          %630 = vset.pattern.permute.xlu0 0
          %631 = vperm.xlu0 %630, %v589
          %v632 = vpop.permute.xlu0 %631
          %635 = vset.pattern.permute.xlu0 0
          %636 = vperm.xlu0 %635, %v590
          %v637 = vpop.permute.xlu0 %636
          %640 = vset.pattern.permute.xlu0 0
          %641 = vperm.xlu0 %640, %v591
          %v642 = vpop.permute.xlu0 %641
          %645 = vset.pattern.permute.xlu0 0
          %646 = vperm.xlu0 %645, %v592
          %v647 = vpop.permute.xlu0 %646
          %650 = vset.pattern.permute.xlu0 0
          %651 = vperm.xlu0 %650, %v593
          %v652 = vpop.permute.xlu0 %651
          %655 = vset.pattern.permute.xlu0 0
          %656 = vperm.xlu0 %655, %v594
          %v657 = vpop.permute.xlu0 %656
          %660 = vset.pattern.permute.xlu0 0
          %661 = vperm.xlu0 %660, %v595
          %v662 = vpop.permute.xlu0 %661
          %665 = vset.pattern.permute.xlu0 0
          %666 = vperm.xlu0 %665, %v596
          %v667 = vpop.permute.xlu0 %666
          %670 = vset.pattern.permute.xlu0 0
          %671 = vperm.xlu0 %670, %v597
          %v672 = vpop.permute.xlu0 %671
          %675 = vset.pattern.permute.xlu0 0
          %676 = vperm.xlu0 %675, %v598
          %v677 = vpop.permute.xlu0 %676
          %679 = vmatprep.subr.mxu0 0.0
          %680 = vmatpush1.msra.mxu0 %v567
          %681 = vmatprep.subr.mxu0 0.0
          %682 = vmatpush1.msra.mxu0 %v568
          %683 = vmatprep.subr.mxu0 0.0
          %684 = vmatpush1.msra.mxu0 %v569
          %685 = vmatprep.subr.mxu0 0.0
          %686 = vmatpush1.msra.mxu0 %v570
          %687 = vmatprep.subr.mxu0 0.0
          %688 = vmatpush1.msra.mxu0 %v571
          %689 = vmatprep.subr.mxu0 0.0
          %690 = vmatpush1.msra.mxu0 %v572
          %691 = vmatprep.subr.mxu0 0.0
          %692 = vmatpush1.msra.mxu0 %v573
          %693 = vmatprep.subr.mxu0 0.0
          %694 = vmatpush1.msra.mxu0 %v574
          %695 = vmatprep.subr.mxu0 0.0
          %696 = vmatpush1.msra.mxu0 %v575
          %697 = vmatprep.subr.mxu0 0.0
          %698 = vmatpush1.msra.mxu0 %v576
          %699 = vmatprep.subr.mxu0 0.0
          %700 = vmatpush1.msra.mxu0 %v577
          %701 = vmatprep.subr.mxu0 0.0
          %702 = vmatpush1.msra.mxu0 %v578
          %703 = vmatprep.subr.mxu0 0.0
          %704 = vmatpush1.msra.mxu0 %v579
          %705 = vmatprep.subr.mxu0 0.0
          %706 = vmatpush1.msra.mxu0 %v580
          %707 = vmatprep.subr.mxu0 0.0
          %708 = vmatpush1.msra.mxu0 %v581
          %709 = vmatprep.subr.mxu0 0.0
          %710 = vmatpush1.msra.mxu0 %v582
          %711 = vmatprep.subr.mxu0 0.0
          %712 = vmatpush1.msra.mxu0 0.0
          %713 = vmatprep.subr.mxu0 0.0
          %714 = vmatpush1.msra.mxu0 0.0
          %715 = vmatprep.subr.mxu0 0.0
          %716 = vmatpush1.msra.mxu0 0.0
          %717 = vmatprep.subr.mxu0 0.0
          %718 = vmatpush1.msra.mxu0 0.0
          %719 = vmatprep.subr.mxu0 0.0
          %720 = vmatpush1.msra.mxu0 0.0
          %721 = vmatprep.subr.mxu0 0.0
          %722 = vmatpush1.msra.mxu0 0.0
          %723 = vmatprep.subr.mxu0 0.0
          %724 = vmatpush1.msra.mxu0 0.0
          %725 = vmatprep.subr.mxu0 0.0
          %726 = vmatpush1.msra.mxu0 0.0
          %727 = vmatprep.subr.mxu0 0.0
          %728 = vmatpush1.msra.mxu0 0.0
          %729 = vmatprep.subr.mxu0 0.0
          %730 = vmatpush1.msra.mxu0 0.0
          %731 = vmatprep.subr.mxu0 0.0
          %732 = vmatpush1.msra.mxu0 0.0
          %733 = vmatprep.subr.mxu0 0.0
          %734 = vmatpush1.msra.mxu0 0.0
          %735 = vmatprep.subr.mxu0 0.0
          %736 = vmatpush1.msra.mxu0 0.0
          %737 = vmatprep.subr.mxu0 0.0
          %738 = vmatpush1.msra.mxu0 0.0
          %739 = vmatprep.subr.mxu0 0.0
          %740 = vmatpush1.msra.mxu0 0.0
          %741 = vmatprep.subr.mxu0 0.0
          %742 = vmatpush1.msra.mxu0 0.0
          %743 = vmatprep.mubr.f32.mxu0 0.0
          %744 = vmatmul.mubr.f32.gmra.mrb[0].mxu0 %v551
          %v745 = vpop.f32.mrb[0].mxu0
          %v746 = vadd.f32 %v602, %v745
          %v747 = vpop.f32.mrb[0].mxu0
          %748 = vmatprep.mubr.f32.mxu0 0.0
          %749 = vmatmul.mubr.f32.gmra.mrb[0].mxu0 %v552
          %v750 = vpop.f32.mrb[0].mxu0
          %v751 = vadd.f32 %v607, %v750
          %v752 = vpop.f32.mrb[0].mxu0
          %753 = vmatprep.mubr.f32.mxu0 0.0
          %754 = vmatmul.mubr.f32.gmra.mrb[0].mxu0 %v553
          %v755 = vpop.f32.mrb[0].mxu0
          %v756 = vadd.f32 %v612, %v755
          %v757 = vpop.f32.mrb[0].mxu0
          %758 = vmatprep.mubr.f32.mxu0 0.0
          %759 = vmatmul.mubr.f32.gmra.mrb[0].mxu0 %v554
          %v760 = vpop.f32.mrb[0].mxu0
          %v761 = vadd.f32 %v617, %v760
          %v762 = vpop.f32.mrb[0].mxu0
          %763 = vmatprep.mubr.f32.mxu0 0.0
          %764 = vmatmul.mubr.f32.gmra.mrb[0].mxu0 %v555
          %v765 = vpop.f32.mrb[0].mxu0
          %v766 = vadd.f32 %v622, %v765
          %v767 = vpop.f32.mrb[0].mxu0
          %768 = vmatprep.mubr.f32.mxu0 0.0
          %769 = vmatmul.mubr.f32.gmra.mrb[0].mxu0 %v556
          %v770 = vpop.f32.mrb[0].mxu0
          %v771 = vadd.f32 %v627, %v770
          %v772 = vpop.f32.mrb[0].mxu0
          %773 = vmatprep.mubr.f32.mxu0 0.0
          %774 = vmatmul.mubr.f32.gmra.mrb[0].mxu0 %v557
          %v775 = vpop.f32.mrb[0].mxu0
          %v776 = vadd.f32 %v632, %v775
          %v777 = vpop.f32.mrb[0].mxu0
          %778 = vmatprep.mubr.f32.mxu0 0.0
          %779 = vmatmul.mubr.f32.gmra.mrb[0].mxu0 %v558
          %v780 = vpop.f32.mrb[0].mxu0
          %v781 = vadd.f32 %v637, %v780
          %v782 = vpop.f32.mrb[0].mxu0
          %783 = vmatprep.mubr.f32.mxu0 0.0
          %784 = vmatmul.mubr.f32.gmra.mrb[0].mxu0 %v559
          %v785 = vpop.f32.mrb[0].mxu0
          %v786 = vadd.f32 %v642, %v785
          %v787 = vpop.f32.mrb[0].mxu0
          %788 = vmatprep.mubr.f32.mxu0 0.0
          %789 = vmatmul.mubr.f32.gmra.mrb[0].mxu0 %v560
          %v790 = vpop.f32.mrb[0].mxu0
          %v791 = vadd.f32 %v647, %v790
          %v792 = vpop.f32.mrb[0].mxu0
          %793 = vmatprep.mubr.f32.mxu0 0.0
          %794 = vmatmul.mubr.f32.gmra.mrb[0].mxu0 %v561
          %v795 = vpop.f32.mrb[0].mxu0
          %v796 = vadd.f32 %v652, %v795
          %v797 = vpop.f32.mrb[0].mxu0
          %798 = vmatprep.mubr.f32.mxu0 0.0
          %799 = vmatmul.mubr.f32.gmra.mrb[0].mxu0 %v562
          %v800 = vpop.f32.mrb[0].mxu0
          %v801 = vadd.f32 %v657, %v800
          %v802 = vpop.f32.mrb[0].mxu0
          %803 = vmatprep.mubr.f32.mxu0 0.0
          %804 = vmatmul.mubr.f32.gmra.mrb[0].mxu0 %v563
          %v805 = vpop.f32.mrb[0].mxu0
          %v806 = vadd.f32 %v662, %v805
          %v807 = vpop.f32.mrb[0].mxu0
          %808 = vmatprep.mubr.f32.mxu0 0.0
          %809 = vmatmul.mubr.f32.gmra.mrb[0].mxu0 %v564
          %v810 = vpop.f32.mrb[0].mxu0
          %v811 = vadd.f32 %v667, %v810
          %v812 = vpop.f32.mrb[0].mxu0
          %813 = vmatprep.mubr.f32.mxu0 0.0
          %814 = vmatmul.mubr.f32.gmra.mrb[0].mxu0 %v565
          %v815 = vpop.f32.mrb[0].mxu0
          %v816 = vadd.f32 %v672, %v815
          %v817 = vpop.f32.mrb[0].mxu0
          %818 = vmatprep.mubr.f32.mxu0 0.0
          %819 = vmatmul.mubr.f32.gmra.mrb[0].mxu0 %v566
          %v820 = vpop.f32.mrb[0].mxu0
          %v821 = vadd.f32 %v677, %v820
          %v822 = vpop.f32.mrb[0].mxu0
          %823 = vdwg.mxu0
          %v824 = vld [vmem:[#allocation7] sm:$0xff]
          %v825 = vld [vmem:[#allocation7 + $0x8] sm:$0xff]
          %826 = vmatprep.subr.mxu0 0.0
          %827 = vmatpush1.msra.mxu0 %v746
          %828 = vmatprep.subr.mxu0 0.0
          %829 = vmatpush1.msra.mxu0 %v751
          %830 = vmatprep.subr.mxu0 0.0
          %831 = vmatpush1.msra.mxu0 %v756
          %832 = vmatprep.subr.mxu0 0.0
          %833 = vmatpush1.msra.mxu0 %v761
          %834 = vmatprep.subr.mxu0 0.0
          %835 = vmatpush1.msra.mxu0 %v766
          %836 = vmatprep.subr.mxu0 0.0
          %837 = vmatpush1.msra.mxu0 %v771
          %838 = vmatprep.subr.mxu0 0.0
          %839 = vmatpush1.msra.mxu0 %v776
          %840 = vmatprep.subr.mxu0 0.0
          %841 = vmatpush1.msra.mxu0 %v781
          %842 = vmatprep.subr.mxu0 0.0
          %843 = vmatpush1.msra.mxu0 %v786
          %844 = vmatprep.subr.mxu0 0.0
          %845 = vmatpush1.msra.mxu0 %v791
          %846 = vmatprep.subr.mxu0 0.0
          %847 = vmatpush1.msra.mxu0 %v796
          %848 = vmatprep.subr.mxu0 0.0
          %849 = vmatpush1.msra.mxu0 %v801
          %850 = vmatprep.subr.mxu0 0.0
          %851 = vmatpush1.msra.mxu0 %v806
          %852 = vmatprep.subr.mxu0 0.0
          %853 = vmatpush1.msra.mxu0 %v811
          %854 = vmatprep.subr.mxu0 0.0
          %855 = vmatpush1.msra.mxu0 %v816
          %856 = vmatprep.subr.mxu0 0.0
          %857 = vmatpush1.msra.mxu0 %v821
          %858 = vmatprep.subr.mxu0 0.0
          %859 = vmatpush1.msra.mxu0 0.0
          %860 = vmatprep.subr.mxu0 0.0
          %861 = vmatpush1.msra.mxu0 0.0
          %862 = vmatprep.subr.mxu0 0.0
          %863 = vmatpush1.msra.mxu0 0.0
          %864 = vmatprep.subr.mxu0 0.0
          %865 = vmatpush1.msra.mxu0 0.0
          %866 = vmatprep.subr.mxu0 0.0
          %867 = vmatpush1.msra.mxu0 0.0
          %868 = vmatprep.subr.mxu0 0.0
          %869 = vmatpush1.msra.mxu0 0.0
          %870 = vmatprep.subr.mxu0 0.0
          %871 = vmatpush1.msra.mxu0 0.0
          %872 = vmatprep.subr.mxu0 0.0
          %873 = vmatpush1.msra.mxu0 0.0
          %874 = vmatprep.subr.mxu0 0.0
          %875 = vmatpush1.msra.mxu0 0.0
          %876 = vmatprep.subr.mxu0 0.0
          %877 = vmatpush1.msra.mxu0 0.0
          %878 = vmatprep.subr.mxu0 0.0
          %879 = vmatpush1.msra.mxu0 0.0
          %880 = vmatprep.subr.mxu0 0.0
          %881 = vmatpush1.msra.mxu0 0.0
          %882 = vmatprep.subr.mxu0 0.0
          %883 = vmatpush1.msra.mxu0 0.0
          %884 = vmatprep.subr.mxu0 0.0
          %885 = vmatpush1.msra.mxu0 0.0
          %886 = vmatprep.subr.mxu0 0.0
          %887 = vmatpush1.msra.mxu0 0.0
          %888 = vmatprep.subr.mxu0 0.0
          %889 = vmatpush1.msra.mxu0 0.0
          %890 = vmatprep.mubr.f32.mxu0 0.0
          %891 = vmatmul.mubr.f32.gmra.mrb[0].mxu0 %v824
          %v892 = vpop.f32.mrb[0].mxu0
          %v893 = vadd.f32 0.0, %v892
          %v894 = vpop.f32.mrb[0].mxu0
          %895 = vmatprep.mubr.f32.mxu0 0.0
          %896 = vmatmul.mubr.f32.gmra.mrb[0].mxu0 %v825
          %v897 = vpop.f32.mrb[0].mxu0
          %v898 = vadd.f32 0.0, %v897
          %v899 = vpop.f32.mrb[0].mxu0
          %900 = vdwg.mxu0
          %901 = vst [vmem:[#allocation2] sm:$0xff] %v893
          %902 = vst [vmem:[#allocation3] sm:$0xff] %v898
          %903 = vst [vmem:[#allocation4] sm:$0xff] -1e+30
          %904 = vst [vmem:[#allocation5] sm:$0xff] 0.0
          %905 = vst [vmem:[#allocation6] sm:$0xff] 0.0
        $region114: #{tpu_custom_call.1} parent=97 // pred_fallthru
          _
        %v906 = vld [vmem:[#allocation10] sm:$0xff]
        %v907 = vld [vmem:[#allocation10 + $0x8] sm:$0xff]
        %v908 = vld [vmem:[#allocation10 + $0x10] sm:$0xff]
        %v909 = vld [vmem:[#allocation10 + $0x18] sm:$0xff]
        %v910 = vld [vmem:[#allocation10 + $0x20] sm:$0xff]
        %v911 = vld [vmem:[#allocation10 + $0x28] sm:$0xff]
        %v912 = vld [vmem:[#allocation10 + $0x30] sm:$0xff]
        %v913 = vld [vmem:[#allocation10 + $0x38] sm:$0xff]
        %v914 = vld [vmem:[#allocation10 + $0x40] sm:$0xff]
        %v915 = vld [vmem:[#allocation10 + $0x48] sm:$0xff]
        %v916 = vld [vmem:[#allocation10 + $0x50] sm:$0xff]
        %v917 = vld [vmem:[#allocation10 + $0x58] sm:$0xff]
        %v918 = vld [vmem:[#allocation10 + $0x60] sm:$0xff]
        %v919 = vld [vmem:[#allocation10 + $0x68] sm:$0xff]
        %v920 = vld [vmem:[#allocation10 + $0x70] sm:$0xff]
        %v921 = vld [vmem:[#allocation10 + $0x78] sm:$0xff]
        %v922 = vld [vmem:[%s492] sm:$0xff]
        %v923 = vld [vmem:[%s492 + $0x8] sm:$0xff]
        %v924 = vld [vmem:[%s492 + $0x10] sm:$0xff]
        %v925 = vld [vmem:[%s492 + $0x18] sm:$0xff]
        %v926 = vld [vmem:[%s492 + $0x20] sm:$0xff]
        %v927 = vld [vmem:[%s492 + $0x28] sm:$0xff]
        %v928 = vld [vmem:[%s492 + $0x30] sm:$0xff]
        %v929 = vld [vmem:[%s492 + $0x38] sm:$0xff]
        %v930 = vld [vmem:[%s492 + $0x40] sm:$0xff]
        %v931 = vld [vmem:[%s492 + $0x48] sm:$0xff]
        %v932 = vld [vmem:[%s492 + $0x50] sm:$0xff]
        %v933 = vld [vmem:[%s492 + $0x58] sm:$0xff]
        %v934 = vld [vmem:[%s492 + $0x60] sm:$0xff]
        %v935 = vld [vmem:[%s492 + $0x68] sm:$0xff]
        %v936 = vld [vmem:[%s492 + $0x70] sm:$0xff]
        %v937 = vld [vmem:[%s492 + $0x78] sm:$0xff]
        %v938 = vld [vmem:[%s5] sm:$0xff]
        %v939 = vld [vmem:[%s5 + $0x8] sm:$0xff]
        %v940 = vld [vmem:[%s5 + $0x10] sm:$0xff]
        %v941 = vld [vmem:[%s5 + $0x18] sm:$0xff]
        %v942 = vld [vmem:[%s5 + $0x20] sm:$0xff]
        %v943 = vld [vmem:[%s5 + $0x28] sm:$0xff]
        %v944 = vld [vmem:[%s5 + $0x30] sm:$0xff]
        %v945 = vld [vmem:[%s5 + $0x38] sm:$0xff]
        %v946 = vld [vmem:[%s5 + $0x40] sm:$0xff]
        %v947 = vld [vmem:[%s5 + $0x48] sm:$0xff]
        %v948 = vld [vmem:[%s5 + $0x50] sm:$0xff]
        %v949 = vld [vmem:[%s5 + $0x58] sm:$0xff]
        %v950 = vld [vmem:[%s5 + $0x60] sm:$0xff]
        %v951 = vld [vmem:[%s5 + $0x68] sm:$0xff]
        %v952 = vld [vmem:[%s5 + $0x70] sm:$0xff]
        %v953 = vld [vmem:[%s5 + $0x78] sm:$0xff]
        %955 = vset.pattern.permute.xlu0 0
        %956 = vperm.xlu0 %955, %v938
        %v957 = vpop.permute.xlu0 %956
        %960 = vset.pattern.permute.xlu0 0
        %961 = vperm.xlu0 %960, %v939
        %v962 = vpop.permute.xlu0 %961
        %965 = vset.pattern.permute.xlu0 0
        %966 = vperm.xlu0 %965, %v940
        %v967 = vpop.permute.xlu0 %966
        %970 = vset.pattern.permute.xlu0 0
        %971 = vperm.xlu0 %970, %v941
        %v972 = vpop.permute.xlu0 %971
        %975 = vset.pattern.permute.xlu0 0
        %976 = vperm.xlu0 %975, %v942
        %v977 = vpop.permute.xlu0 %976
        %980 = vset.pattern.permute.xlu0 0
        %981 = vperm.xlu0 %980, %v943
        %v982 = vpop.permute.xlu0 %981
        %985 = vset.pattern.permute.xlu0 0
        %986 = vperm.xlu0 %985, %v944
        %v987 = vpop.permute.xlu0 %986
        %990 = vset.pattern.permute.xlu0 0
        %991 = vperm.xlu0 %990, %v945
        %v992 = vpop.permute.xlu0 %991
        %995 = vset.pattern.permute.xlu0 0
        %996 = vperm.xlu0 %995, %v946
        %v997 = vpop.permute.xlu0 %996
        %1000 = vset.pattern.permute.xlu0 0
        %1001 = vperm.xlu0 %1000, %v947
        %v1002 = vpop.permute.xlu0 %1001
        %1005 = vset.pattern.permute.xlu0 0
        %1006 = vperm.xlu0 %1005, %v948
        %v1007 = vpop.permute.xlu0 %1006
        %1010 = vset.pattern.permute.xlu0 0
        %1011 = vperm.xlu0 %1010, %v949
        %v1012 = vpop.permute.xlu0 %1011
        %1015 = vset.pattern.permute.xlu0 0
        %1016 = vperm.xlu0 %1015, %v950
        %v1017 = vpop.permute.xlu0 %1016
        %1020 = vset.pattern.permute.xlu0 0
        %1021 = vperm.xlu0 %1020, %v951
        %v1022 = vpop.permute.xlu0 %1021
        %1025 = vset.pattern.permute.xlu0 0
        %1026 = vperm.xlu0 %1025, %v952
        %v1027 = vpop.permute.xlu0 %1026
        %1030 = vset.pattern.permute.xlu0 0
        %1031 = vperm.xlu0 %1030, %v953
        %v1032 = vpop.permute.xlu0 %1031
        %1034 = vmatprep.subr.mxu0 0.0
        %1035 = vmatpush1.msra.mxu0 %v922
        %1036 = vmatprep.subr.mxu0 0.0
        %1037 = vmatpush1.msra.mxu0 %v923
        %1038 = vmatprep.subr.mxu0 0.0
        %1039 = vmatpush1.msra.mxu0 %v924
        %1040 = vmatprep.subr.mxu0 0.0
        %1041 = vmatpush1.msra.mxu0 %v925
        %1042 = vmatprep.subr.mxu0 0.0
        %1043 = vmatpush1.msra.mxu0 %v926
        %1044 = vmatprep.subr.mxu0 0.0
        %1045 = vmatpush1.msra.mxu0 %v927
        %1046 = vmatprep.subr.mxu0 0.0
        %1047 = vmatpush1.msra.mxu0 %v928
        %1048 = vmatprep.subr.mxu0 0.0
        %1049 = vmatpush1.msra.mxu0 %v929
        %1050 = vmatprep.subr.mxu0 0.0
        %1051 = vmatpush1.msra.mxu0 %v930
        %1052 = vmatprep.subr.mxu0 0.0
        %1053 = vmatpush1.msra.mxu0 %v931
        %1054 = vmatprep.subr.mxu0 0.0
        %1055 = vmatpush1.msra.mxu0 %v932
        %1056 = vmatprep.subr.mxu0 0.0
        %1057 = vmatpush1.msra.mxu0 %v933
        %1058 = vmatprep.subr.mxu0 0.0
        %1059 = vmatpush1.msra.mxu0 %v934
        %1060 = vmatprep.subr.mxu0 0.0
        %1061 = vmatpush1.msra.mxu0 %v935
        %1062 = vmatprep.subr.mxu0 0.0
        %1063 = vmatpush1.msra.mxu0 %v936
        %1064 = vmatprep.subr.mxu0 0.0
        %1065 = vmatpush1.msra.mxu0 %v937
        %1066 = vmatprep.subr.mxu0 0.0
        %1067 = vmatpush1.msra.mxu0 0.0
        %1068 = vmatprep.subr.mxu0 0.0
        %1069 = vmatpush1.msra.mxu0 0.0
        %1070 = vmatprep.subr.mxu0 0.0
        %1071 = vmatpush1.msra.mxu0 0.0
        %1072 = vmatprep.subr.mxu0 0.0
        %1073 = vmatpush1.msra.mxu0 0.0
        %1074 = vmatprep.subr.mxu0 0.0
        %1075 = vmatpush1.msra.mxu0 0.0
        %1076 = vmatprep.subr.mxu0 0.0
        %1077 = vmatpush1.msra.mxu0 0.0
        %1078 = vmatprep.subr.mxu0 0.0
        %1079 = vmatpush1.msra.mxu0 0.0
        %1080 = vmatprep.subr.mxu0 0.0
        %1081 = vmatpush1.msra.mxu0 0.0
        %1082 = vmatprep.subr.mxu0 0.0
        %1083 = vmatpush1.msra.mxu0 0.0
        %1084 = vmatprep.subr.mxu0 0.0
        %1085 = vmatpush1.msra.mxu0 0.0
        %1086 = vmatprep.subr.mxu0 0.0
        %1087 = vmatpush1.msra.mxu0 0.0
        %1088 = vmatprep.subr.mxu0 0.0
        %1089 = vmatpush1.msra.mxu0 0.0
        %1090 = vmatprep.subr.mxu0 0.0
        %1091 = vmatpush1.msra.mxu0 0.0
        %1092 = vmatprep.subr.mxu0 0.0
        %1093 = vmatpush1.msra.mxu0 0.0
        %1094 = vmatprep.subr.mxu0 0.0
        %1095 = vmatpush1.msra.mxu0 0.0
        %1096 = vmatprep.subr.mxu0 0.0
        %1097 = vmatpush1.msra.mxu0 0.0
        %1098 = vmatprep.mubr.f32.mxu0 0.0
        %1099 = vmatmul.mubr.f32.gmra.mrb[0].mxu0 %v906
        %v1100 = vpop.f32.mrb[0].mxu0
        %v1101 = vadd.f32 %v957, %v1100
        %v1102 = vpop.f32.mrb[0].mxu0
        %1103 = vmatprep.mubr.f32.mxu0 0.0
        %1104 = vmatmul.mubr.f32.gmra.mrb[0].mxu0 %v907
        %v1105 = vpop.f32.mrb[0].mxu0
        %v1106 = vadd.f32 %v962, %v1105
        %v1107 = vpop.f32.mrb[0].mxu0
        %1108 = vmatprep.mubr.f32.mxu0 0.0
        %1109 = vmatmul.mubr.f32.gmra.mrb[0].mxu0 %v908
        %v1110 = vpop.f32.mrb[0].mxu0
        %v1111 = vadd.f32 %v967, %v1110
        %v1112 = vpop.f32.mrb[0].mxu0
        %1113 = vmatprep.mubr.f32.mxu0 0.0
        %1114 = vmatmul.mubr.f32.gmra.mrb[0].mxu0 %v909
        %v1115 = vpop.f32.mrb[0].mxu0
        %v1116 = vadd.f32 %v972, %v1115
        %v1117 = vpop.f32.mrb[0].mxu0
        %1118 = vmatprep.mubr.f32.mxu0 0.0
        %1119 = vmatmul.mubr.f32.gmra.mrb[0].mxu0 %v910
        %v1120 = vpop.f32.mrb[0].mxu0
        %v1121 = vadd.f32 %v977, %v1120
        %v1122 = vpop.f32.mrb[0].mxu0
        %1123 = vmatprep.mubr.f32.mxu0 0.0
        %1124 = vmatmul.mubr.f32.gmra.mrb[0].mxu0 %v911
        %v1125 = vpop.f32.mrb[0].mxu0
        %v1126 = vadd.f32 %v982, %v1125
        %v1127 = vpop.f32.mrb[0].mxu0
        %1128 = vmatprep.mubr.f32.mxu0 0.0
        %1129 = vmatmul.mubr.f32.gmra.mrb[0].mxu0 %v912
        %v1130 = vpop.f32.mrb[0].mxu0
        %v1131 = vadd.f32 %v987, %v1130
        %v1132 = vpop.f32.mrb[0].mxu0
        %1133 = vmatprep.mubr.f32.mxu0 0.0
        %1134 = vmatmul.mubr.f32.gmra.mrb[0].mxu0 %v913
        %v1135 = vpop.f32.mrb[0].mxu0
        %v1136 = vadd.f32 %v992, %v1135
        %v1137 = vpop.f32.mrb[0].mxu0
        %1138 = vmatprep.mubr.f32.mxu0 0.0
        %1139 = vmatmul.mubr.f32.gmra.mrb[0].mxu0 %v914
        %v1140 = vpop.f32.mrb[0].mxu0
        %v1141 = vadd.f32 %v997, %v1140
        %v1142 = vpop.f32.mrb[0].mxu0
        %1143 = vmatprep.mubr.f32.mxu0 0.0
        %1144 = vmatmul.mubr.f32.gmra.mrb[0].mxu0 %v915
        %v1145 = vpop.f32.mrb[0].mxu0
        %v1146 = vadd.f32 %v1002, %v1145
        %v1147 = vpop.f32.mrb[0].mxu0
        %1148 = vmatprep.mubr.f32.mxu0 0.0
        %1149 = vmatmul.mubr.f32.gmra.mrb[0].mxu0 %v916
        %v1150 = vpop.f32.mrb[0].mxu0
        %v1151 = vadd.f32 %v1007, %v1150
        %v1152 = vpop.f32.mrb[0].mxu0
        %1153 = vmatprep.mubr.f32.mxu0 0.0
        %1154 = vmatmul.mubr.f32.gmra.mrb[0].mxu0 %v917
        %v1155 = vpop.f32.mrb[0].mxu0
        %v1156 = vadd.f32 %v1012, %v1155
        %v1157 = vpop.f32.mrb[0].mxu0
        %1158 = vmatprep.mubr.f32.mxu0 0.0
        %1159 = vmatmul.mubr.f32.gmra.mrb[0].mxu0 %v918
        %v1160 = vpop.f32.mrb[0].mxu0
        %v1161 = vadd.f32 %v1017, %v1160
        %v1162 = vpop.f32.mrb[0].mxu0
        %1163 = vmatprep.mubr.f32.mxu0 0.0
        %1164 = vmatmul.mubr.f32.gmra.mrb[0].mxu0 %v919
        %v1165 = vpop.f32.mrb[0].mxu0
        %v1166 = vadd.f32 %v1022, %v1165
        %v1167 = vpop.f32.mrb[0].mxu0
        %1168 = vmatprep.mubr.f32.mxu0 0.0
        %1169 = vmatmul.mubr.f32.gmra.mrb[0].mxu0 %v920
        %v1170 = vpop.f32.mrb[0].mxu0
        %v1171 = vadd.f32 %v1027, %v1170
        %v1172 = vpop.f32.mrb[0].mxu0
        %1173 = vmatprep.mubr.f32.mxu0 0.0
        %1174 = vmatmul.mubr.f32.gmra.mrb[0].mxu0 %v921
        %v1175 = vpop.f32.mrb[0].mxu0
        %v1176 = vadd.f32 %v1032, %v1175
        %v1177 = vpop.f32.mrb[0].mxu0
        %1178 = vdwg.mxu0
        %v1179 = vld [vmem:[%s6] sm:$0xff]
        %1180 = vmatprep.subr.mxu0 0.0
        %1181 = vmatpush1.msra.mxu0 %v1101
        %1182 = vmatprep.subr.mxu0 0.0
        %1183 = vmatpush1.msra.mxu0 %v1106
        %1184 = vmatprep.subr.mxu0 0.0
        %1185 = vmatpush1.msra.mxu0 %v1111
        %1186 = vmatprep.subr.mxu0 0.0
        %1187 = vmatpush1.msra.mxu0 %v1116
        %1188 = vmatprep.subr.mxu0 0.0
        %1189 = vmatpush1.msra.mxu0 %v1121
        %1190 = vmatprep.subr.mxu0 0.0
        %1191 = vmatpush1.msra.mxu0 %v1126
        %1192 = vmatprep.subr.mxu0 0.0
        %1193 = vmatpush1.msra.mxu0 %v1131
        %1194 = vmatprep.subr.mxu0 0.0
        %1195 = vmatpush1.msra.mxu0 %v1136
        %1196 = vmatprep.subr.mxu0 0.0
        %1197 = vmatpush1.msra.mxu0 %v1141
        %1198 = vmatprep.subr.mxu0 0.0
        %1199 = vmatpush1.msra.mxu0 %v1146
        %1200 = vmatprep.subr.mxu0 0.0
        %1201 = vmatpush1.msra.mxu0 %v1151
        %1202 = vmatprep.subr.mxu0 0.0
        %1203 = vmatpush1.msra.mxu0 %v1156
        %1204 = vmatprep.subr.mxu0 0.0
        %1205 = vmatpush1.msra.mxu0 %v1161
        %1206 = vmatprep.subr.mxu0 0.0
        %1207 = vmatpush1.msra.mxu0 %v1166
        %1208 = vmatprep.subr.mxu0 0.0
        %1209 = vmatpush1.msra.mxu0 %v1171
        %1210 = vmatprep.subr.mxu0 0.0
        %1211 = vmatpush1.msra.mxu0 %v1176
        %1212 = vmatprep.subr.mxu0 0.0
        %1213 = vmatpush1.msra.mxu0 0.0
        %1214 = vmatprep.subr.mxu0 0.0
        %1215 = vmatpush1.msra.mxu0 0.0
        %1216 = vmatprep.subr.mxu0 0.0
        %1217 = vmatpush1.msra.mxu0 0.0
        %1218 = vmatprep.subr.mxu0 0.0
        %1219 = vmatpush1.msra.mxu0 0.0
        %1220 = vmatprep.subr.mxu0 0.0
        %1221 = vmatpush1.msra.mxu0 0.0
        %1222 = vmatprep.subr.mxu0 0.0
        %1223 = vmatpush1.msra.mxu0 0.0
        %1224 = vmatprep.subr.mxu0 0.0
        %1225 = vmatpush1.msra.mxu0 0.0
        %1226 = vmatprep.subr.mxu0 0.0
        %1227 = vmatpush1.msra.mxu0 0.0
        %1228 = vmatprep.subr.mxu0 0.0
        %1229 = vmatpush1.msra.mxu0 0.0
        %1230 = vmatprep.subr.mxu0 0.0
        %1231 = vmatpush1.msra.mxu0 0.0
        %1232 = vmatprep.subr.mxu0 0.0
        %1233 = vmatpush1.msra.mxu0 0.0
        %1234 = vmatprep.subr.mxu0 0.0
        %1235 = vmatpush1.msra.mxu0 0.0
        %1236 = vmatprep.subr.mxu0 0.0
        %1237 = vmatpush1.msra.mxu0 0.0
        %1238 = vmatprep.subr.mxu0 0.0
        %1239 = vmatpush1.msra.mxu0 0.0
        %1240 = vmatprep.subr.mxu0 0.0
        %1241 = vmatpush1.msra.mxu0 0.0
        %1242 = vmatprep.subr.mxu0 0.0
        %1243 = vmatpush1.msra.mxu0 0.0
        %1244 = vmatprep.mubr.f32.mxu0 0.0
        %1245 = vmatmul.mubr.f32.gmra.mrb[0].mxu0 %v1179
        %v1246 = vpop.f32.mrb[0].mxu0
        %v1247 = vadd.f32 0.0, %v1246
        %v1248 = vpop.f32.mrb[0].mxu0
        %1249 = vdwg.mxu0
        %v1250 = vld [vmem:[%s537] sm:$0x1]
        %v1251 = vld [vmem:[%s540] sm:$0x1]
        %v1252 = vld [vmem:[%s545] sm:$0xff]
        %v1253 = vld [vmem:[%s545 + $0x8] sm:$0xff]
        %v1254 = vld [vmem:[%s545 + $0x10] sm:$0xff]
        %v1255 = vld [vmem:[%s545 + $0x18] sm:$0xff]
        %v1256 = vld [vmem:[%s545 + $0x20] sm:$0xff]
        %v1257 = vld [vmem:[%s545 + $0x28] sm:$0xff]
        %v1258 = vld [vmem:[%s545 + $0x30] sm:$0xff]
        %v1259 = vld [vmem:[%s545 + $0x38] sm:$0xff]
        %v1260 = vld [vmem:[%s545 + $0x40] sm:$0xff]
        %v1261 = vld [vmem:[%s545 + $0x48] sm:$0xff]
        %v1262 = vld [vmem:[%s545 + $0x50] sm:$0xff]
        %v1263 = vld [vmem:[%s545 + $0x58] sm:$0xff]
        %v1264 = vld [vmem:[%s545 + $0x60] sm:$0xff]
        %v1265 = vld [vmem:[%s545 + $0x68] sm:$0xff]
        %v1266 = vld [vmem:[%s545 + $0x70] sm:$0xff]
        %v1267 = vld [vmem:[%s545 + $0x78] sm:$0xff]
        %v1268 = vlaneseq
        %v1269 = vshrl.u32 %v1268, 7
        %v1270 = vadd.s32 %v1269, 8
        %v1271 = vadd.s32 %v1269, 16
        %v1272 = vadd.s32 %v1269, 24
        %v1273 = vadd.s32 %v1269, 32
        %v1274 = vadd.s32 %v1269, 40
        %v1275 = vadd.s32 %v1269, 48
        %v1276 = vadd.s32 %v1269, 56
        %v1277 = vadd.s32 %v1269, 64
        %v1278 = vadd.s32 %v1269, 72
        %v1279 = vadd.s32 %v1269, 80
        %v1280 = vadd.s32 %v1269, 88
        %v1281 = vadd.s32 %v1269, 96
        %v1282 = vadd.s32 %v1269, 104
        %v1283 = vadd.s32 %v1269, 112
        %v1284 = vadd.s32 %v1269, 120
        %v1285 = vlaneseq
        %v1286 = vand.u32 %v1285, 127
        %v1287 = vlaneseq
        %v1288 = vshrl.u32 %v1287, 7
        %v1289 = vsub.s32 0, %v1288
        %v1290 = vrot.slane %v1250, %v1289
        %vm1291 = vcmp.eq.s32.totalorder %v1269, %v1290
        %vm1292 = vcmp.eq.s32.totalorder %v1270, %v1290
        %vm1293 = vcmp.eq.s32.totalorder %v1271, %v1290
        %vm1294 = vcmp.eq.s32.totalorder %v1272, %v1290
        %vm1295 = vcmp.eq.s32.totalorder %v1273, %v1290
        %vm1296 = vcmp.eq.s32.totalorder %v1274, %v1290
        %vm1297 = vcmp.eq.s32.totalorder %v1275, %v1290
        %vm1298 = vcmp.eq.s32.totalorder %v1276, %v1290
        %vm1299 = vcmp.eq.s32.totalorder %v1277, %v1290
        %vm1300 = vcmp.eq.s32.totalorder %v1278, %v1290
        %vm1301 = vcmp.eq.s32.totalorder %v1279, %v1290
        %vm1302 = vcmp.eq.s32.totalorder %v1280, %v1290
        %vm1303 = vcmp.eq.s32.totalorder %v1281, %v1290
        %vm1304 = vcmp.eq.s32.totalorder %v1282, %v1290
        %vm1305 = vcmp.eq.s32.totalorder %v1283, %v1290
        %vm1306 = vcmp.eq.s32.totalorder %v1284, %v1290
        %v1307 = vsel %vm1291, 1, 0
        %v1308 = vsel %vm1292, 1, 0
        %v1309 = vsel %vm1293, 1, 0
        %v1310 = vsel %vm1294, 1, 0
        %v1311 = vsel %vm1295, 1, 0
        %v1312 = vsel %vm1296, 1, 0
        %v1313 = vsel %vm1297, 1, 0
        %v1314 = vsel %vm1298, 1, 0
        %v1315 = vsel %vm1299, 1, 0
        %v1316 = vsel %vm1300, 1, 0
        %v1317 = vsel %vm1301, 1, 0
        %v1318 = vsel %vm1302, 1, 0
        %v1319 = vsel %vm1303, 1, 0
        %v1320 = vsel %vm1304, 1, 0
        %v1321 = vsel %vm1305, 1, 0
        %v1322 = vsel %vm1306, 1, 0
        %v1323 = vcvt.s32.f32 %v1307
        %v1324 = vcvt.s32.f32 %v1308
        %v1325 = vcvt.s32.f32 %v1309
        %v1326 = vcvt.s32.f32 %v1310
        %v1327 = vcvt.s32.f32 %v1311
        %v1328 = vcvt.s32.f32 %v1312
        %v1329 = vcvt.s32.f32 %v1313
        %v1330 = vcvt.s32.f32 %v1314
        %v1331 = vcvt.s32.f32 %v1315
        %v1332 = vcvt.s32.f32 %v1316
        %v1333 = vcvt.s32.f32 %v1317
        %v1334 = vcvt.s32.f32 %v1318
        %v1335 = vcvt.s32.f32 %v1319
        %v1336 = vcvt.s32.f32 %v1320
        %v1337 = vcvt.s32.f32 %v1321
        %v1338 = vcvt.s32.f32 %v1322
        %v1339 = vlaneseq
        %v1340 = vshrl.u32 %v1339, 7
        %v1341 = vsub.s32 0, %v1340
        %v1342 = vrot.slane %v1251, %v1341
        %vm1343 = vcmp.eq.s32.totalorder %v1269, %v1342
        %vm1344 = vcmp.eq.s32.totalorder %v1270, %v1342
        %vm1345 = vcmp.eq.s32.totalorder %v1271, %v1342
        %vm1346 = vcmp.eq.s32.totalorder %v1272, %v1342
        %vm1347 = vcmp.eq.s32.totalorder %v1273, %v1342
        %vm1348 = vcmp.eq.s32.totalorder %v1274, %v1342
        %vm1349 = vcmp.eq.s32.totalorder %v1275, %v1342
        %vm1350 = vcmp.eq.s32.totalorder %v1276, %v1342
        %vm1351 = vcmp.eq.s32.totalorder %v1277, %v1342
        %vm1352 = vcmp.eq.s32.totalorder %v1278, %v1342
        %vm1353 = vcmp.eq.s32.totalorder %v1279, %v1342
        %vm1354 = vcmp.eq.s32.totalorder %v1280, %v1342
        %vm1355 = vcmp.eq.s32.totalorder %v1281, %v1342
        %vm1356 = vcmp.eq.s32.totalorder %v1282, %v1342
        %vm1357 = vcmp.eq.s32.totalorder %v1283, %v1342
        %vm1358 = vcmp.eq.s32.totalorder %v1284, %v1342
        %v1359 = vsel %vm1343, 1, 0
        %v1360 = vsel %vm1344, 1, 0
        %v1361 = vsel %vm1345, 1, 0
        %v1362 = vsel %vm1346, 1, 0
        %v1363 = vsel %vm1347, 1, 0
        %v1364 = vsel %vm1348, 1, 0
        %v1365 = vsel %vm1349, 1, 0
        %v1366 = vsel %vm1350, 1, 0
        %v1367 = vsel %vm1351, 1, 0
        %v1368 = vsel %vm1352, 1, 0
        %v1369 = vsel %vm1353, 1, 0
        %v1370 = vsel %vm1354, 1, 0
        %v1371 = vsel %vm1355, 1, 0
        %v1372 = vsel %vm1356, 1, 0
        %v1373 = vsel %vm1357, 1, 0
        %v1374 = vsel %vm1358, 1, 0
        %v1375 = vcvt.s32.f32 %v1359
        %v1376 = vcvt.s32.f32 %v1360
        %v1377 = vcvt.s32.f32 %v1361
        %v1378 = vcvt.s32.f32 %v1362
        %v1379 = vcvt.s32.f32 %v1363
        %v1380 = vcvt.s32.f32 %v1364
        %v1381 = vcvt.s32.f32 %v1365
        %v1382 = vcvt.s32.f32 %v1366
        %v1383 = vcvt.s32.f32 %v1367
        %v1384 = vcvt.s32.f32 %v1368
        %v1385 = vcvt.s32.f32 %v1369
        %v1386 = vcvt.s32.f32 %v1370
        %v1387 = vcvt.s32.f32 %v1371
        %v1388 = vcvt.s32.f32 %v1372
        %v1389 = vcvt.s32.f32 %v1373
        %v1390 = vcvt.s32.f32 %v1374
        %1391 = vset.pattern.permute.xlu0 0
        %1392 = vperm.xlu0 %1391, %v1252
        %v1393 = vpop.permute.xlu0 %1392
        %1394 = vset.pattern.permute.xlu0 0
        %1395 = vperm.xlu0 %1394, %v1253
        %v1396 = vpop.permute.xlu0 %1395
        %1397 = vset.pattern.permute.xlu0 0
        %1398 = vperm.xlu0 %1397, %v1254
        %v1399 = vpop.permute.xlu0 %1398
        %1400 = vset.pattern.permute.xlu0 0
        %1401 = vperm.xlu0 %1400, %v1255
        %v1402 = vpop.permute.xlu0 %1401
        %1403 = vset.pattern.permute.xlu0 0
        %1404 = vperm.xlu0 %1403, %v1256
        %v1405 = vpop.permute.xlu0 %1404
        %1406 = vset.pattern.permute.xlu0 0
        %1407 = vperm.xlu0 %1406, %v1257
        %v1408 = vpop.permute.xlu0 %1407
        %1409 = vset.pattern.permute.xlu0 0
        %1410 = vperm.xlu0 %1409, %v1258
        %v1411 = vpop.permute.xlu0 %1410
        %1412 = vset.pattern.permute.xlu0 0
        %1413 = vperm.xlu0 %1412, %v1259
        %v1414 = vpop.permute.xlu0 %1413
        %1415 = vset.pattern.permute.xlu0 0
        %1416 = vperm.xlu0 %1415, %v1260
        %v1417 = vpop.permute.xlu0 %1416
        %1418 = vset.pattern.permute.xlu0 0
        %1419 = vperm.xlu0 %1418, %v1261
        %v1420 = vpop.permute.xlu0 %1419
        %1421 = vset.pattern.permute.xlu0 0
        %1422 = vperm.xlu0 %1421, %v1262
        %v1423 = vpop.permute.xlu0 %1422
        %1424 = vset.pattern.permute.xlu0 0
        %1425 = vperm.xlu0 %1424, %v1263
        %v1426 = vpop.permute.xlu0 %1425
        %1427 = vset.pattern.permute.xlu0 0
        %1428 = vperm.xlu0 %1427, %v1264
        %v1429 = vpop.permute.xlu0 %1428
        %1430 = vset.pattern.permute.xlu0 0
        %1431 = vperm.xlu0 %1430, %v1265
        %v1432 = vpop.permute.xlu0 %1431
        %1433 = vset.pattern.permute.xlu0 0
        %1434 = vperm.xlu0 %1433, %v1266
        %v1435 = vpop.permute.xlu0 %1434
        %1436 = vset.pattern.permute.xlu0 0
        %1437 = vperm.xlu0 %1436, %v1267
        %v1438 = vpop.permute.xlu0 %1437
        %vm1439 = vcmp.eq.s32.totalorder %v1286, %v1393
        %vm1440 = vcmp.eq.s32.totalorder %v1286, %v1396
        %vm1441 = vcmp.eq.s32.totalorder %v1286, %v1399
        %vm1442 = vcmp.eq.s32.totalorder %v1286, %v1402
        %vm1443 = vcmp.eq.s32.totalorder %v1286, %v1405
        %vm1444 = vcmp.eq.s32.totalorder %v1286, %v1408
        %vm1445 = vcmp.eq.s32.totalorder %v1286, %v1411
        %vm1446 = vcmp.eq.s32.totalorder %v1286, %v1414
        %vm1447 = vcmp.eq.s32.totalorder %v1286, %v1417
        %vm1448 = vcmp.eq.s32.totalorder %v1286, %v1420
        %vm1449 = vcmp.eq.s32.totalorder %v1286, %v1423
        %vm1450 = vcmp.eq.s32.totalorder %v1286, %v1426
        %vm1451 = vcmp.eq.s32.totalorder %v1286, %v1429
        %vm1452 = vcmp.eq.s32.totalorder %v1286, %v1432
        %vm1453 = vcmp.eq.s32.totalorder %v1286, %v1435
        %vm1454 = vcmp.eq.s32.totalorder %v1286, %v1438
        %v1455 = vsel %vm1439, 1, 0
        %v1456 = vsel %vm1440, 1, 0
        %v1457 = vsel %vm1441, 1, 0
        %v1458 = vsel %vm1442, 1, 0
        %v1459 = vsel %vm1443, 1, 0
        %v1460 = vsel %vm1444, 1, 0
        %v1461 = vsel %vm1445, 1, 0
        %v1462 = vsel %vm1446, 1, 0
        %v1463 = vsel %vm1447, 1, 0
        %v1464 = vsel %vm1448, 1, 0
        %v1465 = vsel %vm1449, 1, 0
        %v1466 = vsel %vm1450, 1, 0
        %v1467 = vsel %vm1451, 1, 0
        %v1468 = vsel %vm1452, 1, 0
        %v1469 = vsel %vm1453, 1, 0
        %v1470 = vsel %vm1454, 1, 0
        %v1471 = vcvt.s32.f32 %v1455
        %v1472 = vcvt.s32.f32 %v1456
        %v1473 = vcvt.s32.f32 %v1457
        %v1474 = vcvt.s32.f32 %v1458
        %v1475 = vcvt.s32.f32 %v1459
        %v1476 = vcvt.s32.f32 %v1460
        %v1477 = vcvt.s32.f32 %v1461
        %v1478 = vcvt.s32.f32 %v1462
        %v1479 = vcvt.s32.f32 %v1463
        %v1480 = vcvt.s32.f32 %v1464
        %v1481 = vcvt.s32.f32 %v1465
        %v1482 = vcvt.s32.f32 %v1466
        %v1483 = vcvt.s32.f32 %v1467
        %v1484 = vcvt.s32.f32 %v1468
        %v1485 = vcvt.s32.f32 %v1469
        %v1486 = vcvt.s32.f32 %v1470
        %v1487 = vld [vmem:[#allocation2] sm:$0xff]
        %v1488 = vld [vmem:[#allocation3] sm:$0xff]
        %1489 = vmatprep.subr.mxu0 0.0
        %1490 = vmatpush1.msra.mxu0 %v1375
        %1491 = vmatprep.subr.mxu0 0.0
        %1492 = vmatpush1.msra.mxu0 %v1376
        %1493 = vmatprep.subr.mxu0 0.0
        %1494 = vmatpush1.msra.mxu0 %v1377
        %1495 = vmatprep.subr.mxu0 0.0
        %1496 = vmatpush1.msra.mxu0 %v1378
        %1497 = vmatprep.subr.mxu0 0.0
        %1498 = vmatpush1.msra.mxu0 %v1379
        %1499 = vmatprep.subr.mxu0 0.0
        %1500 = vmatpush1.msra.mxu0 %v1380
        %1501 = vmatprep.subr.mxu0 0.0
        %1502 = vmatpush1.msra.mxu0 %v1381
        %1503 = vmatprep.subr.mxu0 0.0
        %1504 = vmatpush1.msra.mxu0 %v1382
        %1505 = vmatprep.subr.mxu0 0.0
        %1506 = vmatpush1.msra.mxu0 %v1383
        %1507 = vmatprep.subr.mxu0 0.0
        %1508 = vmatpush1.msra.mxu0 %v1384
        %1509 = vmatprep.subr.mxu0 0.0
        %1510 = vmatpush1.msra.mxu0 %v1385
        %1511 = vmatprep.subr.mxu0 0.0
        %1512 = vmatpush1.msra.mxu0 %v1386
        %1513 = vmatprep.subr.mxu0 0.0
        %1514 = vmatpush1.msra.mxu0 %v1387
        %1515 = vmatprep.subr.mxu0 0.0
        %1516 = vmatpush1.msra.mxu0 %v1388
        %1517 = vmatprep.subr.mxu0 0.0
        %1518 = vmatpush1.msra.mxu0 %v1389
        %1519 = vmatprep.subr.mxu0 0.0
        %1520 = vmatpush1.msra.mxu0 %v1390
        %1521 = vmatprep.subr.mxu0 0.0
        %1522 = vmatpush1.msra.mxu0 0.0
        %1523 = vmatprep.subr.mxu0 0.0
        %1524 = vmatpush1.msra.mxu0 0.0
        %1525 = vmatprep.subr.mxu0 0.0
        %1526 = vmatpush1.msra.mxu0 0.0
        %1527 = vmatprep.subr.mxu0 0.0
        %1528 = vmatpush1.msra.mxu0 0.0
        %1529 = vmatprep.subr.mxu0 0.0
        %1530 = vmatpush1.msra.mxu0 0.0
        %1531 = vmatprep.subr.mxu0 0.0
        %1532 = vmatpush1.msra.mxu0 0.0
        %1533 = vmatprep.subr.mxu0 0.0
        %1534 = vmatpush1.msra.mxu0 0.0
        %1535 = vmatprep.subr.mxu0 0.0
        %1536 = vmatpush1.msra.mxu0 0.0
        %1537 = vmatprep.subr.mxu0 0.0
        %1538 = vmatpush1.msra.mxu0 0.0
        %1539 = vmatprep.subr.mxu0 0.0
        %1540 = vmatpush1.msra.mxu0 0.0
        %1541 = vmatprep.subr.mxu0 0.0
        %1542 = vmatpush1.msra.mxu0 0.0
        %1543 = vmatprep.subr.mxu0 0.0
        %1544 = vmatpush1.msra.mxu0 0.0
        %1545 = vmatprep.subr.mxu0 0.0
        %1546 = vmatpush1.msra.mxu0 0.0
        %1547 = vmatprep.subr.mxu0 0.0
        %1548 = vmatpush1.msra.mxu0 0.0
        %1549 = vmatprep.subr.mxu0 0.0
        %1550 = vmatpush1.msra.mxu0 0.0
        %1551 = vmatprep.subr.mxu0 0.0
        %1552 = vmatpush1.msra.mxu0 0.0
        %1553 = vmatprep.mubr.f32.mxu0 0.0
        %1554 = vmatmul.mubr.f32.gmra.mrb[0].mxu0 %v1488
        %v1555 = vpop.f32.mrb[0].mxu0
        %v1556 = vadd.f32 0.0, %v1555
        %v1557 = vpop.f32.mrb[0].mxu0
        %1558 = vdwg.mxu0
        %1559 = vmatprep.subr.mxu0 0.0
        %1560 = vmatpush1.msra.mxu0 %v1323
        %1561 = vmatprep.subr.mxu0 0.0
        %1562 = vmatpush1.msra.mxu0 %v1324
        %1563 = vmatprep.subr.mxu0 0.0
        %1564 = vmatpush1.msra.mxu0 %v1325
        %1565 = vmatprep.subr.mxu0 0.0
        %1566 = vmatpush1.msra.mxu0 %v1326
        %1567 = vmatprep.subr.mxu0 0.0
        %1568 = vmatpush1.msra.mxu0 %v1327
        %1569 = vmatprep.subr.mxu0 0.0
        %1570 = vmatpush1.msra.mxu0 %v1328
        %1571 = vmatprep.subr.mxu0 0.0
        %1572 = vmatpush1.msra.mxu0 %v1329
        %1573 = vmatprep.subr.mxu0 0.0
        %1574 = vmatpush1.msra.mxu0 %v1330
        %1575 = vmatprep.subr.mxu0 0.0
        %1576 = vmatpush1.msra.mxu0 %v1331
        %1577 = vmatprep.subr.mxu0 0.0
        %1578 = vmatpush1.msra.mxu0 %v1332
        %1579 = vmatprep.subr.mxu0 0.0
        %1580 = vmatpush1.msra.mxu0 %v1333
        %1581 = vmatprep.subr.mxu0 0.0
        %1582 = vmatpush1.msra.mxu0 %v1334
        %1583 = vmatprep.subr.mxu0 0.0
        %1584 = vmatpush1.msra.mxu0 %v1335
        %1585 = vmatprep.subr.mxu0 0.0
        %1586 = vmatpush1.msra.mxu0 %v1336
        %1587 = vmatprep.subr.mxu0 0.0
        %1588 = vmatpush1.msra.mxu0 %v1337
        %1589 = vmatprep.subr.mxu0 0.0
        %1590 = vmatpush1.msra.mxu0 %v1338
        %1591 = vmatprep.subr.mxu0 0.0
        %1592 = vmatpush1.msra.mxu0 0.0
        %1593 = vmatprep.subr.mxu0 0.0
        %1594 = vmatpush1.msra.mxu0 0.0
        %1595 = vmatprep.subr.mxu0 0.0
        %1596 = vmatpush1.msra.mxu0 0.0
        %1597 = vmatprep.subr.mxu0 0.0
        %1598 = vmatpush1.msra.mxu0 0.0
        %1599 = vmatprep.subr.mxu0 0.0
        %1600 = vmatpush1.msra.mxu0 0.0
        %1601 = vmatprep.subr.mxu0 0.0
        %1602 = vmatpush1.msra.mxu0 0.0
        %1603 = vmatprep.subr.mxu0 0.0
        %1604 = vmatpush1.msra.mxu0 0.0
        %1605 = vmatprep.subr.mxu0 0.0
        %1606 = vmatpush1.msra.mxu0 0.0
        %1607 = vmatprep.subr.mxu0 0.0
        %1608 = vmatpush1.msra.mxu0 0.0
        %1609 = vmatprep.subr.mxu0 0.0
        %1610 = vmatpush1.msra.mxu0 0.0
        %1611 = vmatprep.subr.mxu0 0.0
        %1612 = vmatpush1.msra.mxu0 0.0
        %1613 = vmatprep.subr.mxu0 0.0
        %1614 = vmatpush1.msra.mxu0 0.0
        %1615 = vmatprep.subr.mxu0 0.0
        %1616 = vmatpush1.msra.mxu0 0.0
        %1617 = vmatprep.subr.mxu0 0.0
        %1618 = vmatpush1.msra.mxu0 0.0
        %1619 = vmatprep.subr.mxu0 0.0
        %1620 = vmatpush1.msra.mxu0 0.0
        %1621 = vmatprep.subr.mxu0 0.0
        %1622 = vmatpush1.msra.mxu0 0.0
        %1623 = vmatprep.mubr.f32.mxu0 0.0
        %1624 = vmatmul.mubr.f32.gmra.mrb[0].mxu0 %v1487
        %v1625 = vpop.f32.mrb[0].mxu0
        %v1626 = vadd.f32 %v1247, %v1625
        %v1627 = vpop.f32.mrb[0].mxu0
        %1628 = vdwg.mxu0
        %v1629 = vadd.f32 %v1626, %v1556
        %vm1630 = vcmp.gt.f32.partialorder %v1629, 0.0
        %v1631 = vmul.f32 %v1629, 0.2
        %v1632 = vsel %vm1630, %v1629, %v1631
        %vm1633 = vcmp.gt.f32.partialorder %v1375, 0.0
        %vm1634 = vcmp.gt.f32.partialorder %v1376, 0.0
        %vm1635 = vcmp.gt.f32.partialorder %v1377, 0.0
        %vm1636 = vcmp.gt.f32.partialorder %v1378, 0.0
        %vm1637 = vcmp.gt.f32.partialorder %v1379, 0.0
        %vm1638 = vcmp.gt.f32.partialorder %v1380, 0.0
        %vm1639 = vcmp.gt.f32.partialorder %v1381, 0.0
        %vm1640 = vcmp.gt.f32.partialorder %v1382, 0.0
        %vm1641 = vcmp.gt.f32.partialorder %v1383, 0.0
        %vm1642 = vcmp.gt.f32.partialorder %v1384, 0.0
        %vm1643 = vcmp.gt.f32.partialorder %v1385, 0.0
        %vm1644 = vcmp.gt.f32.partialorder %v1386, 0.0
        %vm1645 = vcmp.gt.f32.partialorder %v1387, 0.0
        %vm1646 = vcmp.gt.f32.partialorder %v1388, 0.0
        %vm1647 = vcmp.gt.f32.partialorder %v1389, 0.0
        %vm1648 = vcmp.gt.f32.partialorder %v1390, 0.0
        %v1649 = vsel %vm1633, 0.0, -1e+30
        %v1650 = vsel %vm1634, 0.0, -1e+30
        %v1651 = vsel %vm1635, 0.0, -1e+30
        %v1652 = vsel %vm1636, 0.0, -1e+30
        %v1653 = vsel %vm1637, 0.0, -1e+30
        %v1654 = vsel %vm1638, 0.0, -1e+30
        %v1655 = vsel %vm1639, 0.0, -1e+30
        %v1656 = vsel %vm1640, 0.0, -1e+30
        %v1657 = vsel %vm1641, 0.0, -1e+30
        %v1658 = vsel %vm1642, 0.0, -1e+30
        %v1659 = vsel %vm1643, 0.0, -1e+30
        %v1660 = vsel %vm1644, 0.0, -1e+30
        %v1661 = vsel %vm1645, 0.0, -1e+30
        %v1662 = vsel %vm1646, 0.0, -1e+30
        %v1663 = vsel %vm1647, 0.0, -1e+30
        %v1664 = vsel %vm1648, 0.0, -1e+30
        %v1666 = vcombine.high %v1632, %v1632
        %v1668 = vunpack.c.l.s4 1966171168
        %v1669 = vunpack.c.0.s8 %v1668
        %v1670 = vlaneseq
        %v1671 = vshrl.u32 %v1670, 7
        %v1672 = vsub.s32 %v1669, %v1671
        %v1673 = vrot.slane %v1632, %v1672
        %v1675 = vunpack.c.l.s4 1966171168
        %v1676 = vunpack.c.0.s8 %v1675
        %v1677 = vlaneseq
        %v1678 = vshrl.u32 %v1677, 7
        %v1679 = vsub.s32 %v1676, %v1678
        %v1680 = vrot.slane %v1666, %v1679
        %v1681 = vcombine.high %v1673, %v1673
        %v1682 = vcombine.high %v1680, %v1680
        %v1684 = vunpack.c.l.s4 1966171168
        %v1685 = vunpack.c.0.s8 %v1684
        %v1686 = vlaneseq
        %v1687 = vshrl.u32 %v1686, 7
        %v1688 = vsub.s32 %v1685, %v1687
        %v1689 = vrot.slane %v1673, %v1688
        %v1691 = vunpack.c.l.s4 1966171168
        %v1692 = vunpack.c.0.s8 %v1691
        %v1693 = vlaneseq
        %v1694 = vshrl.u32 %v1693, 7
        %v1695 = vsub.s32 %v1692, %v1694
        %v1696 = vrot.slane %v1680, %v1695
        %v1698 = vunpack.c.l.s4 1966171168
        %v1699 = vunpack.c.0.s8 %v1698
        %v1700 = vlaneseq
        %v1701 = vshrl.u32 %v1700, 7
        %v1702 = vsub.s32 %v1699, %v1701
        %v1703 = vrot.slane %v1681, %v1702
        %v1705 = vunpack.c.l.s4 1966171168
        %v1706 = vunpack.c.0.s8 %v1705
        %v1707 = vlaneseq
        %v1708 = vshrl.u32 %v1707, 7
        %v1709 = vsub.s32 %v1706, %v1708
        %v1710 = vrot.slane %v1682, %v1709
        %v1711 = vcombine.high %v1689, %v1689
        %v1712 = vcombine.high %v1696, %v1696
        %v1713 = vcombine.high %v1703, %v1703
        %v1714 = vcombine.high %v1710, %v1710
        %v1715 = vlaneseq
        %v1716 = vshrl.u32 %v1715, 7
        %v1717 = vsub.s32 0, %v1716
        %v1718 = vrot.slane %v1689, %v1717
        %v1719 = vlaneseq
        %v1720 = vshrl.u32 %v1719, 7
        %v1721 = vsub.s32 0, %v1720
        %v1722 = vrot.slane %v1703, %v1721
        %v1723 = vlaneseq
        %v1724 = vshrl.u32 %v1723, 7
        %v1725 = vsub.s32 0, %v1724
        %v1726 = vrot.slane %v1711, %v1725
        %v1727 = vlaneseq
        %v1728 = vshrl.u32 %v1727, 7
        %v1729 = vsub.s32 0, %v1728
        %v1730 = vrot.slane %v1713, %v1729
        %v1731 = vlaneseq
        %v1732 = vshrl.u32 %v1731, 7
        %v1733 = vsub.s32 0, %v1732
        %v1734 = vrot.slane %v1696, %v1733
        %v1735 = vlaneseq
        %v1736 = vshrl.u32 %v1735, 7
        %v1737 = vsub.s32 0, %v1736
        %v1738 = vrot.slane %v1710, %v1737
        %v1739 = vlaneseq
        %v1740 = vshrl.u32 %v1739, 7
        %v1741 = vsub.s32 0, %v1740
        %v1742 = vrot.slane %v1712, %v1741
        %v1743 = vlaneseq
        %v1744 = vshrl.u32 %v1743, 7
        %v1745 = vsub.s32 0, %v1744
        %v1746 = vrot.slane %v1714, %v1745
        %v1755 = vadd.f32 %v1718, %v1649
        %v1756 = vadd.f32 %v1718, %v1650
        %v1757 = vadd.f32 %v1718, %v1651
        %v1758 = vadd.f32 %v1718, %v1652
        %v1759 = vadd.f32 %v1718, %v1653
        %v1760 = vadd.f32 %v1718, %v1654
        %v1761 = vadd.f32 %v1718, %v1655
        %v1762 = vadd.f32 %v1718, %v1656
        %v1763 = vadd.f32 %v1718, %v1657
        %v1764 = vadd.f32 %v1718, %v1658
        %v1765 = vadd.f32 %v1718, %v1659
        %v1766 = vadd.f32 %v1718, %v1660
        %v1767 = vadd.f32 %v1718, %v1661
        %v1768 = vadd.f32 %v1718, %v1662
        %v1769 = vadd.f32 %v1718, %v1663
        %v1770 = vadd.f32 %v1718, %v1664
        %v1771 = vadd.f32 %v1722, %v1649
        %v1772 = vadd.f32 %v1722, %v1650
        %v1773 = vadd.f32 %v1722, %v1651
        %v1774 = vadd.f32 %v1722, %v1652
        %v1775 = vadd.f32 %v1722, %v1653
        %v1776 = vadd.f32 %v1722, %v1654
        %v1777 = vadd.f32 %v1722, %v1655
        %v1778 = vadd.f32 %v1722, %v1656
        %v1779 = vadd.f32 %v1722, %v1657
        %v1780 = vadd.f32 %v1722, %v1658
        %v1781 = vadd.f32 %v1722, %v1659
        %v1782 = vadd.f32 %v1722, %v1660
        %v1783 = vadd.f32 %v1722, %v1661
        %v1784 = vadd.f32 %v1722, %v1662
        %v1785 = vadd.f32 %v1722, %v1663
        %v1786 = vadd.f32 %v1722, %v1664
        %v1787 = vadd.f32 %v1726, %v1649
        %v1788 = vadd.f32 %v1726, %v1650
        %v1789 = vadd.f32 %v1726, %v1651
        %v1790 = vadd.f32 %v1726, %v1652
        %v1791 = vadd.f32 %v1726, %v1653
        %v1792 = vadd.f32 %v1726, %v1654
        %v1793 = vadd.f32 %v1726, %v1655
        %v1794 = vadd.f32 %v1726, %v1656
        %v1795 = vadd.f32 %v1726, %v1657
        %v1796 = vadd.f32 %v1726, %v1658
        %v1797 = vadd.f32 %v1726, %v1659
        %v1798 = vadd.f32 %v1726, %v1660
        %v1799 = vadd.f32 %v1726, %v1661
        %v1800 = vadd.f32 %v1726, %v1662
        %v1801 = vadd.f32 %v1726, %v1663
        %v1802 = vadd.f32 %v1726, %v1664
        %v1803 = vadd.f32 %v1730, %v1649
        %v1804 = vadd.f32 %v1730, %v1650
        %v1805 = vadd.f32 %v1730, %v1651
        %v1806 = vadd.f32 %v1730, %v1652
        %v1807 = vadd.f32 %v1730, %v1653
        %v1808 = vadd.f32 %v1730, %v1654
        %v1809 = vadd.f32 %v1730, %v1655
        %v1810 = vadd.f32 %v1730, %v1656
        %v1811 = vadd.f32 %v1730, %v1657
        %v1812 = vadd.f32 %v1730, %v1658
        %v1813 = vadd.f32 %v1730, %v1659
        %v1814 = vadd.f32 %v1730, %v1660
        %v1815 = vadd.f32 %v1730, %v1661
        %v1816 = vadd.f32 %v1730, %v1662
        %v1817 = vadd.f32 %v1730, %v1663
        %v1818 = vadd.f32 %v1730, %v1664
        %v1819 = vadd.f32 %v1734, %v1649
        %v1820 = vadd.f32 %v1734, %v1650
        %v1821 = vadd.f32 %v1734, %v1651
        %v1822 = vadd.f32 %v1734, %v1652
        %v1823 = vadd.f32 %v1734, %v1653
        %v1824 = vadd.f32 %v1734, %v1654
        %v1825 = vadd.f32 %v1734, %v1655
        %v1826 = vadd.f32 %v1734, %v1656
        %v1827 = vadd.f32 %v1734, %v1657
        %v1828 = vadd.f32 %v1734, %v1658
        %v1829 = vadd.f32 %v1734, %v1659
        %v1830 = vadd.f32 %v1734, %v1660
        %v1831 = vadd.f32 %v1734, %v1661
        %v1832 = vadd.f32 %v1734, %v1662
        %v1833 = vadd.f32 %v1734, %v1663
        %v1834 = vadd.f32 %v1734, %v1664
        %v1835 = vadd.f32 %v1738, %v1649
        %v1836 = vadd.f32 %v1738, %v1650
        %v1837 = vadd.f32 %v1738, %v1651
        %v1838 = vadd.f32 %v1738, %v1652
        %v1839 = vadd.f32 %v1738, %v1653
        %v1840 = vadd.f32 %v1738, %v1654
        %v1841 = vadd.f32 %v1738, %v1655
        %v1842 = vadd.f32 %v1738, %v1656
        %v1843 = vadd.f32 %v1738, %v1657
        %v1844 = vadd.f32 %v1738, %v1658
        %v1845 = vadd.f32 %v1738, %v1659
        %v1846 = vadd.f32 %v1738, %v1660
        %v1847 = vadd.f32 %v1738, %v1661
        %v1848 = vadd.f32 %v1738, %v1662
        %v1849 = vadd.f32 %v1738, %v1663
        %v1850 = vadd.f32 %v1738, %v1664
        %v1851 = vadd.f32 %v1742, %v1649
        %v1852 = vadd.f32 %v1742, %v1650
        %v1853 = vadd.f32 %v1742, %v1651
        %v1854 = vadd.f32 %v1742, %v1652
        %v1855 = vadd.f32 %v1742, %v1653
        %v1856 = vadd.f32 %v1742, %v1654
        %v1857 = vadd.f32 %v1742, %v1655
        %v1858 = vadd.f32 %v1742, %v1656
        %v1859 = vadd.f32 %v1742, %v1657
        %v1860 = vadd.f32 %v1742, %v1658
        %v1861 = vadd.f32 %v1742, %v1659
        %v1862 = vadd.f32 %v1742, %v1660
        %v1863 = vadd.f32 %v1742, %v1661
        %v1864 = vadd.f32 %v1742, %v1662
        %v1865 = vadd.f32 %v1742, %v1663
        %v1866 = vadd.f32 %v1742, %v1664
        %v1867 = vadd.f32 %v1746, %v1649
        %v1868 = vadd.f32 %v1746, %v1650
        %v1869 = vadd.f32 %v1746, %v1651
        %v1870 = vadd.f32 %v1746, %v1652
        %v1871 = vadd.f32 %v1746, %v1653
        %v1872 = vadd.f32 %v1746, %v1654
        %v1873 = vadd.f32 %v1746, %v1655
        %v1874 = vadd.f32 %v1746, %v1656
        %v1875 = vadd.f32 %v1746, %v1657
        %v1876 = vadd.f32 %v1746, %v1658
        %v1877 = vadd.f32 %v1746, %v1659
        %v1878 = vadd.f32 %v1746, %v1660
        %v1879 = vadd.f32 %v1746, %v1661
        %v1880 = vadd.f32 %v1746, %v1662
        %v1881 = vadd.f32 %v1746, %v1663
        %v1882 = vadd.f32 %v1746, %v1664
        %1883 = vmax.xlane.f32.xlu0 %v1755
        %v1884 = vpop.xlane.xlu0 %1883
        %1885 = vmax.xlane.f32.xlu0 %v1756
        %v1886 = vpop.xlane.xlu0 %1885
        %1887 = vmax.xlane.f32.xlu0 %v1757
        %v1888 = vpop.xlane.xlu0 %1887
        %1889 = vmax.xlane.f32.xlu0 %v1758
        %v1890 = vpop.xlane.xlu0 %1889
        %1891 = vmax.xlane.f32.xlu0 %v1759
        %v1892 = vpop.xlane.xlu0 %1891
        %1893 = vmax.xlane.f32.xlu0 %v1760
        %v1894 = vpop.xlane.xlu0 %1893
        %1895 = vmax.xlane.f32.xlu0 %v1761
        %v1896 = vpop.xlane.xlu0 %1895
        %1897 = vmax.xlane.f32.xlu0 %v1762
        %v1898 = vpop.xlane.xlu0 %1897
        %1899 = vmax.xlane.f32.xlu0 %v1763
        %v1900 = vpop.xlane.xlu0 %1899
        %1901 = vmax.xlane.f32.xlu0 %v1764
        %v1902 = vpop.xlane.xlu0 %1901
        %1903 = vmax.xlane.f32.xlu0 %v1765
        %v1904 = vpop.xlane.xlu0 %1903
        %1905 = vmax.xlane.f32.xlu0 %v1766
        %v1906 = vpop.xlane.xlu0 %1905
        %1907 = vmax.xlane.f32.xlu0 %v1767
        %v1908 = vpop.xlane.xlu0 %1907
        %1909 = vmax.xlane.f32.xlu0 %v1768
        %v1910 = vpop.xlane.xlu0 %1909
        %1911 = vmax.xlane.f32.xlu0 %v1769
        %v1912 = vpop.xlane.xlu0 %1911
        %1913 = vmax.xlane.f32.xlu0 %v1770
        %v1914 = vpop.xlane.xlu0 %1913
        %1915 = vmax.xlane.f32.xlu0 %v1771
        %v1916 = vpop.xlane.xlu0 %1915
        %1917 = vmax.xlane.f32.xlu0 %v1772
        %v1918 = vpop.xlane.xlu0 %1917
        %1919 = vmax.xlane.f32.xlu0 %v1773
        %v1920 = vpop.xlane.xlu0 %1919
        %1921 = vmax.xlane.f32.xlu0 %v1774
        %v1922 = vpop.xlane.xlu0 %1921
        %1923 = vmax.xlane.f32.xlu0 %v1775
        %v1924 = vpop.xlane.xlu0 %1923
        %1925 = vmax.xlane.f32.xlu0 %v1776
        %v1926 = vpop.xlane.xlu0 %1925
        %1927 = vmax.xlane.f32.xlu0 %v1777
        %v1928 = vpop.xlane.xlu0 %1927
        %1929 = vmax.xlane.f32.xlu0 %v1778
        %v1930 = vpop.xlane.xlu0 %1929
        %1931 = vmax.xlane.f32.xlu0 %v1779
        %v1932 = vpop.xlane.xlu0 %1931
        %1933 = vmax.xlane.f32.xlu0 %v1780
        %v1934 = vpop.xlane.xlu0 %1933
        %1935 = vmax.xlane.f32.xlu0 %v1781
        %v1936 = vpop.xlane.xlu0 %1935
        %1937 = vmax.xlane.f32.xlu0 %v1782
        %v1938 = vpop.xlane.xlu0 %1937
        %1939 = vmax.xlane.f32.xlu0 %v1783
        %v1940 = vpop.xlane.xlu0 %1939
        %1941 = vmax.xlane.f32.xlu0 %v1784
        %v1942 = vpop.xlane.xlu0 %1941
        %1943 = vmax.xlane.f32.xlu0 %v1785
        %v1944 = vpop.xlane.xlu0 %1943
        %1945 = vmax.xlane.f32.xlu0 %v1786
        %v1946 = vpop.xlane.xlu0 %1945
        %1947 = vmax.xlane.f32.xlu0 %v1787
        %v1948 = vpop.xlane.xlu0 %1947
        %1949 = vmax.xlane.f32.xlu0 %v1788
        %v1950 = vpop.xlane.xlu0 %1949
        %1951 = vmax.xlane.f32.xlu0 %v1789
        %v1952 = vpop.xlane.xlu0 %1951
        %1953 = vmax.xlane.f32.xlu0 %v1790
        %v1954 = vpop.xlane.xlu0 %1953
        %1955 = vmax.xlane.f32.xlu0 %v1791
        %v1956 = vpop.xlane.xlu0 %1955
        %1957 = vmax.xlane.f32.xlu0 %v1792
        %v1958 = vpop.xlane.xlu0 %1957
        %1959 = vmax.xlane.f32.xlu0 %v1793
        %v1960 = vpop.xlane.xlu0 %1959
        %1961 = vmax.xlane.f32.xlu0 %v1794
        %v1962 = vpop.xlane.xlu0 %1961
        %1963 = vmax.xlane.f32.xlu0 %v1795
        %v1964 = vpop.xlane.xlu0 %1963
        %1965 = vmax.xlane.f32.xlu0 %v1796
        %v1966 = vpop.xlane.xlu0 %1965
        %1967 = vmax.xlane.f32.xlu0 %v1797
        %v1968 = vpop.xlane.xlu0 %1967
        %1969 = vmax.xlane.f32.xlu0 %v1798
        %v1970 = vpop.xlane.xlu0 %1969
        %1971 = vmax.xlane.f32.xlu0 %v1799
        %v1972 = vpop.xlane.xlu0 %1971
        %1973 = vmax.xlane.f32.xlu0 %v1800
        %v1974 = vpop.xlane.xlu0 %1973
        %1975 = vmax.xlane.f32.xlu0 %v1801
        %v1976 = vpop.xlane.xlu0 %1975
        %1977 = vmax.xlane.f32.xlu0 %v1802
        %v1978 = vpop.xlane.xlu0 %1977
        %1979 = vmax.xlane.f32.xlu0 %v1803
        %v1980 = vpop.xlane.xlu0 %1979
        %1981 = vmax.xlane.f32.xlu0 %v1804
        %v1982 = vpop.xlane.xlu0 %1981
        %1983 = vmax.xlane.f32.xlu0 %v1805
        %v1984 = vpop.xlane.xlu0 %1983
        %1985 = vmax.xlane.f32.xlu0 %v1806
        %v1986 = vpop.xlane.xlu0 %1985
        %1987 = vmax.xlane.f32.xlu0 %v1807
        %v1988 = vpop.xlane.xlu0 %1987
        %1989 = vmax.xlane.f32.xlu0 %v1808
        %v1990 = vpop.xlane.xlu0 %1989
        %1991 = vmax.xlane.f32.xlu0 %v1809
        %v1992 = vpop.xlane.xlu0 %1991
        %1993 = vmax.xlane.f32.xlu0 %v1810
        %v1994 = vpop.xlane.xlu0 %1993
        %1995 = vmax.xlane.f32.xlu0 %v1811
        %v1996 = vpop.xlane.xlu0 %1995
        %1997 = vmax.xlane.f32.xlu0 %v1812
        %v1998 = vpop.xlane.xlu0 %1997
        %1999 = vmax.xlane.f32.xlu0 %v1813
        %v2000 = vpop.xlane.xlu0 %1999
        %2001 = vmax.xlane.f32.xlu0 %v1814
        %v2002 = vpop.xlane.xlu0 %2001
        %2003 = vmax.xlane.f32.xlu0 %v1815
        %v2004 = vpop.xlane.xlu0 %2003
        %2005 = vmax.xlane.f32.xlu0 %v1816
        %v2006 = vpop.xlane.xlu0 %2005
        %2007 = vmax.xlane.f32.xlu0 %v1817
        %v2008 = vpop.xlane.xlu0 %2007
        %2009 = vmax.xlane.f32.xlu0 %v1818
        %v2010 = vpop.xlane.xlu0 %2009
        %2011 = vmax.xlane.f32.xlu0 %v1819
        %v2012 = vpop.xlane.xlu0 %2011
        %2013 = vmax.xlane.f32.xlu0 %v1820
        %v2014 = vpop.xlane.xlu0 %2013
        %2015 = vmax.xlane.f32.xlu0 %v1821
        %v2016 = vpop.xlane.xlu0 %2015
        %2017 = vmax.xlane.f32.xlu0 %v1822
        %v2018 = vpop.xlane.xlu0 %2017
        %2019 = vmax.xlane.f32.xlu0 %v1823
        %v2020 = vpop.xlane.xlu0 %2019
        %2021 = vmax.xlane.f32.xlu0 %v1824
        %v2022 = vpop.xlane.xlu0 %2021
        %2023 = vmax.xlane.f32.xlu0 %v1825
        %v2024 = vpop.xlane.xlu0 %2023
        %2025 = vmax.xlane.f32.xlu0 %v1826
        %v2026 = vpop.xlane.xlu0 %2025
        %2027 = vmax.xlane.f32.xlu0 %v1827
        %v2028 = vpop.xlane.xlu0 %2027
        %2029 = vmax.xlane.f32.xlu0 %v1828
        %v2030 = vpop.xlane.xlu0 %2029
        %2031 = vmax.xlane.f32.xlu0 %v1829
        %v2032 = vpop.xlane.xlu0 %2031
        %2033 = vmax.xlane.f32.xlu0 %v1830
        %v2034 = vpop.xlane.xlu0 %2033
        %2035 = vmax.xlane.f32.xlu0 %v1831
        %v2036 = vpop.xlane.xlu0 %2035
        %2037 = vmax.xlane.f32.xlu0 %v1832
        %v2038 = vpop.xlane.xlu0 %2037
        %2039 = vmax.xlane.f32.xlu0 %v1833
        %v2040 = vpop.xlane.xlu0 %2039
        %2041 = vmax.xlane.f32.xlu0 %v1834
        %v2042 = vpop.xlane.xlu0 %2041
        %2043 = vmax.xlane.f32.xlu0 %v1835
        %v2044 = vpop.xlane.xlu0 %2043
        %2045 = vmax.xlane.f32.xlu0 %v1836
        %v2046 = vpop.xlane.xlu0 %2045
        %2047 = vmax.xlane.f32.xlu0 %v1837
        %v2048 = vpop.xlane.xlu0 %2047
        %2049 = vmax.xlane.f32.xlu0 %v1838
        %v2050 = vpop.xlane.xlu0 %2049
        %2051 = vmax.xlane.f32.xlu0 %v1839
        %v2052 = vpop.xlane.xlu0 %2051
        %2053 = vmax.xlane.f32.xlu0 %v1840
        %v2054 = vpop.xlane.xlu0 %2053
        %2055 = vmax.xlane.f32.xlu0 %v1841
        %v2056 = vpop.xlane.xlu0 %2055
        %2057 = vmax.xlane.f32.xlu0 %v1842
        %v2058 = vpop.xlane.xlu0 %2057
        %2059 = vmax.xlane.f32.xlu0 %v1843
        %v2060 = vpop.xlane.xlu0 %2059
        %2061 = vmax.xlane.f32.xlu0 %v1844
        %v2062 = vpop.xlane.xlu0 %2061
        %2063 = vmax.xlane.f32.xlu0 %v1845
        %v2064 = vpop.xlane.xlu0 %2063
        %2065 = vmax.xlane.f32.xlu0 %v1846
        %v2066 = vpop.xlane.xlu0 %2065
        %2067 = vmax.xlane.f32.xlu0 %v1847
        %v2068 = vpop.xlane.xlu0 %2067
        %2069 = vmax.xlane.f32.xlu0 %v1848
        %v2070 = vpop.xlane.xlu0 %2069
        %2071 = vmax.xlane.f32.xlu0 %v1849
        %v2072 = vpop.xlane.xlu0 %2071
        %2073 = vmax.xlane.f32.xlu0 %v1850
        %v2074 = vpop.xlane.xlu0 %2073
        %2075 = vmax.xlane.f32.xlu0 %v1851
        %v2076 = vpop.xlane.xlu0 %2075
        %2077 = vmax.xlane.f32.xlu0 %v1852
        %v2078 = vpop.xlane.xlu0 %2077
        %2079 = vmax.xlane.f32.xlu0 %v1853
        %v2080 = vpop.xlane.xlu0 %2079
        %2081 = vmax.xlane.f32.xlu0 %v1854
        %v2082 = vpop.xlane.xlu0 %2081
        %2083 = vmax.xlane.f32.xlu0 %v1855
        %v2084 = vpop.xlane.xlu0 %2083
        %2085 = vmax.xlane.f32.xlu0 %v1856
        %v2086 = vpop.xlane.xlu0 %2085
        %2087 = vmax.xlane.f32.xlu0 %v1857
        %v2088 = vpop.xlane.xlu0 %2087
        %2089 = vmax.xlane.f32.xlu0 %v1858
        %v2090 = vpop.xlane.xlu0 %2089
        %2091 = vmax.xlane.f32.xlu0 %v1859
        %v2092 = vpop.xlane.xlu0 %2091
        %2093 = vmax.xlane.f32.xlu0 %v1860
        %v2094 = vpop.xlane.xlu0 %2093
        %2095 = vmax.xlane.f32.xlu0 %v1861
        %v2096 = vpop.xlane.xlu0 %2095
        %2097 = vmax.xlane.f32.xlu0 %v1862
        %v2098 = vpop.xlane.xlu0 %2097
        %2099 = vmax.xlane.f32.xlu0 %v1863
        %v2100 = vpop.xlane.xlu0 %2099
        %2101 = vmax.xlane.f32.xlu0 %v1864
        %v2102 = vpop.xlane.xlu0 %2101
        %2103 = vmax.xlane.f32.xlu0 %v1865
        %v2104 = vpop.xlane.xlu0 %2103
        %2105 = vmax.xlane.f32.xlu0 %v1866
        %v2106 = vpop.xlane.xlu0 %2105
        %2107 = vmax.xlane.f32.xlu0 %v1867
        %v2108 = vpop.xlane.xlu0 %2107
        %2109 = vmax.xlane.f32.xlu0 %v1868
        %v2110 = vpop.xlane.xlu0 %2109
        %2111 = vmax.xlane.f32.xlu0 %v1869
        %v2112 = vpop.xlane.xlu0 %2111
        %2113 = vmax.xlane.f32.xlu0 %v1870
        %v2114 = vpop.xlane.xlu0 %2113
        %2115 = vmax.xlane.f32.xlu0 %v1871
        %v2116 = vpop.xlane.xlu0 %2115
        %2117 = vmax.xlane.f32.xlu0 %v1872
        %v2118 = vpop.xlane.xlu0 %2117
        %2119 = vmax.xlane.f32.xlu0 %v1873
        %v2120 = vpop.xlane.xlu0 %2119
        %2121 = vmax.xlane.f32.xlu0 %v1874
        %v2122 = vpop.xlane.xlu0 %2121
        %2123 = vmax.xlane.f32.xlu0 %v1875
        %v2124 = vpop.xlane.xlu0 %2123
        %2125 = vmax.xlane.f32.xlu0 %v1876
        %v2126 = vpop.xlane.xlu0 %2125
        %2127 = vmax.xlane.f32.xlu0 %v1877
        %v2128 = vpop.xlane.xlu0 %2127
        %2129 = vmax.xlane.f32.xlu0 %v1878
        %v2130 = vpop.xlane.xlu0 %2129
        %2131 = vmax.xlane.f32.xlu0 %v1879
        %v2132 = vpop.xlane.xlu0 %2131
        %2133 = vmax.xlane.f32.xlu0 %v1880
        %v2134 = vpop.xlane.xlu0 %2133
        %2135 = vmax.xlane.f32.xlu0 %v1881
        %v2136 = vpop.xlane.xlu0 %2135
        %2137 = vmax.xlane.f32.xlu0 %v1882
        %v2138 = vpop.xlane.xlu0 %2137
        %v2139 = vld [vmem:[#allocation4] sm:$0xff]
        %v2268 = vlaneseq
        %v2269 = vshrl.u32 %v2268, 7
        %v2270 = vsub.s32 %v1286, %v2269
        %v2271 = vrot.slane %v1884, %v2270
        %v2272 = vadd.s32 %v1286, 4294967288
        %v2273 = vlaneseq
        %v2274 = vshrl.u32 %v2273, 7
        %v2275 = vsub.s32 %v2272, %v2274
        %v2276 = vrot.slane %v1886, %v2275
        %vm2277 = vcmask 130112
        %v2278 = vsel %vm2277, %v2276, %v2271
        %v2279 = vadd.s32 %v1286, 4294967280
        %v2280 = vlaneseq
        %v2281 = vshrl.u32 %v2280, 7
        %v2282 = vsub.s32 %v2279, %v2281
        %v2283 = vrot.slane %v1888, %v2282
        %vm2284 = vcmask 195712
        %v2285 = vsel %vm2284, %v2283, %v2278
        %v2286 = vadd.s32 %v1286, 4294967272
        %v2287 = vlaneseq
        %v2288 = vshrl.u32 %v2287, 7
        %v2289 = vsub.s32 %v2286, %v2288
        %v2290 = vrot.slane %v1890, %v2289
        %vm2291 = vcmask 261312
        %v2292 = vsel %vm2291, %v2290, %v2285
        %v2293 = vadd.s32 %v1286, 4294967264
        %v2294 = vlaneseq
        %v2295 = vshrl.u32 %v2294, 7
        %v2296 = vsub.s32 %v2293, %v2295
        %v2297 = vrot.slane %v1892, %v2296
        %vm2298 = vcmask 326912
        %v2299 = vsel %vm2298, %v2297, %v2292
        %v2300 = vadd.s32 %v1286, 4294967256
        %v2301 = vlaneseq
        %v2302 = vshrl.u32 %v2301, 7
        %v2303 = vsub.s32 %v2300, %v2302
        %v2304 = vrot.slane %v1894, %v2303
        %vm2305 = vcmask 392512
        %v2306 = vsel %vm2305, %v2304, %v2299
        %v2307 = vadd.s32 %v1286, 4294967248
        %v2308 = vlaneseq
        %v2309 = vshrl.u32 %v2308, 7
        %v2310 = vsub.s32 %v2307, %v2309
        %v2311 = vrot.slane %v1896, %v2310
        %vm2312 = vcmask 458112
        %v2313 = vsel %vm2312, %v2311, %v2306
        %v2314 = vadd.s32 %v1286, 4294967240
        %v2315 = vlaneseq
        %v2316 = vshrl.u32 %v2315, 7
        %v2317 = vsub.s32 %v2314, %v2316
        %v2318 = vrot.slane %v1898, %v2317
        %vm2319 = vcmask 523712
        %v2320 = vsel %vm2319, %v2318, %v2313
        %v2321 = vadd.s32 %v1286, 4294967232
        %v2322 = vlaneseq
        %v2323 = vshrl.u32 %v2322, 7
        %v2324 = vsub.s32 %v2321, %v2323
        %v2325 = vrot.slane %v1900, %v2324
        %vm2326 = vcmask 589312
        %v2327 = vsel %vm2326, %v2325, %v2320
        %v2328 = vadd.s32 %v1286, 4294967224
        %v2329 = vlaneseq
        %v2330 = vshrl.u32 %v2329, 7
        %v2331 = vsub.s32 %v2328, %v2330
        %v2332 = vrot.slane %v1902, %v2331
        %vm2333 = vcmask 654912
        %v2334 = vsel %vm2333, %v2332, %v2327
        %v2335 = vadd.s32 %v1286, 4294967216
        %v2336 = vlaneseq
        %v2337 = vshrl.u32 %v2336, 7
        %v2338 = vsub.s32 %v2335, %v2337
        %v2339 = vrot.slane %v1904, %v2338
        %vm2340 = vcmask 720512
        %v2341 = vsel %vm2340, %v2339, %v2334
        %v2342 = vadd.s32 %v1286, 4294967208
        %v2343 = vlaneseq
        %v2344 = vshrl.u32 %v2343, 7
        %v2345 = vsub.s32 %v2342, %v2344
        %v2346 = vrot.slane %v1906, %v2345
        %vm2347 = vcmask 786112
        %v2348 = vsel %vm2347, %v2346, %v2341
        %v2349 = vadd.s32 %v1286, 4294967200
        %v2350 = vlaneseq
        %v2351 = vshrl.u32 %v2350, 7
        %v2352 = vsub.s32 %v2349, %v2351
        %v2353 = vrot.slane %v1908, %v2352
        %vm2354 = vcmask 851712
        %v2355 = vsel %vm2354, %v2353, %v2348
        %v2356 = vadd.s32 %v1286, 4294967192
        %v2357 = vlaneseq
        %v2358 = vshrl.u32 %v2357, 7
        %v2359 = vsub.s32 %v2356, %v2358
        %v2360 = vrot.slane %v1910, %v2359
        %vm2361 = vcmask 917312
        %v2362 = vsel %vm2361, %v2360, %v2355
        %v2363 = vadd.s32 %v1286, 4294967184
        %v2364 = vlaneseq
        %v2365 = vshrl.u32 %v2364, 7
        %v2366 = vsub.s32 %v2363, %v2365
        %v2367 = vrot.slane %v1912, %v2366
        %vm2368 = vcmask 982912
        %v2369 = vsel %vm2368, %v2367, %v2362
        %v2370 = vadd.s32 %v1286, 4294967176
        %v2371 = vlaneseq
        %v2372 = vshrl.u32 %v2371, 7
        %v2373 = vsub.s32 %v2370, %v2372
        %v2374 = vrot.slane %v1914, %v2373
        %vm2375 = vcmask 1048512
        %v2376 = vsel %vm2375, %v2374, %v2369
        %v2377 = vlaneseq
        %v2378 = vshrl.u32 %v2377, 7
        %v2379 = vsub.s32 %v1286, %v2378
        %v2380 = vrot.slane %v1916, %v2379
        %v2381 = vlaneseq
        %v2382 = vshrl.u32 %v2381, 7
        %v2383 = vsub.s32 %v2272, %v2382
        %v2384 = vrot.slane %v1918, %v2383
        %v2385 = vsel %vm2277, %v2384, %v2380
        %v2386 = vlaneseq
        %v2387 = vshrl.u32 %v2386, 7
        %v2388 = vsub.s32 %v2279, %v2387
        %v2389 = vrot.slane %v1920, %v2388
        %v2390 = vsel %vm2284, %v2389, %v2385
        %v2391 = vlaneseq
        %v2392 = vshrl.u32 %v2391, 7
        %v2393 = vsub.s32 %v2286, %v2392
        %v2394 = vrot.slane %v1922, %v2393
        %v2395 = vsel %vm2291, %v2394, %v2390
        %v2396 = vlaneseq
        %v2397 = vshrl.u32 %v2396, 7
        %v2398 = vsub.s32 %v2293, %v2397
        %v2399 = vrot.slane %v1924, %v2398
        %v2400 = vsel %vm2298, %v2399, %v2395
        %v2401 = vlaneseq
        %v2402 = vshrl.u32 %v2401, 7
        %v2403 = vsub.s32 %v2300, %v2402
        %v2404 = vrot.slane %v1926, %v2403
        %v2405 = vsel %vm2305, %v2404, %v2400
        %v2406 = vlaneseq
        %v2407 = vshrl.u32 %v2406, 7
        %v2408 = vsub.s32 %v2307, %v2407
        %v2409 = vrot.slane %v1928, %v2408
        %v2410 = vsel %vm2312, %v2409, %v2405
        %v2411 = vlaneseq
        %v2412 = vshrl.u32 %v2411, 7
        %v2413 = vsub.s32 %v2314, %v2412
        %v2414 = vrot.slane %v1930, %v2413
        %v2415 = vsel %vm2319, %v2414, %v2410
        %v2416 = vlaneseq
        %v2417 = vshrl.u32 %v2416, 7
        %v2418 = vsub.s32 %v2321, %v2417
        %v2419 = vrot.slane %v1932, %v2418
        %v2420 = vsel %vm2326, %v2419, %v2415
        %v2421 = vlaneseq
        %v2422 = vshrl.u32 %v2421, 7
        %v2423 = vsub.s32 %v2328, %v2422
        %v2424 = vrot.slane %v1934, %v2423
        %v2425 = vsel %vm2333, %v2424, %v2420
        %v2426 = vlaneseq
        %v2427 = vshrl.u32 %v2426, 7
        %v2428 = vsub.s32 %v2335, %v2427
        %v2429 = vrot.slane %v1936, %v2428
        %v2430 = vsel %vm2340, %v2429, %v2425
        %v2431 = vlaneseq
        %v2432 = vshrl.u32 %v2431, 7
        %v2433 = vsub.s32 %v2342, %v2432
        %v2434 = vrot.slane %v1938, %v2433
        %v2435 = vsel %vm2347, %v2434, %v2430
        %v2436 = vlaneseq
        %v2437 = vshrl.u32 %v2436, 7
        %v2438 = vsub.s32 %v2349, %v2437
        %v2439 = vrot.slane %v1940, %v2438
        %v2440 = vsel %vm2354, %v2439, %v2435
        %v2441 = vlaneseq
        %v2442 = vshrl.u32 %v2441, 7
        %v2443 = vsub.s32 %v2356, %v2442
        %v2444 = vrot.slane %v1942, %v2443
        %v2445 = vsel %vm2361, %v2444, %v2440
        %v2446 = vlaneseq
        %v2447 = vshrl.u32 %v2446, 7
        %v2448 = vsub.s32 %v2363, %v2447
        %v2449 = vrot.slane %v1944, %v2448
        %v2450 = vsel %vm2368, %v2449, %v2445
        %v2451 = vlaneseq
        %v2452 = vshrl.u32 %v2451, 7
        %v2453 = vsub.s32 %v2370, %v2452
        %v2454 = vrot.slane %v1946, %v2453
        %v2455 = vsel %vm2375, %v2454, %v2450
        %v2456 = vlaneseq
        %v2457 = vshrl.u32 %v2456, 7
        %v2458 = vsub.s32 %v1286, %v2457
        %v2459 = vrot.slane %v1948, %v2458
        %v2460 = vlaneseq
        %v2461 = vshrl.u32 %v2460, 7
        %v2462 = vsub.s32 %v2272, %v2461
        %v2463 = vrot.slane %v1950, %v2462
        %v2464 = vsel %vm2277, %v2463, %v2459
        %v2465 = vlaneseq
        %v2466 = vshrl.u32 %v2465, 7
        %v2467 = vsub.s32 %v2279, %v2466
        %v2468 = vrot.slane %v1952, %v2467
        %v2469 = vsel %vm2284, %v2468, %v2464
        %v2470 = vlaneseq
        %v2471 = vshrl.u32 %v2470, 7
        %v2472 = vsub.s32 %v2286, %v2471
        %v2473 = vrot.slane %v1954, %v2472
        %v2474 = vsel %vm2291, %v2473, %v2469
        %v2475 = vlaneseq
        %v2476 = vshrl.u32 %v2475, 7
        %v2477 = vsub.s32 %v2293, %v2476
        %v2478 = vrot.slane %v1956, %v2477
        %v2479 = vsel %vm2298, %v2478, %v2474
        %v2480 = vlaneseq
        %v2481 = vshrl.u32 %v2480, 7
        %v2482 = vsub.s32 %v2300, %v2481
        %v2483 = vrot.slane %v1958, %v2482
        %v2484 = vsel %vm2305, %v2483, %v2479
        %v2485 = vlaneseq
        %v2486 = vshrl.u32 %v2485, 7
        %v2487 = vsub.s32 %v2307, %v2486
        %v2488 = vrot.slane %v1960, %v2487
        %v2489 = vsel %vm2312, %v2488, %v2484
        %v2490 = vlaneseq
        %v2491 = vshrl.u32 %v2490, 7
        %v2492 = vsub.s32 %v2314, %v2491
        %v2493 = vrot.slane %v1962, %v2492
        %v2494 = vsel %vm2319, %v2493, %v2489
        %v2495 = vlaneseq
        %v2496 = vshrl.u32 %v2495, 7
        %v2497 = vsub.s32 %v2321, %v2496
        %v2498 = vrot.slane %v1964, %v2497
        %v2499 = vsel %vm2326, %v2498, %v2494
        %v2500 = vlaneseq
        %v2501 = vshrl.u32 %v2500, 7
        %v2502 = vsub.s32 %v2328, %v2501
        %v2503 = vrot.slane %v1966, %v2502
        %v2504 = vsel %vm2333, %v2503, %v2499
        %v2505 = vlaneseq
        %v2506 = vshrl.u32 %v2505, 7
        %v2507 = vsub.s32 %v2335, %v2506
        %v2508 = vrot.slane %v1968, %v2507
        %v2509 = vsel %vm2340, %v2508, %v2504
        %v2510 = vlaneseq
        %v2511 = vshrl.u32 %v2510, 7
        %v2512 = vsub.s32 %v2342, %v2511
        %v2513 = vrot.slane %v1970, %v2512
        %v2514 = vsel %vm2347, %v2513, %v2509
        %v2515 = vlaneseq
        %v2516 = vshrl.u32 %v2515, 7
        %v2517 = vsub.s32 %v2349, %v2516
        %v2518 = vrot.slane %v1972, %v2517
        %v2519 = vsel %vm2354, %v2518, %v2514
        %v2520 = vlaneseq
        %v2521 = vshrl.u32 %v2520, 7
        %v2522 = vsub.s32 %v2356, %v2521
        %v2523 = vrot.slane %v1974, %v2522
        %v2524 = vsel %vm2361, %v2523, %v2519
        %v2525 = vlaneseq
        %v2526 = vshrl.u32 %v2525, 7
        %v2527 = vsub.s32 %v2363, %v2526
        %v2528 = vrot.slane %v1976, %v2527
        %v2529 = vsel %vm2368, %v2528, %v2524
        %v2530 = vlaneseq
        %v2531 = vshrl.u32 %v2530, 7
        %v2532 = vsub.s32 %v2370, %v2531
        %v2533 = vrot.slane %v1978, %v2532
        %v2534 = vsel %vm2375, %v2533, %v2529
        %v2535 = vlaneseq
        %v2536 = vshrl.u32 %v2535, 7
        %v2537 = vsub.s32 %v1286, %v2536
        %v2538 = vrot.slane %v1980, %v2537
        %v2539 = vlaneseq
        %v2540 = vshrl.u32 %v2539, 7
        %v2541 = vsub.s32 %v2272, %v2540
        %v2542 = vrot.slane %v1982, %v2541
        %v2543 = vsel %vm2277, %v2542, %v2538
        %v2544 = vlaneseq
        %v2545 = vshrl.u32 %v2544, 7
        %v2546 = vsub.s32 %v2279, %v2545
        %v2547 = vrot.slane %v1984, %v2546
        %v2548 = vsel %vm2284, %v2547, %v2543
        %v2549 = vlaneseq
        %v2550 = vshrl.u32 %v2549, 7
        %v2551 = vsub.s32 %v2286, %v2550
        %v2552 = vrot.slane %v1986, %v2551
        %v2553 = vsel %vm2291, %v2552, %v2548
        %v2554 = vlaneseq
        %v2555 = vshrl.u32 %v2554, 7
        %v2556 = vsub.s32 %v2293, %v2555
        %v2557 = vrot.slane %v1988, %v2556
        %v2558 = vsel %vm2298, %v2557, %v2553
        %v2559 = vlaneseq
        %v2560 = vshrl.u32 %v2559, 7
        %v2561 = vsub.s32 %v2300, %v2560
        %v2562 = vrot.slane %v1990, %v2561
        %v2563 = vsel %vm2305, %v2562, %v2558
        %v2564 = vlaneseq
        %v2565 = vshrl.u32 %v2564, 7
        %v2566 = vsub.s32 %v2307, %v2565
        %v2567 = vrot.slane %v1992, %v2566
        %v2568 = vsel %vm2312, %v2567, %v2563
        %v2569 = vlaneseq
        %v2570 = vshrl.u32 %v2569, 7
        %v2571 = vsub.s32 %v2314, %v2570
        %v2572 = vrot.slane %v1994, %v2571
        %v2573 = vsel %vm2319, %v2572, %v2568
        %v2574 = vlaneseq
        %v2575 = vshrl.u32 %v2574, 7
        %v2576 = vsub.s32 %v2321, %v2575
        %v2577 = vrot.slane %v1996, %v2576
        %v2578 = vsel %vm2326, %v2577, %v2573
        %v2579 = vlaneseq
        %v2580 = vshrl.u32 %v2579, 7
        %v2581 = vsub.s32 %v2328, %v2580
        %v2582 = vrot.slane %v1998, %v2581
        %v2583 = vsel %vm2333, %v2582, %v2578
        %v2584 = vlaneseq
        %v2585 = vshrl.u32 %v2584, 7
        %v2586 = vsub.s32 %v2335, %v2585
        %v2587 = vrot.slane %v2000, %v2586
        %v2588 = vsel %vm2340, %v2587, %v2583
        %v2589 = vlaneseq
        %v2590 = vshrl.u32 %v2589, 7
        %v2591 = vsub.s32 %v2342, %v2590
        %v2592 = vrot.slane %v2002, %v2591
        %v2593 = vsel %vm2347, %v2592, %v2588
        %v2594 = vlaneseq
        %v2595 = vshrl.u32 %v2594, 7
        %v2596 = vsub.s32 %v2349, %v2595
        %v2597 = vrot.slane %v2004, %v2596
        %v2598 = vsel %vm2354, %v2597, %v2593
        %v2599 = vlaneseq
        %v2600 = vshrl.u32 %v2599, 7
        %v2601 = vsub.s32 %v2356, %v2600
        %v2602 = vrot.slane %v2006, %v2601
        %v2603 = vsel %vm2361, %v2602, %v2598
        %v2604 = vlaneseq
        %v2605 = vshrl.u32 %v2604, 7
        %v2606 = vsub.s32 %v2363, %v2605
        %v2607 = vrot.slane %v2008, %v2606
        %v2608 = vsel %vm2368, %v2607, %v2603
        %v2609 = vlaneseq
        %v2610 = vshrl.u32 %v2609, 7
        %v2611 = vsub.s32 %v2370, %v2610
        %v2612 = vrot.slane %v2010, %v2611
        %v2613 = vsel %vm2375, %v2612, %v2608
        %v2614 = vlaneseq
        %v2615 = vshrl.u32 %v2614, 7
        %v2616 = vsub.s32 %v1286, %v2615
        %v2617 = vrot.slane %v2012, %v2616
        %v2618 = vlaneseq
        %v2619 = vshrl.u32 %v2618, 7
        %v2620 = vsub.s32 %v2272, %v2619
        %v2621 = vrot.slane %v2014, %v2620
        %v2622 = vsel %vm2277, %v2621, %v2617
        %v2623 = vlaneseq
        %v2624 = vshrl.u32 %v2623, 7
        %v2625 = vsub.s32 %v2279, %v2624
        %v2626 = vrot.slane %v2016, %v2625
        %v2627 = vsel %vm2284, %v2626, %v2622
        %v2628 = vlaneseq
        %v2629 = vshrl.u32 %v2628, 7
        %v2630 = vsub.s32 %v2286, %v2629
        %v2631 = vrot.slane %v2018, %v2630
        %v2632 = vsel %vm2291, %v2631, %v2627
        %v2633 = vlaneseq
        %v2634 = vshrl.u32 %v2633, 7
        %v2635 = vsub.s32 %v2293, %v2634
        %v2636 = vrot.slane %v2020, %v2635
        %v2637 = vsel %vm2298, %v2636, %v2632
        %v2638 = vlaneseq
        %v2639 = vshrl.u32 %v2638, 7
        %v2640 = vsub.s32 %v2300, %v2639
        %v2641 = vrot.slane %v2022, %v2640
        %v2642 = vsel %vm2305, %v2641, %v2637
        %v2643 = vlaneseq
        %v2644 = vshrl.u32 %v2643, 7
        %v2645 = vsub.s32 %v2307, %v2644
        %v2646 = vrot.slane %v2024, %v2645
        %v2647 = vsel %vm2312, %v2646, %v2642
        %v2648 = vlaneseq
        %v2649 = vshrl.u32 %v2648, 7
        %v2650 = vsub.s32 %v2314, %v2649
        %v2651 = vrot.slane %v2026, %v2650
        %v2652 = vsel %vm2319, %v2651, %v2647
        %v2653 = vlaneseq
        %v2654 = vshrl.u32 %v2653, 7
        %v2655 = vsub.s32 %v2321, %v2654
        %v2656 = vrot.slane %v2028, %v2655
        %v2657 = vsel %vm2326, %v2656, %v2652
        %v2658 = vlaneseq
        %v2659 = vshrl.u32 %v2658, 7
        %v2660 = vsub.s32 %v2328, %v2659
        %v2661 = vrot.slane %v2030, %v2660
        %v2662 = vsel %vm2333, %v2661, %v2657
        %v2663 = vlaneseq
        %v2664 = vshrl.u32 %v2663, 7
        %v2665 = vsub.s32 %v2335, %v2664
        %v2666 = vrot.slane %v2032, %v2665
        %v2667 = vsel %vm2340, %v2666, %v2662
        %v2668 = vlaneseq
        %v2669 = vshrl.u32 %v2668, 7
        %v2670 = vsub.s32 %v2342, %v2669
        %v2671 = vrot.slane %v2034, %v2670
        %v2672 = vsel %vm2347, %v2671, %v2667
        %v2673 = vlaneseq
        %v2674 = vshrl.u32 %v2673, 7
        %v2675 = vsub.s32 %v2349, %v2674
        %v2676 = vrot.slane %v2036, %v2675
        %v2677 = vsel %vm2354, %v2676, %v2672
        %v2678 = vlaneseq
        %v2679 = vshrl.u32 %v2678, 7
        %v2680 = vsub.s32 %v2356, %v2679
        %v2681 = vrot.slane %v2038, %v2680
        %v2682 = vsel %vm2361, %v2681, %v2677
        %v2683 = vlaneseq
        %v2684 = vshrl.u32 %v2683, 7
        %v2685 = vsub.s32 %v2363, %v2684
        %v2686 = vrot.slane %v2040, %v2685
        %v2687 = vsel %vm2368, %v2686, %v2682
        %v2688 = vlaneseq
        %v2689 = vshrl.u32 %v2688, 7
        %v2690 = vsub.s32 %v2370, %v2689
        %v2691 = vrot.slane %v2042, %v2690
        %v2692 = vsel %vm2375, %v2691, %v2687
        %v2693 = vlaneseq
        %v2694 = vshrl.u32 %v2693, 7
        %v2695 = vsub.s32 %v1286, %v2694
        %v2696 = vrot.slane %v2044, %v2695
        %v2697 = vlaneseq
        %v2698 = vshrl.u32 %v2697, 7
        %v2699 = vsub.s32 %v2272, %v2698
        %v2700 = vrot.slane %v2046, %v2699
        %v2701 = vsel %vm2277, %v2700, %v2696
        %v2702 = vlaneseq
        %v2703 = vshrl.u32 %v2702, 7
        %v2704 = vsub.s32 %v2279, %v2703
        %v2705 = vrot.slane %v2048, %v2704
        %v2706 = vsel %vm2284, %v2705, %v2701
        %v2707 = vlaneseq
        %v2708 = vshrl.u32 %v2707, 7
        %v2709 = vsub.s32 %v2286, %v2708
        %v2710 = vrot.slane %v2050, %v2709
        %v2711 = vsel %vm2291, %v2710, %v2706
        %v2712 = vlaneseq
        %v2713 = vshrl.u32 %v2712, 7
        %v2714 = vsub.s32 %v2293, %v2713
        %v2715 = vrot.slane %v2052, %v2714
        %v2716 = vsel %vm2298, %v2715, %v2711
        %v2717 = vlaneseq
        %v2718 = vshrl.u32 %v2717, 7
        %v2719 = vsub.s32 %v2300, %v2718
        %v2720 = vrot.slane %v2054, %v2719
        %v2721 = vsel %vm2305, %v2720, %v2716
        %v2722 = vlaneseq
        %v2723 = vshrl.u32 %v2722, 7
        %v2724 = vsub.s32 %v2307, %v2723
        %v2725 = vrot.slane %v2056, %v2724
        %v2726 = vsel %vm2312, %v2725, %v2721
        %v2727 = vlaneseq
        %v2728 = vshrl.u32 %v2727, 7
        %v2729 = vsub.s32 %v2314, %v2728
        %v2730 = vrot.slane %v2058, %v2729
        %v2731 = vsel %vm2319, %v2730, %v2726
        %v2732 = vlaneseq
        %v2733 = vshrl.u32 %v2732, 7
        %v2734 = vsub.s32 %v2321, %v2733
        %v2735 = vrot.slane %v2060, %v2734
        %v2736 = vsel %vm2326, %v2735, %v2731
        %v2737 = vlaneseq
        %v2738 = vshrl.u32 %v2737, 7
        %v2739 = vsub.s32 %v2328, %v2738
        %v2740 = vrot.slane %v2062, %v2739
        %v2741 = vsel %vm2333, %v2740, %v2736
        %v2742 = vlaneseq
        %v2743 = vshrl.u32 %v2742, 7
        %v2744 = vsub.s32 %v2335, %v2743
        %v2745 = vrot.slane %v2064, %v2744
        %v2746 = vsel %vm2340, %v2745, %v2741
        %v2747 = vlaneseq
        %v2748 = vshrl.u32 %v2747, 7
        %v2749 = vsub.s32 %v2342, %v2748
        %v2750 = vrot.slane %v2066, %v2749
        %v2751 = vsel %vm2347, %v2750, %v2746
        %v2752 = vlaneseq
        %v2753 = vshrl.u32 %v2752, 7
        %v2754 = vsub.s32 %v2349, %v2753
        %v2755 = vrot.slane %v2068, %v2754
        %v2756 = vsel %vm2354, %v2755, %v2751
        %v2757 = vlaneseq
        %v2758 = vshrl.u32 %v2757, 7
        %v2759 = vsub.s32 %v2356, %v2758
        %v2760 = vrot.slane %v2070, %v2759
        %v2761 = vsel %vm2361, %v2760, %v2756
        %v2762 = vlaneseq
        %v2763 = vshrl.u32 %v2762, 7
        %v2764 = vsub.s32 %v2363, %v2763
        %v2765 = vrot.slane %v2072, %v2764
        %v2766 = vsel %vm2368, %v2765, %v2761
        %v2767 = vlaneseq
        %v2768 = vshrl.u32 %v2767, 7
        %v2769 = vsub.s32 %v2370, %v2768
        %v2770 = vrot.slane %v2074, %v2769
        %v2771 = vsel %vm2375, %v2770, %v2766
        %v2772 = vlaneseq
        %v2773 = vshrl.u32 %v2772, 7
        %v2774 = vsub.s32 %v1286, %v2773
        %v2775 = vrot.slane %v2076, %v2774
        %v2776 = vlaneseq
        %v2777 = vshrl.u32 %v2776, 7
        %v2778 = vsub.s32 %v2272, %v2777
        %v2779 = vrot.slane %v2078, %v2778
        %v2780 = vsel %vm2277, %v2779, %v2775
        %v2781 = vlaneseq
        %v2782 = vshrl.u32 %v2781, 7
        %v2783 = vsub.s32 %v2279, %v2782
        %v2784 = vrot.slane %v2080, %v2783
        %v2785 = vsel %vm2284, %v2784, %v2780
        %v2786 = vlaneseq
        %v2787 = vshrl.u32 %v2786, 7
        %v2788 = vsub.s32 %v2286, %v2787
        %v2789 = vrot.slane %v2082, %v2788
        %v2790 = vsel %vm2291, %v2789, %v2785
        %v2791 = vlaneseq
        %v2792 = vshrl.u32 %v2791, 7
        %v2793 = vsub.s32 %v2293, %v2792
        %v2794 = vrot.slane %v2084, %v2793
        %v2795 = vsel %vm2298, %v2794, %v2790
        %v2796 = vlaneseq
        %v2797 = vshrl.u32 %v2796, 7
        %v2798 = vsub.s32 %v2300, %v2797
        %v2799 = vrot.slane %v2086, %v2798
        %v2800 = vsel %vm2305, %v2799, %v2795
        %v2801 = vlaneseq
        %v2802 = vshrl.u32 %v2801, 7
        %v2803 = vsub.s32 %v2307, %v2802
        %v2804 = vrot.slane %v2088, %v2803
        %v2805 = vsel %vm2312, %v2804, %v2800
        %v2806 = vlaneseq
        %v2807 = vshrl.u32 %v2806, 7
        %v2808 = vsub.s32 %v2314, %v2807
        %v2809 = vrot.slane %v2090, %v2808
        %v2810 = vsel %vm2319, %v2809, %v2805
        %v2811 = vlaneseq
        %v2812 = vshrl.u32 %v2811, 7
        %v2813 = vsub.s32 %v2321, %v2812
        %v2814 = vrot.slane %v2092, %v2813
        %v2815 = vsel %vm2326, %v2814, %v2810
        %v2816 = vlaneseq
        %v2817 = vshrl.u32 %v2816, 7
        %v2818 = vsub.s32 %v2328, %v2817
        %v2819 = vrot.slane %v2094, %v2818
        %v2820 = vsel %vm2333, %v2819, %v2815
        %v2821 = vlaneseq
        %v2822 = vshrl.u32 %v2821, 7
        %v2823 = vsub.s32 %v2335, %v2822
        %v2824 = vrot.slane %v2096, %v2823
        %v2825 = vsel %vm2340, %v2824, %v2820
        %v2826 = vlaneseq
        %v2827 = vshrl.u32 %v2826, 7
        %v2828 = vsub.s32 %v2342, %v2827
        %v2829 = vrot.slane %v2098, %v2828
        %v2830 = vsel %vm2347, %v2829, %v2825
        %v2831 = vlaneseq
        %v2832 = vshrl.u32 %v2831, 7
        %v2833 = vsub.s32 %v2349, %v2832
        %v2834 = vrot.slane %v2100, %v2833
        %v2835 = vsel %vm2354, %v2834, %v2830
        %v2836 = vlaneseq
        %v2837 = vshrl.u32 %v2836, 7
        %v2838 = vsub.s32 %v2356, %v2837
        %v2839 = vrot.slane %v2102, %v2838
        %v2840 = vsel %vm2361, %v2839, %v2835
        %v2841 = vlaneseq
        %v2842 = vshrl.u32 %v2841, 7
        %v2843 = vsub.s32 %v2363, %v2842
        %v2844 = vrot.slane %v2104, %v2843
        %v2845 = vsel %vm2368, %v2844, %v2840
        %v2846 = vlaneseq
        %v2847 = vshrl.u32 %v2846, 7
        %v2848 = vsub.s32 %v2370, %v2847
        %v2849 = vrot.slane %v2106, %v2848
        %v2850 = vsel %vm2375, %v2849, %v2845
        %v2851 = vlaneseq
        %v2852 = vshrl.u32 %v2851, 7
        %v2853 = vsub.s32 %v1286, %v2852
        %v2854 = vrot.slane %v2108, %v2853
        %v2855 = vlaneseq
        %v2856 = vshrl.u32 %v2855, 7
        %v2857 = vsub.s32 %v2272, %v2856
        %v2858 = vrot.slane %v2110, %v2857
        %v2859 = vsel %vm2277, %v2858, %v2854
        %v2860 = vlaneseq
        %v2861 = vshrl.u32 %v2860, 7
        %v2862 = vsub.s32 %v2279, %v2861
        %v2863 = vrot.slane %v2112, %v2862
        %v2864 = vsel %vm2284, %v2863, %v2859
        %v2865 = vlaneseq
        %v2866 = vshrl.u32 %v2865, 7
        %v2867 = vsub.s32 %v2286, %v2866
        %v2868 = vrot.slane %v2114, %v2867
        %v2869 = vsel %vm2291, %v2868, %v2864
        %v2870 = vlaneseq
        %v2871 = vshrl.u32 %v2870, 7
        %v2872 = vsub.s32 %v2293, %v2871
        %v2873 = vrot.slane %v2116, %v2872
        %v2874 = vsel %vm2298, %v2873, %v2869
        %v2875 = vlaneseq
        %v2876 = vshrl.u32 %v2875, 7
        %v2877 = vsub.s32 %v2300, %v2876
        %v2878 = vrot.slane %v2118, %v2877
        %v2879 = vsel %vm2305, %v2878, %v2874
        %v2880 = vlaneseq
        %v2881 = vshrl.u32 %v2880, 7
        %v2882 = vsub.s32 %v2307, %v2881
        %v2883 = vrot.slane %v2120, %v2882
        %v2884 = vsel %vm2312, %v2883, %v2879
        %v2885 = vlaneseq
        %v2886 = vshrl.u32 %v2885, 7
        %v2887 = vsub.s32 %v2314, %v2886
        %v2888 = vrot.slane %v2122, %v2887
        %v2889 = vsel %vm2319, %v2888, %v2884
        %v2890 = vlaneseq
        %v2891 = vshrl.u32 %v2890, 7
        %v2892 = vsub.s32 %v2321, %v2891
        %v2893 = vrot.slane %v2124, %v2892
        %v2894 = vsel %vm2326, %v2893, %v2889
        %v2895 = vlaneseq
        %v2896 = vshrl.u32 %v2895, 7
        %v2897 = vsub.s32 %v2328, %v2896
        %v2898 = vrot.slane %v2126, %v2897
        %v2899 = vsel %vm2333, %v2898, %v2894
        %v2900 = vlaneseq
        %v2901 = vshrl.u32 %v2900, 7
        %v2902 = vsub.s32 %v2335, %v2901
        %v2903 = vrot.slane %v2128, %v2902
        %v2904 = vsel %vm2340, %v2903, %v2899
        %v2905 = vlaneseq
        %v2906 = vshrl.u32 %v2905, 7
        %v2907 = vsub.s32 %v2342, %v2906
        %v2908 = vrot.slane %v2130, %v2907
        %v2909 = vsel %vm2347, %v2908, %v2904
        %v2910 = vlaneseq
        %v2911 = vshrl.u32 %v2910, 7
        %v2912 = vsub.s32 %v2349, %v2911
        %v2913 = vrot.slane %v2132, %v2912
        %v2914 = vsel %vm2354, %v2913, %v2909
        %v2915 = vlaneseq
        %v2916 = vshrl.u32 %v2915, 7
        %v2917 = vsub.s32 %v2356, %v2916
        %v2918 = vrot.slane %v2134, %v2917
        %v2919 = vsel %vm2361, %v2918, %v2914
        %v2920 = vlaneseq
        %v2921 = vshrl.u32 %v2920, 7
        %v2922 = vsub.s32 %v2363, %v2921
        %v2923 = vrot.slane %v2136, %v2922
        %v2924 = vsel %vm2368, %v2923, %v2919
        %v2925 = vlaneseq
        %v2926 = vshrl.u32 %v2925, 7
        %v2927 = vsub.s32 %v2370, %v2926
        %v2928 = vrot.slane %v2138, %v2927
        %v2929 = vsel %vm2375, %v2928, %v2924
        %vm2930 = vcmask 1041409
        %v2931 = vsel %vm2930, %v2455, %v2376
        %vm2932 = vcmask 1042434
        %v2933 = vsel %vm2932, %v2534, %v2931
        %vm2934 = vcmask 1043459
        %v2935 = vsel %vm2934, %v2613, %v2933
        %vm2936 = vcmask 1044484
        %v2937 = vsel %vm2936, %v2692, %v2935
        %vm2938 = vcmask 1045509
        %v2939 = vsel %vm2938, %v2771, %v2937
        %vm2940 = vcmask 1046534
        %v2941 = vsel %vm2940, %v2850, %v2939
        %vm2942 = vcmask 1047559
        %v2943 = vsel %vm2942, %v2929, %v2941
        %v2945 = vmax.f32 %v2139, %v2943
        %v2946 = vsub.f32 %v2139, %v2945
        %v2947 = vmul.f32 %v2946, 1.442695
        %v2948 = vpow.pop %v2947
        %2949 = vmatprep.subr.mxu0 0.0
        %2950 = vmatpush1.msra.mxu0 %v1375
        %2951 = vmatprep.subr.mxu0 0.0
        %2952 = vmatpush1.msra.mxu0 %v1376
        %2953 = vmatprep.subr.mxu0 0.0
        %2954 = vmatpush1.msra.mxu0 %v1377
        %2955 = vmatprep.subr.mxu0 0.0
        %2956 = vmatpush1.msra.mxu0 %v1378
        %2957 = vmatprep.subr.mxu0 0.0
        %2958 = vmatpush1.msra.mxu0 %v1379
        %2959 = vmatprep.subr.mxu0 0.0
        %2960 = vmatpush1.msra.mxu0 %v1380
        %2961 = vmatprep.subr.mxu0 0.0
        %2962 = vmatpush1.msra.mxu0 %v1381
        %2963 = vmatprep.subr.mxu0 0.0
        %2964 = vmatpush1.msra.mxu0 %v1382
        %2965 = vmatprep.subr.mxu0 0.0
        %2966 = vmatpush1.msra.mxu0 %v1383
        %2967 = vmatprep.subr.mxu0 0.0
        %2968 = vmatpush1.msra.mxu0 %v1384
        %2969 = vmatprep.subr.mxu0 0.0
        %2970 = vmatpush1.msra.mxu0 %v1385
        %2971 = vmatprep.subr.mxu0 0.0
        %2972 = vmatpush1.msra.mxu0 %v1386
        %2973 = vmatprep.subr.mxu0 0.0
        %2974 = vmatpush1.msra.mxu0 %v1387
        %2975 = vmatprep.subr.mxu0 0.0
        %2976 = vmatpush1.msra.mxu0 %v1388
        %2977 = vmatprep.subr.mxu0 0.0
        %2978 = vmatpush1.msra.mxu0 %v1389
        %2979 = vmatprep.subr.mxu0 0.0
        %2980 = vmatpush1.msra.mxu0 %v1390
        %2981 = vmatprep.subr.mxu0 0.0
        %2982 = vmatpush1.msra.mxu0 0.0
        %2983 = vmatprep.subr.mxu0 0.0
        %2984 = vmatpush1.msra.mxu0 0.0
        %2985 = vmatprep.subr.mxu0 0.0
        %2986 = vmatpush1.msra.mxu0 0.0
        %2987 = vmatprep.subr.mxu0 0.0
        %2988 = vmatpush1.msra.mxu0 0.0
        %2989 = vmatprep.subr.mxu0 0.0
        %2990 = vmatpush1.msra.mxu0 0.0
        %2991 = vmatprep.subr.mxu0 0.0
        %2992 = vmatpush1.msra.mxu0 0.0
        %2993 = vmatprep.subr.mxu0 0.0
        %2994 = vmatpush1.msra.mxu0 0.0
        %2995 = vmatprep.subr.mxu0 0.0
        %2996 = vmatpush1.msra.mxu0 0.0
        %2997 = vmatprep.subr.mxu0 0.0
        %2998 = vmatpush1.msra.mxu0 0.0
        %2999 = vmatprep.subr.mxu0 0.0
        %3000 = vmatpush1.msra.mxu0 0.0
        %3001 = vmatprep.subr.mxu0 0.0
        %3002 = vmatpush1.msra.mxu0 0.0
        %3003 = vmatprep.subr.mxu0 0.0
        %3004 = vmatpush1.msra.mxu0 0.0
        %3005 = vmatprep.subr.mxu0 0.0
        %3006 = vmatpush1.msra.mxu0 0.0
        %3007 = vmatprep.subr.mxu0 0.0
        %3008 = vmatpush1.msra.mxu0 0.0
        %3009 = vmatprep.subr.mxu0 0.0
        %3010 = vmatpush1.msra.mxu0 0.0
        %3011 = vmatprep.subr.mxu0 0.0
        %3012 = vmatpush1.msra.mxu0 0.0
        %3013 = vmatprep.mubr.f32.mxu0 0.0
        %3014 = vmatmul.mubr.f32.gmra.mrb[0].mxu0 %v2945
        %v3015 = vpop.f32.mrb[0].mxu0
        %v3016 = vadd.f32 0.0, %v3015
        %v3017 = vpop.f32.mrb[0].mxu0
        %3018 = vdwg.mxu0
        %v3019 = vsub.f32 %v1632, %v3016
        %v3020 = vmul.f32 %v3019, 1.442695
        %v3021 = vpow.pop %v3020
        %vm3022 = vcmp.lt.s32.totalorder %v1251, 128
        %v3023 = vsel %vm3022, 1, 0
        %v3024 = vlaneseq
        %v3025 = vshrl.u32 %v3024, 7
        %v3026 = vsub.s32 0, %v3025
        %v3027 = vrot.slane %v3023, %v3026
        %vm3028 = vcmp.eq.s32.totalorder %v3027, 1
        %v3029 = vsel %vm3028, %v3021, 0.0
        %v3030 = vld [vmem:[#allocation5] sm:$0xff]
        %v3031 = vmul.f32 %v2948, %v3030
        %3032 = vmatprep.subr.mxu0 0.0
        %3033 = vmatpush1.msra.mxu0 %v1471
        %3034 = vmatprep.subr.mxu0 0.0
        %3035 = vmatpush1.msra.mxu0 %v1472
        %3036 = vmatprep.subr.mxu0 0.0
        %3037 = vmatpush1.msra.mxu0 %v1473
        %3038 = vmatprep.subr.mxu0 0.0
        %3039 = vmatpush1.msra.mxu0 %v1474
        %3040 = vmatprep.subr.mxu0 0.0
        %3041 = vmatpush1.msra.mxu0 %v1475
        %3042 = vmatprep.subr.mxu0 0.0
        %3043 = vmatpush1.msra.mxu0 %v1476
        %3044 = vmatprep.subr.mxu0 0.0
        %3045 = vmatpush1.msra.mxu0 %v1477
        %3046 = vmatprep.subr.mxu0 0.0
        %3047 = vmatpush1.msra.mxu0 %v1478
        %3048 = vmatprep.subr.mxu0 0.0
        %3049 = vmatpush1.msra.mxu0 %v1479
        %3050 = vmatprep.subr.mxu0 0.0
        %3051 = vmatpush1.msra.mxu0 %v1480
        %3052 = vmatprep.subr.mxu0 0.0
        %3053 = vmatpush1.msra.mxu0 %v1481
        %3054 = vmatprep.subr.mxu0 0.0
        %3055 = vmatpush1.msra.mxu0 %v1482
        %3056 = vmatprep.subr.mxu0 0.0
        %3057 = vmatpush1.msra.mxu0 %v1483
        %3058 = vmatprep.subr.mxu0 0.0
        %3059 = vmatpush1.msra.mxu0 %v1484
        %3060 = vmatprep.subr.mxu0 0.0
        %3061 = vmatpush1.msra.mxu0 %v1485
        %3062 = vmatprep.subr.mxu0 0.0
        %3063 = vmatpush1.msra.mxu0 %v1486
        %3064 = vmatprep.subr.mxu0 0.0
        %3065 = vmatpush1.msra.mxu0 0.0
        %3066 = vmatprep.subr.mxu0 0.0
        %3067 = vmatpush1.msra.mxu0 0.0
        %3068 = vmatprep.subr.mxu0 0.0
        %3069 = vmatpush1.msra.mxu0 0.0
        %3070 = vmatprep.subr.mxu0 0.0
        %3071 = vmatpush1.msra.mxu0 0.0
        %3072 = vmatprep.subr.mxu0 0.0
        %3073 = vmatpush1.msra.mxu0 0.0
        %3074 = vmatprep.subr.mxu0 0.0
        %3075 = vmatpush1.msra.mxu0 0.0
        %3076 = vmatprep.subr.mxu0 0.0
        %3077 = vmatpush1.msra.mxu0 0.0
        %3078 = vmatprep.subr.mxu0 0.0
        %3079 = vmatpush1.msra.mxu0 0.0
        %3080 = vmatprep.subr.mxu0 0.0
        %3081 = vmatpush1.msra.mxu0 0.0
        %3082 = vmatprep.subr.mxu0 0.0
        %3083 = vmatpush1.msra.mxu0 0.0
        %3084 = vmatprep.subr.mxu0 0.0
        %3085 = vmatpush1.msra.mxu0 0.0
        %3086 = vmatprep.subr.mxu0 0.0
        %3087 = vmatpush1.msra.mxu0 0.0
        %3088 = vmatprep.subr.mxu0 0.0
        %3089 = vmatpush1.msra.mxu0 0.0
        %3090 = vmatprep.subr.mxu0 0.0
        %3091 = vmatpush1.msra.mxu0 0.0
        %3092 = vmatprep.subr.mxu0 0.0
        %3093 = vmatpush1.msra.mxu0 0.0
        %3094 = vmatprep.subr.mxu0 0.0
        %3095 = vmatpush1.msra.mxu0 0.0
        %3096 = vmatprep.mubr.f32.mxu0 0.0
        %3097 = vmatmul.mubr.f32.gmra.mrb[0].mxu0 %v3029
        %v3098 = vpop.f32.mrb[0].mxu0
        %v3099 = vadd.f32 0.0, %v3098
        %v3100 = vpop.f32.mrb[0].mxu0
        %3101 = vdwg.mxu0
        %v3102 = vadd.f32 %v3031, %v3099
        %3103 = vst [vmem:[#allocation5] sm:$0xff] %v3102
        %v3104 = vld [vmem:[#allocation6] sm:$0xff]
        %v3105 = vmul.f32 %v2948, %v3104
        %v3106 = vmul.f32 %v3029, %v1626
        %3107 = vmatprep.subr.mxu0 0.0
        %3108 = vmatpush1.msra.mxu0 %v1471
        %3109 = vmatprep.subr.mxu0 0.0
        %3110 = vmatpush1.msra.mxu0 %v1472
        %3111 = vmatprep.subr.mxu0 0.0
        %3112 = vmatpush1.msra.mxu0 %v1473
        %3113 = vmatprep.subr.mxu0 0.0
        %3114 = vmatpush1.msra.mxu0 %v1474
        %3115 = vmatprep.subr.mxu0 0.0
        %3116 = vmatpush1.msra.mxu0 %v1475
        %3117 = vmatprep.subr.mxu0 0.0
        %3118 = vmatpush1.msra.mxu0 %v1476
        %3119 = vmatprep.subr.mxu0 0.0
        %3120 = vmatpush1.msra.mxu0 %v1477
        %3121 = vmatprep.subr.mxu0 0.0
        %3122 = vmatpush1.msra.mxu0 %v1478
        %3123 = vmatprep.subr.mxu0 0.0
        %3124 = vmatpush1.msra.mxu0 %v1479
        %3125 = vmatprep.subr.mxu0 0.0
        %3126 = vmatpush1.msra.mxu0 %v1480
        %3127 = vmatprep.subr.mxu0 0.0
        %3128 = vmatpush1.msra.mxu0 %v1481
        %3129 = vmatprep.subr.mxu0 0.0
        %3130 = vmatpush1.msra.mxu0 %v1482
        %3131 = vmatprep.subr.mxu0 0.0
        %3132 = vmatpush1.msra.mxu0 %v1483
        %3133 = vmatprep.subr.mxu0 0.0
        %3134 = vmatpush1.msra.mxu0 %v1484
        %3135 = vmatprep.subr.mxu0 0.0
        %3136 = vmatpush1.msra.mxu0 %v1485
        %3137 = vmatprep.subr.mxu0 0.0
        %3138 = vmatpush1.msra.mxu0 %v1486
        %3139 = vmatprep.subr.mxu0 0.0
        %3140 = vmatpush1.msra.mxu0 0.0
        %3141 = vmatprep.subr.mxu0 0.0
        %3142 = vmatpush1.msra.mxu0 0.0
        %3143 = vmatprep.subr.mxu0 0.0
        %3144 = vmatpush1.msra.mxu0 0.0
        %3145 = vmatprep.subr.mxu0 0.0
        %3146 = vmatpush1.msra.mxu0 0.0
        %3147 = vmatprep.subr.mxu0 0.0
        %3148 = vmatpush1.msra.mxu0 0.0
        %3149 = vmatprep.subr.mxu0 0.0
        %3150 = vmatpush1.msra.mxu0 0.0
        %3151 = vmatprep.subr.mxu0 0.0
        %3152 = vmatpush1.msra.mxu0 0.0
        %3153 = vmatprep.subr.mxu0 0.0
        %3154 = vmatpush1.msra.mxu0 0.0
        %3155 = vmatprep.subr.mxu0 0.0
        %3156 = vmatpush1.msra.mxu0 0.0
        %3157 = vmatprep.subr.mxu0 0.0
        %3158 = vmatpush1.msra.mxu0 0.0
        %3159 = vmatprep.subr.mxu0 0.0
        %3160 = vmatpush1.msra.mxu0 0.0
        %3161 = vmatprep.subr.mxu0 0.0
        %3162 = vmatpush1.msra.mxu0 0.0
        %3163 = vmatprep.subr.mxu0 0.0
        %3164 = vmatpush1.msra.mxu0 0.0
        %3165 = vmatprep.subr.mxu0 0.0
        %3166 = vmatpush1.msra.mxu0 0.0
        %3167 = vmatprep.subr.mxu0 0.0
        %3168 = vmatpush1.msra.mxu0 0.0
        %3169 = vmatprep.subr.mxu0 0.0
        %3170 = vmatpush1.msra.mxu0 0.0
        %3171 = vmatprep.mubr.f32.mxu0 0.0
        %3172 = vmatmul.mubr.f32.gmra.mrb[0].mxu0 %v3106
        %v3173 = vpop.f32.mrb[0].mxu0
        %v3174 = vadd.f32 0.0, %v3173
        %v3175 = vpop.f32.mrb[0].mxu0
        %3176 = vdwg.mxu0
        %v3177 = vadd.f32 %v3105, %v3174
        %3178 = vst [vmem:[#allocation6] sm:$0xff] %v3177
        %3179 = vst [vmem:[#allocation4] sm:$0xff] %v2945
        %p3180 = scmp.eq.s32.totalorder %s25, 1
        // Predicated region
        $region115: #{tpu_custom_call.1} parent=97 // pred_check
          %p3181 = pneg %p3180
        $region116: #{tpu_custom_call.1} parent=97 // pred_check_branch
          %3183 = sbr.rel (%p3181) target = $region118
        $region117: #{tpu_custom_call.1} parent=97 // pred_region
          %v3184 = vld [vmem:[#allocation5] sm:$0xff]
          %v3185 = vmax.f32 %v3184, 1e-30
          %v3186 = vrcp.pop %v3185
          %vm3187 = vcmp.gt.f32.partialorder %v3184, 0.0
          %v3188 = vld [vmem:[#allocation6] sm:$0xff]
          %v3189 = vmul.f32 %v3188, %v3186
          %v3190 = vsel %vm3187, %v3189, 0.0
          %3191 = vst [vmem:[#allocation13] sm:$0xff] %v3190
        $region118: #{tpu_custom_call.1} parent=97 // pred_fallthru
          _
        // Predicated region
        $region119: #{tpu_custom_call.1} parent=97 // pred_check
          %p3192 = pneg %p289
        $region120: #{tpu_custom_call.1} parent=97 // pred_check_branch
          %3194 = sbr.rel (%p3192) target = $region122
        $region121: #{tpu_custom_call.1} parent=97 // pred_region
          %s3196 = ssub.s32 128, 128
          %3197 = vsyncadd [#allocation9], %s3196
          %s3199 = sshll.u32 [#allocation13], 4
          %s3200 = int_to_ptr.vmem [resolvable:$true] %s3199
          %3202 = dma.vmem_to_hbm [thread:$0]  %s3200, 128, %s11, [#allocation9]
        $region122: #{tpu_custom_call.1} parent=97 // pred_fallthru
          _
        // Predicated region
        $region123: #{tpu_custom_call.1} parent=97 // pred_check
          %p3203 = pneg %p289
        $region124: #{tpu_custom_call.1} parent=97 // pred_check_branch
          %3205 = sbr.rel (%p3203) target = $region126
        $region125: #{tpu_custom_call.1} parent=97 // pred_region
          %3206 = dma.done [#allocation9], 128
        $region126: #{tpu_custom_call.1} parent=97 // pred_fallthru
          _
      $region98: #{tpu_custom_call.1} parent=5 // pred_fallthru
        _
      %p3207 = scmp.le.s32.totalorder 2, %s20
      // Predicated region
      $region127: #{tpu_custom_call.1} parent=5 // pred_check
        %p3208 = pneg %p3207
      $region128: #{tpu_custom_call.1} parent=5 // pred_check_branch
        %3210 = sbr.rel (%p3208) target = $region130
      $region129: #{tpu_custom_call.1} parent=5 // pred_region
        %s3211 = ssub.s32 %s20, 2
      $region130: #{tpu_custom_call.1} parent=5 // pred_fallthru
        _
    $region6: #{tpu_custom_call.1} parent=1 // loop_footer
      %s24 = sadd.s32 1, %s20
    $region7: #{tpu_custom_call.1} parent=1 // loop_footer_branch
      %19 = sbr.rel target = $region3
    $region8: #{tpu_custom_call.1} parent=1 // loop_exit
      _
    %3212 = vsyncpa [#allocation8], 1
    %s3213 = scalar_lea.sflag [#allocation8], 1
    %3214 = vsyncpa %s3213, 1
    %3215 = vsyncpa [#allocation11], 1
    %3216 = vsyncpa [#allocation9], 1
    %s3217 = scalar_lea.sflag [#allocation9], 1
    %3218 = vsyncpa %s3217, 1

</llo_original>
